<compile_context>
chip_gen: v5e
topology: v5e:2x2
jax: 0.10.0
libtpu: 0.0.40
codegen_flags: <defaults>
</compile_context>

<pallas_src>
import functools

import jax
import jax.numpy as jnp
from jax.experimental import pallas as pl
from jax.experimental.pallas import tpu as pltpu


# ----------------------------------------------------------------------------- kernels

def ffn_kernel_resident(x_ref, w1_ref, b1_ref, w2_ref, b2_ref, o_ref, *,
                        approximate_gelu, gelu_dtype):
    """Weights resident in VMEM; one grid step per (batch, position-tile)."""
    # (C, tl) tile: channels on sublanes, positions on lanes.  Cast is a no-op if the
    # caller already provides bf16 activations; otherwise it runs once per tile.
    x = x_ref[...].astype(w1_ref.dtype)

    # First 1x1 conv: (H, C) @ (C, tl) -> (H, tl), f32 accumulation on the MXU.
    h = jnp.dot(w1_ref[...], x, preferred_element_type=jnp.float32)
    # tanh GELU in bf16 -> EUP slot instead of an exact-erf f32 VALU polynomial.
    h = jax.nn.gelu((h + b1_ref[...]).astype(gelu_dtype), approximate=approximate_gelu)

    # Second 1x1 conv: (C, H) @ (H, tl) -> (C, tl).
    y = jnp.dot(w2_ref[...], h.astype(w2_ref.dtype), preferred_element_type=jnp.float32)
    o_ref[...] = (y + b2_ref[...]).astype(o_ref.dtype)

    # TODO(synk): Dropout is identity for p=0.0 / eval; a training path would need a
    # pltpu.prng_seed + pltpu.prng_random_bits mask, not implemented here.


def ffn_kernel_tiled(x_ref, w1_ref, b1_ref, w2_ref, b2_ref, o_ref,
                     xb_ref, acc_ref, *, approximate_gelu, gelu_dtype):
    """Fallback: hidden dim tiled on the trailing (reduction) grid axis."""
    hk = pl.program_id(2)

    @pl.when(hk == 0)
    def _init():
        acc_ref[...] = jnp.zeros_like(acc_ref)
        # Cast x to the compute dtype ONCE per (b, l) tile, not once per hidden chunk.
        xb_ref[...] = x_ref[...].astype(xb_ref.dtype)

    h = jnp.dot(w1_ref[...], xb_ref[...], preferred_element_type=jnp.float32)
    h = jax.nn.gelu((h + b1_ref[...]).astype(gelu_dtype), approximate=approximate_gelu)
    acc_ref[...] += jnp.dot(w2_ref[...], h.astype(w2_ref.dtype),
                            preferred_element_type=jnp.float32)

    @pl.when(hk == pl.num_programs(2) - 1)
    def _finalize():
        o_ref[...] = (acc_ref[...] + b2_ref[...]).astype(o_ref.dtype)


# ------------------------------------------------------------------------ sizing logic

def _itemsize(dt):
    return jnp.dtype(dt).itemsize


def _vmem_budget_bytes():
    cap = 64 * 1024 * 1024            # conservative floor: v7x per-TC VMEM
    try:
        cap = pltpu.get_tpu_info().vmem_capacity_bytes
    except Exception:
        pass
    return int(cap * 0.80)            # leave headroom for compiler internal scratch


def _resident_footprint(C, H, tl, x_bytes, o_bytes, c_bytes):
    return (2 * (2 * H * C * c_bytes)          # W1 + W2 (budgeted double-buffered)
            + 2 * C * tl * x_bytes             # x tiles (double-buffered)
            + 2 * C * tl * o_bytes             # out tiles (double-buffered)
            + H * tl * 4                       # GELU intermediate (f32 worst case)
            + (H + C) * 128 * 4)               # lane-padded biases


def _tiled_footprint(C, th, tl, x_bytes, o_bytes, c_bytes):
    return (2 * (2 * th * C * c_bytes)         # W1/W2 chunks (double-buffered)
            + 2 * C * tl * x_bytes + C * tl * c_bytes   # x tiles + bf16 x scratch
            + 2 * C * tl * o_bytes + C * tl * 4         # out tiles + f32 accumulator
            + th * tl * 4                               # GELU intermediate
            + (th + 2 * C) * 128 * 4)                   # lane-padded biases


def _tl_candidates(L, cap):
    """Candidate position-tile sizes, largest first: full L, then multiples of 128."""
    cands = [L] if L <= cap else []
    t = (min(cap, L) // 128) * 128
    while t >= 128:
        if t < L:
            cands.append(t)
        t -= 128
    return cands or [L]


# ----------------------------------------------------------------------------- wrapper

def feed_forward(x_ncl, w1, b1, w2, b2, *, tl=None, th=512,
                 compute_dtype=jnp.bfloat16, approximate_gelu=True,
                 force_tiled=False):
    """x_ncl: (B, C, L) like PyTorch Conv1d input.  Returns (B, C, L)."""
    B, C, L = x_ncl.shape
    H = w1.shape[0]                                      # dim * mult
    c_bytes = _itemsize(compute_dtype)
    x_bytes = _itemsize(x_ncl.dtype)
    o_bytes = _itemsize(x_ncl.dtype)
    budget = _vmem_budget_bytes()

    # 1x1 conv weights -> plain matrices (bf16 for the MXU); biases stay f32.
    w1_2d = w1[:, :, 0].astype(compute_dtype)            # (H, C)
    w2_2d = w2[:, :, 0].astype(compute_dtype)            # (C, H)
    b1_2d = b1.reshape(H, 1).astype(jnp.float32)         # broadcast over lanes
    b2_2d = b2.reshape(C, 1).astype(jnp.float32)

    gelu_dtype = compute_dtype  # bf16 GELU on v6e/v7x; v5e converts internally

    resident = (not force_tiled) and (
        _resident_footprint(C, H, 128, x_bytes, o_bytes, c_bytes) <= budget)

    if resident:
        if tl is None:
            cap = min(L, 2048)
            # v7x megacore: keep at least 2 (batch, l) tiles so both TCs have work.
            if B == 1 and L >= 256:
                cap = min(cap, max(128, ((pl.cdiv(L, 2) + 127) // 128) * 128))
            cands = _tl_candidates(L, cap)
            tl = cands[-1]
            for cand in cands:
                if _resident_footprint(C, H, cand, x_bytes, o_bytes, c_bytes) <= budget:
                    tl = cand
                    break
        nl = pl.cdiv(L, tl)
        kernel = functools.partial(ffn_kernel_resident,
                                   approximate_gelu=approximate_gelu,
                                   gelu_dtype=gelu_dtype)
        grid_spec = pltpu.PrefetchScalarGridSpec(
            num_scalar_prefetch=0,
            grid=(B, nl),
            in_specs=[
                pl.BlockSpec((None, C, tl), lambda b, l: (b, 0, l)),   # x tile
                pl.BlockSpec((H, C), lambda b, l: (0, 0)),             # W1 (resident)
                pl.BlockSpec((H, 1), lambda b, l: (0, 0)),             # b1 (resident)
                pl.BlockSpec((C, H), lambda b, l: (0, 0)),             # W2 (resident)
                pl.BlockSpec((C, 1), lambda b, l: (0, 0)),             # b2 (resident)
            ],
            out_specs=pl.BlockSpec((None, C, tl), lambda b, l: (b, 0, l)),
        )
        dims = ("parallel", "parallel")
    else:
        # Hidden dim tiled on a trailing reduction axis (weights too large for VMEM).
        th = min(th, H)
        if th < H:
            th = max(128, (th // 128) * 128)
            Hp = ((H + th - 1) // th) * th
            if Hp != H:
                # Zero-padding hidden units is exact: gelu(0)=0 and the padded W2
                # columns are zero, so padded units contribute nothing.
                w1_2d = jnp.pad(w1_2d, ((0, Hp - H), (0, 0)))
                b1_2d = jnp.pad(b1_2d, ((0, Hp - H), (0, 0)))
                w2_2d = jnp.pad(w2_2d, ((0, 0), (0, Hp - H)))
        else:
            Hp = H
        if tl is None:
            cands = _tl_candidates(L, min(L, 2048))
            tl = cands[-1]
            for cand in cands:
                if _tiled_footprint(C, th, cand, x_bytes, o_bytes, c_bytes) <= budget:
                    tl = cand
                    break
        nl = pl.cdiv(L, tl)
        nh = Hp // th
        kernel = functools.partial(ffn_kernel_tiled,
                                   approximate_gelu=approximate_gelu,
                                   gelu_dtype=gelu_dtype)
        # NOTE: deeper weight-chunk buffering (pl.Buffered) or an l-inner loop per
        # weight-chunk residency would further hide the small per-step weight DMAs.
        grid_spec = pltpu.PrefetchScalarGridSpec(
            num_scalar_prefetch=0,
            grid=(B, nl, nh),                                            # reduction last
            in_specs=[
                pl.BlockSpec((None, C, tl), lambda b, l, k: (b, 0, l)),  # x tile
                pl.BlockSpec((th, C), lambda b, l, k: (k, 0)),           # W1 chunk
                pl.BlockSpec((th, 1), lambda b, l, k: (k, 0)),           # b1 chunk
                pl.BlockSpec((C, th), lambda b, l, k: (0, k)),           # W2 chunk
                pl.BlockSpec((C, 1), lambda b, l, k: (0, 0)),            # b2
            ],
            out_specs=pl.BlockSpec((None, C, tl), lambda b, l, k: (b, 0, l)),
            scratch_shapes=[pltpu.VMEM((C, tl), compute_dtype),          # x, cast once
                            pltpu.VMEM((C, tl), jnp.float32)],           # f32 accumulator
        )
        dims = ("parallel", "parallel", "arbitrary")

    return pl.pallas_call(
        kernel,
        out_shape=jax.ShapeDtypeStruct((B, C, L), x_ncl.dtype),
        grid_spec=grid_spec,
        compiler_params=pltpu.CompilerParams(
            dimension_semantics=dims,
            vmem_limit_bytes=budget,
        ),
    )(x_ncl, w1_2d, b1_2d, w2_2d, b2_2d)


# -------------------------------------------------------------------------------- demo

if __name__ == "__main__":
    # Module config: FeedForward(dim=64, mult=4) -> hidden = 256.
    B, DIM, L, MULT = 2, 64, 512, 4
    H = DIM * MULT

    key = jax.random.PRNGKey(0)
    kx, k1, k2, k3, k4 = jax.random.split(key, 5)

    x = jax.random.normal(kx, (B, DIM, L), dtype=jnp.float32)

    # Deterministic synthetic parameters (Conv1d weight shapes: (out, in, 1)).
    w1 = jax.random.normal(k1, (H, DIM, 1), dtype=jnp.float32) * (1.0 / jnp.sqrt(DIM))
    b1 = jax.random.normal(k2, (H,), dtype=jnp.float32) * 0.01
    w2 = jax.random.normal(k3, (DIM, H, 1), dtype=jnp.float32) * (1.0 / jnp.sqrt(H))
    b2 = jax.random.normal(k4, (DIM,), dtype=jnp.float32) * 0.01

    # Primary path: weights grid-resident, grid = (B, position-tiles).
    out = feed_forward(x, w1, b1, w2, b2)
    # Fallback path exercised explicitly: hidden dim tiled (nh=2) + f32 accumulation.
    out_tiled = feed_forward(x, w1, b1, w2, b2, force_tiled=True, th=128)
    jax.block_until_ready((out, out_tiled))

    # Pure-JAX f32 reference (exact-erf GELU like nn.GELU()); bf16 MXU operands and
    # the tanh GELU approximation stay well inside the tolerance below.
    h_ref = jax.nn.gelu(jnp.einsum('hc,bcl->bhl', w1[:, :, 0], x)
                        + b1[None, :, None], approximate=False)
    ref = jnp.einsum('ch,bhl->bcl', w2[:, :, 0], h_ref) + b2[None, :, None]

    assert out.shape == (B, DIM, L)
    for got, name in ((out, "resident"), (out_tiled, "tiled")):
        err = jnp.max(jnp.abs(got - ref))
        assert jnp.allclose(got, ref, atol=5e-2, rtol=5e-2), \
            f"{name} path: max abs err {err}"

    print("KERNEL_OK")
</pallas_src>

<mosaic_0001>
module attributes {stable_mosaic.version = 11 : i64} {
  func.func @ffn_kernel_resident(%arg0: i32, %arg1: i32, %arg2: memref<1x64x512xf32, #tpu.memory_space<vmem>>, %arg3: memref<256x64xbf16, #tpu.memory_space<vmem>>, %arg4: memref<256x1xf32, #tpu.memory_space<vmem>>, %arg5: memref<64x256xbf16, #tpu.memory_space<vmem>>, %arg6: memref<64x1xf32, #tpu.memory_space<vmem>>, %arg7: memref<1x64x512xf32, #tpu.memory_space<vmem>>) attributes {dimension_semantics = [#tpu.dimension_semantics<parallel>, #tpu.dimension_semantics<parallel>], iteration_bounds = array<i64: 2, 1>, scalar_prefetch = 0 : i64, scratch_operands = 0 : i64, tpu.core_type = #tpu.core_type<tc>, window_params = [{transform_indices = @transform_0, window_bounds = array<i64: 1, 64, 512>}, {pipeline_mode = #tpu.pipeline_mode<synchronous>, transform_indices = @transform_1, window_bounds = array<i64: 256, 64>}, {pipeline_mode = #tpu.pipeline_mode<synchronous>, transform_indices = @transform_2, window_bounds = array<i64: 256, 1>}, {pipeline_mode = #tpu.pipeline_mode<synchronous>, transform_indices = @transform_3, window_bounds = array<i64: 64, 256>}, {pipeline_mode = #tpu.pipeline_mode<synchronous>, transform_indices = @transform_4, window_bounds = array<i64: 64, 1>}, {transform_indices = @transform_5, window_bounds = array<i64: 1, 64, 512>}]} {
    %c0 = arith.constant 0 : index
    %c0_0 = arith.constant 0 : index
    %c0_1 = arith.constant 0 : index
    %0 = vector.load %arg2[%c0, %c0_0, %c0_1] : memref<1x64x512xf32, #tpu.memory_space<vmem>>, vector<1x64x512xf32>
    %1 = vector.shape_cast %0 : vector<1x64x512xf32> to vector<64x512xf32>
    %2 = arith.truncf %1 : vector<64x512xf32> to vector<64x512xbf16>
    %c0_2 = arith.constant 0 : index
    %c0_3 = arith.constant 0 : index
    %3 = vector.load %arg3[%c0_2, %c0_3] : memref<256x64xbf16, #tpu.memory_space<vmem>>, vector<256x64xbf16>
    %cst = arith.constant dense<0.000000e+00> : vector<256x512xf32>
    %4 = tpu.matmul %3, %2, %cst {dimension_numbers = #tpu.dot_dimension_numbers<[1], [0], [0], [1], [0, 0, 1, 1], [], []>} : vector<256x64xbf16>, vector<64x512xbf16>, vector<256x512xf32> -> vector<256x512xf32>
    %c0_4 = arith.constant 0 : index
    %c0_5 = arith.constant 0 : index
    %5 = vector.load %arg4[%c0_4, %c0_5] : memref<256x1xf32, #tpu.memory_space<vmem>>, vector<256x1xf32>
    %6 = vector.broadcast %5 : vector<256x1xf32> to vector<256x512xf32>
    %7 = arith.addf %4, %6 : vector<256x512xf32>
    %8 = arith.truncf %7 : vector<256x512xf32> to vector<256x512xbf16>
    %9 = arith.mulf %8, %8 : vector<256x512xbf16>
    %10 = arith.mulf %8, %9 : vector<256x512xbf16>
    %cst_6 = arith.constant 4.467770e-02 : bf16
    %11 = vector.broadcast %cst_6 : bf16 to vector<256x512xbf16>
    %12 = arith.mulf %11, %10 : vector<256x512xbf16>
    %13 = arith.addf %8, %12 : vector<256x512xbf16>
    %cst_7 = arith.constant 7.968750e-01 : bf16
    %14 = vector.broadcast %cst_7 : bf16 to vector<256x512xbf16>
    %15 = arith.mulf %14, %13 : vector<256x512xbf16>
    %16 = math.tanh %15 : vector<256x512xbf16>
    %cst_8 = arith.constant 1.000000e+00 : bf16
    %17 = vector.broadcast %cst_8 : bf16 to vector<256x512xbf16>
    %18 = arith.addf %17, %16 : vector<256x512xbf16>
    %cst_9 = arith.constant 5.000000e-01 : bf16
    %19 = vector.broadcast %cst_9 : bf16 to vector<256x512xbf16>
    %20 = arith.mulf %19, %18 : vector<256x512xbf16>
    %21 = arith.mulf %8, %20 : vector<256x512xbf16>
    %c0_10 = arith.constant 0 : index
    %c0_11 = arith.constant 0 : index
    %22 = vector.load %arg5[%c0_10, %c0_11] : memref<64x256xbf16, #tpu.memory_space<vmem>>, vector<64x256xbf16>
    %cst_12 = arith.constant dense<0.000000e+00> : vector<64x512xf32>
    %23 = tpu.matmul %22, %21, %cst_12 {dimension_numbers = #tpu.dot_dimension_numbers<[1], [0], [0], [1], [0, 0, 1, 1], [], []>} : vector<64x256xbf16>, vector<256x512xbf16>, vector<64x512xf32> -> vector<64x512xf32>
    %c0_13 = arith.constant 0 : index
    %c0_14 = arith.constant 0 : index
    %24 = vector.load %arg6[%c0_13, %c0_14] : memref<64x1xf32, #tpu.memory_space<vmem>>, vector<64x1xf32>
    %25 = vector.broadcast %24 : vector<64x1xf32> to vector<64x512xf32>
    %26 = arith.addf %23, %25 : vector<64x512xf32>
    %c0_15 = arith.constant 0 : index
    %c0_16 = arith.constant 0 : index
    %c0_17 = arith.constant 0 : index
    %27 = vector.load %arg7[%c0_15, %c0_16, %c0_17] : memref<1x64x512xf32, #tpu.memory_space<vmem>>, vector<1x64x512xf32>
    %28 = vector.shape_cast %27 : vector<1x64x512xf32> to vector<64x512xf32>
    %29 = vector.shape_cast %26 : vector<64x512xf32> to vector<1x64x512xf32>
    tpu.vector_store %arg7[%c0_15, %c0_16, %c0_17], %29 {strides = array<i32>} : memref<1x64x512xf32, #tpu.memory_space<vmem>>, vector<1x64x512xf32>,
    return
  }
  func.func @transform_0(%arg0: i32, %arg1: i32) -> (i32, i32, i32) {
    %c0_i32 = arith.constant 0 : i32
    %c0_i32_0 = arith.constant 0 : i32
    return %arg0, %c0_i32, %arg1 : i32, i32, i32
  }
  func.func @transform_1(%arg0: i32, %arg1: i32) -> (i32, i32) {
    %c0_i32 = arith.constant 0 : i32
    %c0_i32_0 = arith.constant 0 : i32
    %c0_i32_1 = arith.constant 0 : i32
    return %c0_i32, %c0_i32_0 : i32, i32
  }
  func.func @transform_2(%arg0: i32, %arg1: i32) -> (i32, i32) {
    %c0_i32 = arith.constant 0 : i32
    %c0_i32_0 = arith.constant 0 : i32
    %c0_i32_1 = arith.constant 0 : i32
    return %c0_i32, %c0_i32_0 : i32, i32
  }
  func.func @transform_3(%arg0: i32, %arg1: i32) -> (i32, i32) {
    %c0_i32 = arith.constant 0 : i32
    %c0_i32_0 = arith.constant 0 : i32
    %c0_i32_1 = arith.constant 0 : i32
    return %c0_i32, %c0_i32_0 : i32, i32
  }
  func.func @transform_4(%arg0: i32, %arg1: i32) -> (i32, i32) {
    %c0_i32 = arith.constant 0 : i32
    %c0_i32_0 = arith.constant 0 : i32
    %c0_i32_1 = arith.constant 0 : i32
    return %c0_i32, %c0_i32_0 : i32, i32
  }
  func.func @transform_5(%arg0: i32, %arg1: i32) -> (i32, i32, i32) {
    %c0_i32 = arith.constant 0 : i32
    %c0_i32_0 = arith.constant 0 : i32
    return %arg0, %c0_i32, %arg1 : i32, i32, i32
  }
}

</mosaic_0001>

<llo_original>
// kernel: tpu_custom_call.1
$region0: #{tpu_custom_call.1}
  #allocation0 [shape = 'u32[]', space=smem, size = 0x4, offset = 0x4, fixed_abs, tag = 'smem constant byte address 0x4 - core index']
  #allocation1 [shape = 'u32[72,128]{1,0:T(1,128)}', space=vmem, size = 0x9000, scoped, tag = 'internal scratch']
  %s0 = inlined_call_operand.hbm [shape: f32[2,64,512], index: 0, kind: input, shape index: {}]
  %s1 = inlined_call_operand.vmem [shape: bf16[256,64], index: 1, kind: input, shape index: {}]
  %s2 = inlined_call_operand.vmem [shape: f32[256,1], index: 2, kind: input, shape index: {}]
  %s3 = inlined_call_operand.vmem [shape: bf16[64,256], index: 3, kind: input, shape index: {}]
  %s4 = inlined_call_operand.vmem [shape: f32[64,1], index: 4, kind: input, shape index: {}]
  %s5 = inlined_call_operand.hbm [shape: f32[2,64,512], index: 5, kind: output, shape index: {}]
  %s6 = sld [smem:[#allocation0]]
  $region57: #{tpu_custom_call.1} parent=0
    _
  %s8 = ssub.s32 1, %s6
  %s9 = scalar_select 0, %s8, %s6
  $region1: #{tpu_custom_call.1} parent=0
    #allocation2 [shape = 'u8[262144]{0}', space=vmem, size = 0x40000, scoped, tag = 'input window, operand 0']
    #allocation3 [shape = 's32[2]{0}', space=sflag, size = 0x8, scoped, tag = 'scoped memory for tpu_custom_call.1']
    #allocation4 [shape = 's32[2]{0}', space=sflag, size = 0x8, scoped, tag = 'scoped memory for tpu_custom_call.1']
    #allocation5 [shape = 'u8[262144]{0}', space=vmem, size = 0x40000, scoped, tag = 'output window, operand 0']
    %10 = vsyncpa [#allocation3], 0
    %s11 = scalar_lea.sflag [#allocation3], 1
    %12 = vsyncpa %s11, 0
    %13 = vsyncpa [#allocation4], 0
    %s14 = scalar_lea.sflag [#allocation4], 1
    %15 = vsyncpa %s14, 0
    loop: start=0, step=1, limit=4
    $region2: #{tpu_custom_call.1} parent=1 // loop_pre_header
      _
    $region3: #{tpu_custom_call.1} parent=1 // loop_header
      %s17 = sphi 0, %s21
      %p18 = scmp.ge.s32.totalorder %s17, 4
      %s24 = sphi 0, %s36
      %s25 = sphi 0, %s32
      %s26 = sphi 0, %s24
      %s27 = sphi 0, %s25
      %s28 = sphi 0, %s26
      %s29 = sphi 0, %s27
      %s41 = sphi 0, %s43
      %s44 = sphi 0, %s41
      %s45 = sphi 0, %s44
      %s61 = sphi 0, %s45
      %s65 = sphi 0, %s65
      %s67 = sphi 0, %s65
      %s68 = sphi 0, %s67
      %s82 = sphi 0, %s68
      %s86 = sphi 0, %s86
      %s88 = sphi 0, %s86
      %s89 = sphi 0, %s88
      %s103 = sphi 0, %s89
      %s107 = sphi 0, %s107
      %s109 = sphi 0, %s107
      %s110 = sphi 0, %s109
      %s124 = sphi 0, %s110
      %s128 = sphi 0, %s128
      %s130 = sphi 0, %s128
      %s131 = sphi 0, %s130
      %s145 = sphi 0, %s131
      %s153 = sphi 0, %s155
      %s156 = sphi 0, %s153
      %s157 = sphi 0, %s156
      %s173 = sphi 0, %s157
    $region4: #{tpu_custom_call.1} parent=1 // loop_header_branch
      %20 = sbr.rel (%p18) target = $region8
    $region5: #{tpu_custom_call.1} parent=1 // loop_body
      %s22 = ssub.s32 %s17, 1
      %s23 = ssub.s32 %s17, 2
      %s30 = sadd.s32 1, %s25
      %p31 = scmp.ge.s32.totalorder %s30, 1
      %s32 = scalar_select %p31, 0, %s30
      %s33 = sadd.s32 1, %s24
      %s34 = scalar_select %p31, %s33, %s24
      %p35 = scmp.ge.s32.totalorder %s34, 2
      %s36 = scalar_select %p35, 0, %s34
      %s37 = ssub.s32 %s24, %s36
      %s38 = ssub.s32 %s25, %s32
      %s39 = sor.u32 %s37, %s38
      %p40 = scmp.eq.s32.totalorder %s39, 0
      %s42 = sadd.s32 %s41, 1
      %s43 = scalar_select %p40, %s41, %s42
      %p46 = pneg %p40
      %p47 = scmp.eq.s32.totalorder %s17, 1
      %p48 = por %p46, %p47
      %p49 = scmp.ne.s32.totalorder %s41, %s44
      %p50 = scmp.eq.s32.totalorder %s17, 0
      %p51 = por %p49, %p50
      %p52 = scmp.ne.s32.totalorder %s41, %s44
      %p53 = scmp.eq.s32.totalorder %s22, 1
      %p54 = por %p52, %p53
      %p55 = scmp.ne.s32.totalorder %s44, %s45
      %p56 = scmp.eq.s32.totalorder %s22, 0
      %p57 = por %p55, %p56
      %p58 = scmp.ne.s32.totalorder %s44, %s45
      %p59 = scmp.eq.s32.totalorder %s23, 1
      %p60 = por %p58, %p59
      %p62 = scmp.ne.s32.totalorder %s45, %s61
      %p63 = scmp.eq.s32.totalorder %s23, 0
      %p64 = por %p62, %p63
      %s66 = sadd.s32 %s65, 1
      %p69 = scmp.eq.s32.totalorder %s17, 1
      %p70 = scmp.ne.s32.totalorder %s65, %s67
      %p71 = scmp.eq.s32.totalorder %s17, 0
      %p72 = por %p70, %p71
      %p73 = scmp.ne.s32.totalorder %s65, %s67
      %p74 = scmp.eq.s32.totalorder %s22, 1
      %p75 = por %p73, %p74
      %p76 = scmp.ne.s32.totalorder %s67, %s68
      %p77 = scmp.eq.s32.totalorder %s22, 0
      %p78 = por %p76, %p77
      %p79 = scmp.ne.s32.totalorder %s67, %s68
      %p80 = scmp.eq.s32.totalorder %s23, 1
      %p81 = por %p79, %p80
      %p83 = scmp.ne.s32.totalorder %s68, %s82
      %p84 = scmp.eq.s32.totalorder %s23, 0
      %p85 = por %p83, %p84
      %s87 = sadd.s32 %s86, 1
      %p90 = scmp.eq.s32.totalorder %s17, 1
      %p91 = scmp.ne.s32.totalorder %s86, %s88
      %p92 = scmp.eq.s32.totalorder %s17, 0
      %p93 = por %p91, %p92
      %p94 = scmp.ne.s32.totalorder %s86, %s88
      %p95 = scmp.eq.s32.totalorder %s22, 1
      %p96 = por %p94, %p95
      %p97 = scmp.ne.s32.totalorder %s88, %s89
      %p98 = scmp.eq.s32.totalorder %s22, 0
      %p99 = por %p97, %p98
      %p100 = scmp.ne.s32.totalorder %s88, %s89
      %p101 = scmp.eq.s32.totalorder %s23, 1
      %p102 = por %p100, %p101
      %p104 = scmp.ne.s32.totalorder %s89, %s103
      %p105 = scmp.eq.s32.totalorder %s23, 0
      %p106 = por %p104, %p105
      %s108 = sadd.s32 %s107, 1
      %p111 = scmp.eq.s32.totalorder %s17, 1
      %p112 = scmp.ne.s32.totalorder %s107, %s109
      %p113 = scmp.eq.s32.totalorder %s17, 0
      %p114 = por %p112, %p113
      %p115 = scmp.ne.s32.totalorder %s107, %s109
      %p116 = scmp.eq.s32.totalorder %s22, 1
      %p117 = por %p115, %p116
      %p118 = scmp.ne.s32.totalorder %s109, %s110
      %p119 = scmp.eq.s32.totalorder %s22, 0
      %p120 = por %p118, %p119
      %p121 = scmp.ne.s32.totalorder %s109, %s110
      %p122 = scmp.eq.s32.totalorder %s23, 1
      %p123 = por %p121, %p122
      %p125 = scmp.ne.s32.totalorder %s110, %s124
      %p126 = scmp.eq.s32.totalorder %s23, 0
      %p127 = por %p125, %p126
      %s129 = sadd.s32 %s128, 1
      %p132 = scmp.eq.s32.totalorder %s17, 1
      %p133 = scmp.ne.s32.totalorder %s128, %s130
      %p134 = scmp.eq.s32.totalorder %s17, 0
      %p135 = por %p133, %p134
      %p136 = scmp.ne.s32.totalorder %s128, %s130
      %p137 = scmp.eq.s32.totalorder %s22, 1
      %p138 = por %p136, %p137
      %p139 = scmp.ne.s32.totalorder %s130, %s131
      %p140 = scmp.eq.s32.totalorder %s22, 0
      %p141 = por %p139, %p140
      %p142 = scmp.ne.s32.totalorder %s130, %s131
      %p143 = scmp.eq.s32.totalorder %s23, 1
      %p144 = por %p142, %p143
      %p146 = scmp.ne.s32.totalorder %s131, %s145
      %p147 = scmp.eq.s32.totalorder %s23, 0
      %p148 = por %p146, %p147
      %s149 = ssub.s32 %s24, %s36
      %s150 = ssub.s32 %s25, %s32
      %s151 = sor.u32 %s149, %s150
      %p152 = scmp.eq.s32.totalorder %s151, 0
      %s154 = sadd.s32 %s153, 1
      %s155 = scalar_select %p152, %s153, %s154
      %p158 = pneg %p152
      %p159 = scmp.eq.s32.totalorder %s17, 1
      %p160 = por %p158, %p159
      %p161 = scmp.ne.s32.totalorder %s153, %s156
      %p162 = scmp.eq.s32.totalorder %s17, 0
      %p163 = por %p161, %p162
      %p164 = scmp.ne.s32.totalorder %s153, %s156
      %p165 = scmp.eq.s32.totalorder %s22, 1
      %p166 = por %p164, %p165
      %p167 = scmp.ne.s32.totalorder %s156, %s157
      %p168 = scmp.eq.s32.totalorder %s22, 0
      %p169 = por %p167, %p168
      %p170 = scmp.ne.s32.totalorder %s156, %s157
      %p171 = scmp.eq.s32.totalorder %s23, 1
      %p172 = por %p170, %p171
      %p174 = scmp.ne.s32.totalorder %s157, %s173
      %p175 = scmp.eq.s32.totalorder %s23, 0
      %p176 = por %p174, %p175
      %p177 = scmp.le.s32.totalorder 1, %s17
      %p178 = scmp.lt.s32.totalorder %s17, 3
      %p179 = pnand %p177, %p178
      %p180 = pneg %p179
      // Predicated region
      $region9: #{tpu_custom_call.1} parent=5 // pred_check
        _
      $region10: #{tpu_custom_call.1} parent=5 // pred_check_branch
        %182 = sbr.rel (%p179) target = $region12
      $region11: #{tpu_custom_call.1} parent=5 // pred_region
        %s183 = ssub.s32 %s17, 1
        // Predicated region
        $region13: #{tpu_custom_call.1} parent=11 // pred_check
          %p184 = pneg %p78
        $region14: #{tpu_custom_call.1} parent=11 // pred_check_branch
          %186 = sbr.rel (%p184) target = $region16
        $region15: #{tpu_custom_call.1} parent=11 // pred_region
          _
        $region16: #{tpu_custom_call.1} parent=11 // pred_fallthru
          _
        // Predicated region
        $region17: #{tpu_custom_call.1} parent=11 // pred_check
          %p187 = pneg %p99
        $region18: #{tpu_custom_call.1} parent=11 // pred_check_branch
          %189 = sbr.rel (%p187) target = $region20
        $region19: #{tpu_custom_call.1} parent=11 // pred_region
          _
        $region20: #{tpu_custom_call.1} parent=11 // pred_fallthru
          _
        // Predicated region
        $region21: #{tpu_custom_call.1} parent=11 // pred_check
          %p190 = pneg %p120
        $region22: #{tpu_custom_call.1} parent=11 // pred_check_branch
          %192 = sbr.rel (%p190) target = $region24
        $region23: #{tpu_custom_call.1} parent=11 // pred_region
          _
        $region24: #{tpu_custom_call.1} parent=11 // pred_fallthru
          _
        // Predicated region
        $region25: #{tpu_custom_call.1} parent=11 // pred_check
          %p193 = pneg %p141
        $region26: #{tpu_custom_call.1} parent=11 // pred_check_branch
          %195 = sbr.rel (%p193) target = $region28
        $region27: #{tpu_custom_call.1} parent=11 // pred_region
          _
        $region28: #{tpu_custom_call.1} parent=11 // pred_fallthru
          _
      $region12: #{tpu_custom_call.1} parent=5 // pred_fallthru
        _
      %p196 = scmp.lt.s32.totalorder %s17, 2
      // Predicated region
      $region29: #{tpu_custom_call.1} parent=5 // pred_check
        %p197 = pneg %p196
      $region30: #{tpu_custom_call.1} parent=5 // pred_check_branch
        %199 = sbr.rel (%p197) target = $region32
      $region31: #{tpu_custom_call.1} parent=5 // pred_region
        // Predicated region
        $region33: #{tpu_custom_call.1} parent=31 // pred_check
          %p200 = pneg %p51
        $region34: #{tpu_custom_call.1} parent=31 // pred_check_branch
          %202 = sbr.rel (%p200) target = $region36
        $region35: #{tpu_custom_call.1} parent=31 // pred_region
          %s203 = sand.u32 %s41, 1
          %s204 = scalar_lea.sflag [#allocation3], %s203
          %s205 = sand.u32 %s41, 1
          %s206 = smul.addr %s205, 256
          %s207 = scalar_lea.vmem [#allocation2], %s206
          %s208 = smul.u32 4, %s25
          %210 = vsyncadd %s204, 0
          %s211 = smul.addr %s24, 32
          %s212 = sadd.s32 %s208, %s211
          %s213 = smul.addr %s212, 8
          %s214 = scalar_lea.hbm %s0, %s213
          %s215 = sshll.u32 %s214, 4
          %s216 = int_to_ptr.hbm [resolvable:$true] %s215
          %s217 = sshll.u32 %s207, 4
          %s218 = int_to_ptr.vmem [resolvable:$true] %s217
          %223 = dma.hbm_to_vmem [thread:$0]  %s216, 4096, %s218, %s204, 512, 512, 32
        $region36: #{tpu_custom_call.1} parent=31 // pred_fallthru
          _
      $region32: #{tpu_custom_call.1} parent=5 // pred_fallthru
        _
      %p224 = scmp.le.s32.totalorder 1, %s17
      %p225 = scmp.lt.s32.totalorder %s17, 3
      %p226 = pnand %p224, %p225
      %p227 = pneg %p226
      // Predicated region
      $region37: #{tpu_custom_call.1} parent=5 // pred_check
        _
      $region38: #{tpu_custom_call.1} parent=5 // pred_check_branch
        %229 = sbr.rel (%p226) target = $region40
      $region39: #{tpu_custom_call.1} parent=5 // pred_region
        %s230 = ssub.s32 %s17, 1
        %s231 = sand.u32 %s44, 1
        %s232 = scalar_lea.sflag [#allocation3], %s231
        %s233 = sand.u32 %s44, 1
        %s234 = smul.addr %s233, 256
        %s235 = scalar_lea.vmem [#allocation2], %s234
        // Predicated region
        $region41: #{tpu_custom_call.1} parent=39 // pred_check
          %p236 = pneg %p57
        $region42: #{tpu_custom_call.1} parent=39 // pred_check_branch
          %238 = sbr.rel (%p236) target = $region44
        $region43: #{tpu_custom_call.1} parent=39 // pred_region
          %240 = dma.done %s232, 4096
        $region44: #{tpu_custom_call.1} parent=39 // pred_fallthru
          _
        %s241 = sand.u32 %s44, 1
        %s242 = scalar_lea.sflag [#allocation3], %s241
        %s243 = sand.u32 %s44, 1
        %s244 = smul.addr %s243, 256
        %s245 = scalar_lea.vmem [#allocation2], %s244
        %p246 = pneg %p57
        %p247 = pneg %p54
        %p248 = pneg %p78
        %p249 = pneg %p75
        %p250 = pneg %p99
        %p251 = pneg %p96
        %p252 = pneg %p120
        %p253 = pneg %p117
        %p254 = pneg %p141
        %p255 = pneg %p138
        %p256 = pneg %p169
        %p257 = pneg %p166
        %s258 = sand.u32 %s156, 1
        %s259 = scalar_lea.sflag [#allocation4], %s258
        %s260 = sand.u32 %s156, 1
        %s261 = smul.addr %s260, 256
        %s262 = scalar_lea.vmem [#allocation5], %s261
        %s263 = smul.u32 4, %s27
        %s264 = smul.u32 4, %s27
        %v266 = vld [vmem:[%s235] sm:$0xff]
        %v267 = vld [vmem:[%s235 + $0x8] sm:$0xff]
        %v268 = vld [vmem:[%s235 + $0x10] sm:$0xff]
        %v269 = vld [vmem:[%s235 + $0x18] sm:$0xff]
        %v270 = vld [vmem:[%s235 + $0x20] sm:$0xff]
        %v271 = vld [vmem:[%s235 + $0x28] sm:$0xff]
        %v272 = vld [vmem:[%s235 + $0x30] sm:$0xff]
        %v273 = vld [vmem:[%s235 + $0x38] sm:$0xff]
        %v274 = vld [vmem:[%s235 + $0x40] sm:$0xff]
        %v275 = vld [vmem:[%s235 + $0x48] sm:$0xff]
        %v276 = vld [vmem:[%s235 + $0x50] sm:$0xff]
        %v277 = vld [vmem:[%s235 + $0x58] sm:$0xff]
        %v278 = vld [vmem:[%s235 + $0x60] sm:$0xff]
        %v279 = vld [vmem:[%s235 + $0x68] sm:$0xff]
        %v280 = vld [vmem:[%s235 + $0x70] sm:$0xff]
        %v281 = vld [vmem:[%s235 + $0x78] sm:$0xff]
        %v282 = vld [vmem:[%s235 + $0x80] sm:$0xff]
        %v283 = vld [vmem:[%s235 + $0x88] sm:$0xff]
        %v284 = vld [vmem:[%s235 + $0x90] sm:$0xff]
        %v285 = vld [vmem:[%s235 + $0x98] sm:$0xff]
        %v286 = vld [vmem:[%s235 + $0xa0] sm:$0xff]
        %v287 = vld [vmem:[%s235 + $0xa8] sm:$0xff]
        %v288 = vld [vmem:[%s235 + $0xb0] sm:$0xff]
        %v289 = vld [vmem:[%s235 + $0xb8] sm:$0xff]
        %v290 = vld [vmem:[%s235 + $0xc0] sm:$0xff]
        %v291 = vld [vmem:[%s235 + $0xc8] sm:$0xff]
        %v292 = vld [vmem:[%s235 + $0xd0] sm:$0xff]
        %v293 = vld [vmem:[%s235 + $0xd8] sm:$0xff]
        %v294 = vld [vmem:[%s235 + $0xe0] sm:$0xff]
        %v295 = vld [vmem:[%s235 + $0xe8] sm:$0xff]
        %v296 = vld [vmem:[%s235 + $0xf0] sm:$0xff]
        %v297 = vld [vmem:[%s235 + $0xf8] sm:$0xff]
        %v298 = vpack.c.bf16 %v270, %v266
        %v299 = vpack.c.bf16 %v271, %v267
        %v300 = vpack.c.bf16 %v272, %v268
        %v301 = vpack.c.bf16 %v273, %v269
        %v302 = vpack.c.bf16 %v278, %v274
        %v303 = vpack.c.bf16 %v279, %v275
        %v304 = vpack.c.bf16 %v280, %v276
        %v305 = vpack.c.bf16 %v281, %v277
        %v306 = vpack.c.bf16 %v286, %v282
        %v307 = vpack.c.bf16 %v287, %v283
        %v308 = vpack.c.bf16 %v288, %v284
        %v309 = vpack.c.bf16 %v289, %v285
        %v310 = vpack.c.bf16 %v294, %v290
        %v311 = vpack.c.bf16 %v295, %v291
        %v312 = vpack.c.bf16 %v296, %v292
        %v313 = vpack.c.bf16 %v297, %v293
        %v314 = vld [vmem:[%s1] sm:$0xf]
        %v315 = vld [vmem:[%s1 + $0x4] sm:$0xf]
        %v316 = vld [vmem:[%s1 + $0x8] sm:$0xf]
        %v317 = vld [vmem:[%s1 + $0xc] sm:$0xf]
        %v318 = vld [vmem:[%s1 + $0x10] sm:$0xf]
        %v319 = vld [vmem:[%s1 + $0x14] sm:$0xf]
        %v320 = vld [vmem:[%s1 + $0x18] sm:$0xf]
        %v321 = vld [vmem:[%s1 + $0x1c] sm:$0xf]
        %v322 = vld [vmem:[%s1 + $0x20] sm:$0xf]
        %v323 = vld [vmem:[%s1 + $0x24] sm:$0xf]
        %v324 = vld [vmem:[%s1 + $0x28] sm:$0xf]
        %v325 = vld [vmem:[%s1 + $0x2c] sm:$0xf]
        %v326 = vld [vmem:[%s1 + $0x30] sm:$0xf]
        %v327 = vld [vmem:[%s1 + $0x34] sm:$0xf]
        %v328 = vld [vmem:[%s1 + $0x38] sm:$0xf]
        %v329 = vld [vmem:[%s1 + $0x3c] sm:$0xf]
        %v330 = vld [vmem:[%s1 + $0x40] sm:$0xf]
        %v331 = vld [vmem:[%s1 + $0x44] sm:$0xf]
        %v332 = vld [vmem:[%s1 + $0x48] sm:$0xf]
        %v333 = vld [vmem:[%s1 + $0x4c] sm:$0xf]
        %v334 = vld [vmem:[%s1 + $0x50] sm:$0xf]
        %v335 = vld [vmem:[%s1 + $0x54] sm:$0xf]
        %v336 = vld [vmem:[%s1 + $0x58] sm:$0xf]
        %v337 = vld [vmem:[%s1 + $0x5c] sm:$0xf]
        %v338 = vld [vmem:[%s1 + $0x60] sm:$0xf]
        %v339 = vld [vmem:[%s1 + $0x64] sm:$0xf]
        %v340 = vld [vmem:[%s1 + $0x68] sm:$0xf]
        %v341 = vld [vmem:[%s1 + $0x6c] sm:$0xf]
        %v342 = vld [vmem:[%s1 + $0x70] sm:$0xf]
        %v343 = vld [vmem:[%s1 + $0x74] sm:$0xf]
        %v344 = vld [vmem:[%s1 + $0x78] sm:$0xf]
        %v345 = vld [vmem:[%s1 + $0x7c] sm:$0xf]
        %v346 = vld [vmem:[%s2] sm:$0xff]
        %v347 = vld [vmem:[%s2 + $0x8] sm:$0xff]
        %v348 = vld [vmem:[%s2 + $0x10] sm:$0xff]
        %v349 = vld [vmem:[%s2 + $0x18] sm:$0xff]
        %v350 = vld [vmem:[%s2 + $0x20] sm:$0xff]
        %v351 = vld [vmem:[%s2 + $0x28] sm:$0xff]
        %v352 = vld [vmem:[%s2 + $0x30] sm:$0xff]
        %v353 = vld [vmem:[%s2 + $0x38] sm:$0xff]
        %v354 = vld [vmem:[%s2 + $0x40] sm:$0xff]
        %v355 = vld [vmem:[%s2 + $0x48] sm:$0xff]
        %v356 = vld [vmem:[%s2 + $0x50] sm:$0xff]
        %v357 = vld [vmem:[%s2 + $0x58] sm:$0xff]
        %v358 = vld [vmem:[%s2 + $0x60] sm:$0xff]
        %v359 = vld [vmem:[%s2 + $0x68] sm:$0xff]
        %v360 = vld [vmem:[%s2 + $0x70] sm:$0xff]
        %v361 = vld [vmem:[%s2 + $0x78] sm:$0xff]
        %v362 = vld [vmem:[%s2 + $0x80] sm:$0xff]
        %v363 = vld [vmem:[%s2 + $0x88] sm:$0xff]
        %v364 = vld [vmem:[%s2 + $0x90] sm:$0xff]
        %v365 = vld [vmem:[%s2 + $0x98] sm:$0xff]
        %v366 = vld [vmem:[%s2 + $0xa0] sm:$0xff]
        %v367 = vld [vmem:[%s2 + $0xa8] sm:$0xff]
        %v368 = vld [vmem:[%s2 + $0xb0] sm:$0xff]
        %v369 = vld [vmem:[%s2 + $0xb8] sm:$0xff]
        %v370 = vld [vmem:[%s2 + $0xc0] sm:$0xff]
        %v371 = vld [vmem:[%s2 + $0xc8] sm:$0xff]
        %v372 = vld [vmem:[%s2 + $0xd0] sm:$0xff]
        %v373 = vld [vmem:[%s2 + $0xd8] sm:$0xff]
        %v374 = vld [vmem:[%s2 + $0xe0] sm:$0xff]
        %v375 = vld [vmem:[%s2 + $0xe8] sm:$0xff]
        %v376 = vld [vmem:[%s2 + $0xf0] sm:$0xff]
        %v377 = vld [vmem:[%s2 + $0xf8] sm:$0xff]
        %379 = vset.pattern.permute.xlu0 0
        %380 = vperm.xlu0 %379, %v346
        %v381 = vpop.permute.xlu0 %380
        %384 = vset.pattern.permute.xlu0 0
        %385 = vperm.xlu0 %384, %v347
        %v386 = vpop.permute.xlu0 %385
        %389 = vset.pattern.permute.xlu0 0
        %390 = vperm.xlu0 %389, %v348
        %v391 = vpop.permute.xlu0 %390
        %394 = vset.pattern.permute.xlu0 0
        %395 = vperm.xlu0 %394, %v349
        %v396 = vpop.permute.xlu0 %395
        %399 = vset.pattern.permute.xlu0 0
        %400 = vperm.xlu0 %399, %v350
        %v401 = vpop.permute.xlu0 %400
        %404 = vset.pattern.permute.xlu0 0
        %405 = vperm.xlu0 %404, %v351
        %v406 = vpop.permute.xlu0 %405
        %409 = vset.pattern.permute.xlu0 0
        %410 = vperm.xlu0 %409, %v352
        %v411 = vpop.permute.xlu0 %410
        %414 = vset.pattern.permute.xlu0 0
        %415 = vperm.xlu0 %414, %v353
        %v416 = vpop.permute.xlu0 %415
        %419 = vset.pattern.permute.xlu0 0
        %420 = vperm.xlu0 %419, %v354
        %v421 = vpop.permute.xlu0 %420
        %424 = vset.pattern.permute.xlu0 0
        %425 = vperm.xlu0 %424, %v355
        %v426 = vpop.permute.xlu0 %425
        %429 = vset.pattern.permute.xlu0 0
        %430 = vperm.xlu0 %429, %v356
        %v431 = vpop.permute.xlu0 %430
        %434 = vset.pattern.permute.xlu0 0
        %435 = vperm.xlu0 %434, %v357
        %v436 = vpop.permute.xlu0 %435
        %439 = vset.pattern.permute.xlu0 0
        %440 = vperm.xlu0 %439, %v358
        %v441 = vpop.permute.xlu0 %440
        %444 = vset.pattern.permute.xlu0 0
        %445 = vperm.xlu0 %444, %v359
        %v446 = vpop.permute.xlu0 %445
        %449 = vset.pattern.permute.xlu0 0
        %450 = vperm.xlu0 %449, %v360
        %v451 = vpop.permute.xlu0 %450
        %454 = vset.pattern.permute.xlu0 0
        %455 = vperm.xlu0 %454, %v361
        %v456 = vpop.permute.xlu0 %455
        %459 = vset.pattern.permute.xlu0 0
        %460 = vperm.xlu0 %459, %v362
        %v461 = vpop.permute.xlu0 %460
        %464 = vset.pattern.permute.xlu0 0
        %465 = vperm.xlu0 %464, %v363
        %v466 = vpop.permute.xlu0 %465
        %469 = vset.pattern.permute.xlu0 0
        %470 = vperm.xlu0 %469, %v364
        %v471 = vpop.permute.xlu0 %470
        %474 = vset.pattern.permute.xlu0 0
        %475 = vperm.xlu0 %474, %v365
        %v476 = vpop.permute.xlu0 %475
        %479 = vset.pattern.permute.xlu0 0
        %480 = vperm.xlu0 %479, %v366
        %v481 = vpop.permute.xlu0 %480
        %484 = vset.pattern.permute.xlu0 0
        %485 = vperm.xlu0 %484, %v367
        %v486 = vpop.permute.xlu0 %485
        %489 = vset.pattern.permute.xlu0 0
        %490 = vperm.xlu0 %489, %v368
        %v491 = vpop.permute.xlu0 %490
        %494 = vset.pattern.permute.xlu0 0
        %495 = vperm.xlu0 %494, %v369
        %v496 = vpop.permute.xlu0 %495
        %499 = vset.pattern.permute.xlu0 0
        %500 = vperm.xlu0 %499, %v370
        %v501 = vpop.permute.xlu0 %500
        %504 = vset.pattern.permute.xlu0 0
        %505 = vperm.xlu0 %504, %v371
        %v506 = vpop.permute.xlu0 %505
        %509 = vset.pattern.permute.xlu0 0
        %510 = vperm.xlu0 %509, %v372
        %v511 = vpop.permute.xlu0 %510
        %514 = vset.pattern.permute.xlu0 0
        %515 = vperm.xlu0 %514, %v373
        %v516 = vpop.permute.xlu0 %515
        %519 = vset.pattern.permute.xlu0 0
        %520 = vperm.xlu0 %519, %v374
        %v521 = vpop.permute.xlu0 %520
        %524 = vset.pattern.permute.xlu0 0
        %525 = vperm.xlu0 %524, %v375
        %v526 = vpop.permute.xlu0 %525
        %529 = vset.pattern.permute.xlu0 0
        %530 = vperm.xlu0 %529, %v376
        %v531 = vpop.permute.xlu0 %530
        %534 = vset.pattern.permute.xlu0 0
        %535 = vperm.xlu0 %534, %v377
        %v536 = vpop.permute.xlu0 %535
        %v570 = vunpack.c.l.b16 %v314
        %v571 = vunpack.c.l.b16 %v315
        %v572 = vunpack.c.l.b16 %v316
        %v573 = vunpack.c.l.b16 %v317
        %v574 = vunpack.c.l.b16 %v318
        %v575 = vunpack.c.l.b16 %v319
        %v576 = vunpack.c.l.b16 %v320
        %v577 = vunpack.c.l.b16 %v321
        %v578 = vunpack.c.l.b16 %v322
        %v579 = vunpack.c.l.b16 %v323
        %v580 = vunpack.c.l.b16 %v324
        %v581 = vunpack.c.l.b16 %v325
        %v582 = vunpack.c.l.b16 %v326
        %v583 = vunpack.c.l.b16 %v327
        %v584 = vunpack.c.l.b16 %v328
        %v585 = vunpack.c.l.b16 %v329
        %v586 = vunpack.c.l.b16 %v330
        %v587 = vunpack.c.l.b16 %v331
        %v588 = vunpack.c.l.b16 %v332
        %v589 = vunpack.c.l.b16 %v333
        %v590 = vunpack.c.l.b16 %v334
        %v591 = vunpack.c.l.b16 %v335
        %v592 = vunpack.c.l.b16 %v336
        %v593 = vunpack.c.l.b16 %v337
        %v594 = vunpack.c.l.b16 %v338
        %v595 = vunpack.c.l.b16 %v339
        %v596 = vunpack.c.l.b16 %v340
        %v597 = vunpack.c.l.b16 %v341
        %v598 = vunpack.c.l.b16 %v342
        %v599 = vunpack.c.l.b16 %v343
        %v600 = vunpack.c.l.b16 %v344
        %v601 = vunpack.c.l.b16 %v345
        %v602 = vpack.c.b16 %v571, %v570
        %v603 = vpack.c.b16 %v573, %v572
        %v604 = vpack.c.b16 %v575, %v574
        %v605 = vpack.c.b16 %v577, %v576
        %v606 = vpack.c.b16 %v579, %v578
        %v607 = vpack.c.b16 %v581, %v580
        %v608 = vpack.c.b16 %v583, %v582
        %v609 = vpack.c.b16 %v585, %v584
        %v610 = vpack.c.b16 %v587, %v586
        %v611 = vpack.c.b16 %v589, %v588
        %v612 = vpack.c.b16 %v591, %v590
        %v613 = vpack.c.b16 %v593, %v592
        %v614 = vpack.c.b16 %v595, %v594
        %v615 = vpack.c.b16 %v597, %v596
        %v616 = vpack.c.b16 %v599, %v598
        %v617 = vpack.c.b16 %v601, %v600
        %vm618 = vcmask 523264
        %v620 = vsel %vm618, %v602, 0
        %v623 = vsel %vm618, %v603, 0
        %v626 = vsel %vm618, %v604, 0
        %v629 = vsel %vm618, %v605, 0
        %v632 = vsel %vm618, %v606, 0
        %v635 = vsel %vm618, %v607, 0
        %v638 = vsel %vm618, %v608, 0
        %v641 = vsel %vm618, %v609, 0
        %v644 = vsel %vm618, %v610, 0
        %v647 = vsel %vm618, %v611, 0
        %v650 = vsel %vm618, %v612, 0
        %v653 = vsel %vm618, %v613, 0
        %v656 = vsel %vm618, %v614, 0
        %v659 = vsel %vm618, %v615, 0
        %v662 = vsel %vm618, %v616, 0
        %v665 = vsel %vm618, %v617, 0
        %667 = vmatpush.bf16.msra.mxu0 0
        %668 = vmatpush.bf16.msra.mxu0 0
        %669 = vmatpush.bf16.msra.mxu0 0
        %670 = vmatpush.bf16.msra.mxu0 0
        %671 = vmatpush.bf16.msra.mxu0 %v310
        %672 = vmatpush.bf16.msra.mxu0 %v306
        %673 = vmatpush.bf16.msra.mxu0 %v302
        %674 = vmatpush.bf16.msra.mxu0 %v298
        %675 = vmatmul.bf16.gmra.mxu0 %v620
        %v676 = vpop.f32.mrf.mxu0
        %v677 = vadd.f32 %v381, %v676
        %v678 = vpop.f32.mrf.mxu0
        %v679 = vadd.f32 %v386, %v678
        %680 = vmatmul.bf16.gmra.mxu0 %v623
        %v681 = vpop.f32.mrf.mxu0
        %v682 = vadd.f32 %v391, %v681
        %v683 = vpop.f32.mrf.mxu0
        %v684 = vadd.f32 %v396, %v683
        %685 = vmatmul.bf16.gmra.mxu0 %v626
        %v686 = vpop.f32.mrf.mxu0
        %v687 = vadd.f32 %v401, %v686
        %v688 = vpop.f32.mrf.mxu0
        %v689 = vadd.f32 %v406, %v688
        %690 = vmatmul.bf16.gmra.mxu0 %v629
        %v691 = vpop.f32.mrf.mxu0
        %v692 = vadd.f32 %v411, %v691
        %v693 = vpop.f32.mrf.mxu0
        %v694 = vadd.f32 %v416, %v693
        %695 = vmatmul.bf16.gmra.mxu0 %v632
        %v696 = vpop.f32.mrf.mxu0
        %v697 = vadd.f32 %v421, %v696
        %v698 = vpop.f32.mrf.mxu0
        %v699 = vadd.f32 %v426, %v698
        %700 = vmatmul.bf16.gmra.mxu0 %v635
        %v701 = vpop.f32.mrf.mxu0
        %v702 = vadd.f32 %v431, %v701
        %v703 = vpop.f32.mrf.mxu0
        %v704 = vadd.f32 %v436, %v703
        %705 = vmatmul.bf16.gmra.mxu0 %v638
        %v706 = vpop.f32.mrf.mxu0
        %v707 = vadd.f32 %v441, %v706
        %v708 = vpop.f32.mrf.mxu0
        %v709 = vadd.f32 %v446, %v708
        %710 = vmatmul.bf16.gmra.mxu0 %v641
        %v711 = vpop.f32.mrf.mxu0
        %v712 = vadd.f32 %v451, %v711
        %v713 = vpop.f32.mrf.mxu0
        %v714 = vadd.f32 %v456, %v713
        %715 = vmatmul.bf16.gmra.mxu0 %v644
        %v716 = vpop.f32.mrf.mxu0
        %v717 = vadd.f32 %v461, %v716
        %v718 = vpop.f32.mrf.mxu0
        %v719 = vadd.f32 %v466, %v718
        %720 = vmatmul.bf16.gmra.mxu0 %v647
        %v721 = vpop.f32.mrf.mxu0
        %v722 = vadd.f32 %v471, %v721
        %v723 = vpop.f32.mrf.mxu0
        %v724 = vadd.f32 %v476, %v723
        %725 = vmatmul.bf16.gmra.mxu0 %v650
        %v726 = vpop.f32.mrf.mxu0
        %v727 = vadd.f32 %v481, %v726
        %v728 = vpop.f32.mrf.mxu0
        %v729 = vadd.f32 %v486, %v728
        %730 = vmatmul.bf16.gmra.mxu0 %v653
        %v731 = vpop.f32.mrf.mxu0
        %v732 = vadd.f32 %v491, %v731
        %v733 = vpop.f32.mrf.mxu0
        %v734 = vadd.f32 %v496, %v733
        %735 = vmatmul.bf16.gmra.mxu0 %v656
        %v736 = vpop.f32.mrf.mxu0
        %v737 = vadd.f32 %v501, %v736
        %v738 = vpop.f32.mrf.mxu0
        %v739 = vadd.f32 %v506, %v738
        %740 = vmatmul.bf16.gmra.mxu0 %v659
        %v741 = vpop.f32.mrf.mxu0
        %v742 = vadd.f32 %v511, %v741
        %v743 = vpop.f32.mrf.mxu0
        %v744 = vadd.f32 %v516, %v743
        %745 = vmatmul.bf16.gmra.mxu0 %v662
        %v746 = vpop.f32.mrf.mxu0
        %v747 = vadd.f32 %v521, %v746
        %v748 = vpop.f32.mrf.mxu0
        %v749 = vadd.f32 %v526, %v748
        %750 = vmatmul.bf16.gmra.mxu0 %v665
        %v751 = vpop.f32.mrf.mxu0
        %v752 = vadd.f32 %v531, %v751
        %v753 = vpop.f32.mrf.mxu0
        %v754 = vadd.f32 %v536, %v753
        %755 = vdwg.mxu0
        %756 = vmatpush.bf16.msra.mxu0 0
        %757 = vmatpush.bf16.msra.mxu0 0
        %758 = vmatpush.bf16.msra.mxu0 0
        %759 = vmatpush.bf16.msra.mxu0 0
        %760 = vmatpush.bf16.msra.mxu0 %v311
        %761 = vmatpush.bf16.msra.mxu0 %v307
        %762 = vmatpush.bf16.msra.mxu0 %v303
        %763 = vmatpush.bf16.msra.mxu0 %v299
        %764 = vmatmul.bf16.gmra.mxu0 %v620
        %v765 = vpop.f32.mrf.mxu0
        %v766 = vadd.f32 %v381, %v765
        %v767 = vpop.f32.mrf.mxu0
        %v768 = vadd.f32 %v386, %v767
        %769 = vmatmul.bf16.gmra.mxu0 %v623
        %v770 = vpop.f32.mrf.mxu0
        %v771 = vadd.f32 %v391, %v770
        %v772 = vpop.f32.mrf.mxu0
        %v773 = vadd.f32 %v396, %v772
        %774 = vmatmul.bf16.gmra.mxu0 %v626
        %v775 = vpop.f32.mrf.mxu0
        %v776 = vadd.f32 %v401, %v775
        %v777 = vpop.f32.mrf.mxu0
        %v778 = vadd.f32 %v406, %v777
        %779 = vmatmul.bf16.gmra.mxu0 %v629
        %v780 = vpop.f32.mrf.mxu0
        %v781 = vadd.f32 %v411, %v780
        %v782 = vpop.f32.mrf.mxu0
        %v783 = vadd.f32 %v416, %v782
        %784 = vmatmul.bf16.gmra.mxu0 %v632
        %v785 = vpop.f32.mrf.mxu0
        %v786 = vadd.f32 %v421, %v785
        %v787 = vpop.f32.mrf.mxu0
        %v788 = vadd.f32 %v426, %v787
        %789 = vmatmul.bf16.gmra.mxu0 %v635
        %v790 = vpop.f32.mrf.mxu0
        %v791 = vadd.f32 %v431, %v790
        %v792 = vpop.f32.mrf.mxu0
        %v793 = vadd.f32 %v436, %v792
        %794 = vmatmul.bf16.gmra.mxu0 %v638
        %v795 = vpop.f32.mrf.mxu0
        %v796 = vadd.f32 %v441, %v795
        %v797 = vpop.f32.mrf.mxu0
        %v798 = vadd.f32 %v446, %v797
        %799 = vmatmul.bf16.gmra.mxu0 %v641
        %v800 = vpop.f32.mrf.mxu0
        %v801 = vadd.f32 %v451, %v800
        %v802 = vpop.f32.mrf.mxu0
        %v803 = vadd.f32 %v456, %v802
        %804 = vmatmul.bf16.gmra.mxu0 %v644
        %v805 = vpop.f32.mrf.mxu0
        %v806 = vadd.f32 %v461, %v805
        %v807 = vpop.f32.mrf.mxu0
        %v808 = vadd.f32 %v466, %v807
        %809 = vmatmul.bf16.gmra.mxu0 %v647
        %v810 = vpop.f32.mrf.mxu0
        %v811 = vadd.f32 %v471, %v810
        %v812 = vpop.f32.mrf.mxu0
        %v813 = vadd.f32 %v476, %v812
        %814 = vmatmul.bf16.gmra.mxu0 %v650
        %v815 = vpop.f32.mrf.mxu0
        %v816 = vadd.f32 %v481, %v815
        %v817 = vpop.f32.mrf.mxu0
        %v818 = vadd.f32 %v486, %v817
        %819 = vmatmul.bf16.gmra.mxu0 %v653
        %v820 = vpop.f32.mrf.mxu0
        %v821 = vadd.f32 %v491, %v820
        %v822 = vpop.f32.mrf.mxu0
        %v823 = vadd.f32 %v496, %v822
        %824 = vmatmul.bf16.gmra.mxu0 %v656
        %v825 = vpop.f32.mrf.mxu0
        %v826 = vadd.f32 %v501, %v825
        %v827 = vpop.f32.mrf.mxu0
        %v828 = vadd.f32 %v506, %v827
        %829 = vmatmul.bf16.gmra.mxu0 %v659
        %v830 = vpop.f32.mrf.mxu0
        %v831 = vadd.f32 %v511, %v830
        %v832 = vpop.f32.mrf.mxu0
        %v833 = vadd.f32 %v516, %v832
        %834 = vmatmul.bf16.gmra.mxu0 %v662
        %v835 = vpop.f32.mrf.mxu0
        %v836 = vadd.f32 %v521, %v835
        %v837 = vpop.f32.mrf.mxu0
        %v838 = vadd.f32 %v526, %v837
        %839 = vmatmul.bf16.gmra.mxu0 %v665
        %v840 = vpop.f32.mrf.mxu0
        %v841 = vadd.f32 %v531, %v840
        %v842 = vpop.f32.mrf.mxu0
        %v843 = vadd.f32 %v536, %v842
        %844 = vdwg.mxu0
        %845 = vmatpush.bf16.msra.mxu0 0
        %846 = vmatpush.bf16.msra.mxu0 0
        %847 = vmatpush.bf16.msra.mxu0 0
        %848 = vmatpush.bf16.msra.mxu0 0
        %849 = vmatpush.bf16.msra.mxu0 %v312
        %850 = vmatpush.bf16.msra.mxu0 %v308
        %851 = vmatpush.bf16.msra.mxu0 %v304
        %852 = vmatpush.bf16.msra.mxu0 %v300
        %853 = vmatmul.bf16.gmra.mxu0 %v620
        %v854 = vpop.f32.mrf.mxu0
        %v855 = vadd.f32 %v381, %v854
        %v856 = vpop.f32.mrf.mxu0
        %v857 = vadd.f32 %v386, %v856
        %858 = vmatmul.bf16.gmra.mxu0 %v623
        %v859 = vpop.f32.mrf.mxu0
        %v860 = vadd.f32 %v391, %v859
        %v861 = vpop.f32.mrf.mxu0
        %v862 = vadd.f32 %v396, %v861
        %863 = vmatmul.bf16.gmra.mxu0 %v626
        %v864 = vpop.f32.mrf.mxu0
        %v865 = vadd.f32 %v401, %v864
        %v866 = vpop.f32.mrf.mxu0
        %v867 = vadd.f32 %v406, %v866
        %868 = vmatmul.bf16.gmra.mxu0 %v629
        %v869 = vpop.f32.mrf.mxu0
        %v870 = vadd.f32 %v411, %v869
        %v871 = vpop.f32.mrf.mxu0
        %v872 = vadd.f32 %v416, %v871
        %873 = vmatmul.bf16.gmra.mxu0 %v632
        %v874 = vpop.f32.mrf.mxu0
        %v875 = vadd.f32 %v421, %v874
        %v876 = vpop.f32.mrf.mxu0
        %v877 = vadd.f32 %v426, %v876
        %878 = vmatmul.bf16.gmra.mxu0 %v635
        %v879 = vpop.f32.mrf.mxu0
        %v880 = vadd.f32 %v431, %v879
        %v881 = vpop.f32.mrf.mxu0
        %v882 = vadd.f32 %v436, %v881
        %883 = vmatmul.bf16.gmra.mxu0 %v638
        %v884 = vpop.f32.mrf.mxu0
        %v885 = vadd.f32 %v441, %v884
        %v886 = vpop.f32.mrf.mxu0
        %v887 = vadd.f32 %v446, %v886
        %888 = vmatmul.bf16.gmra.mxu0 %v641
        %v889 = vpop.f32.mrf.mxu0
        %v890 = vadd.f32 %v451, %v889
        %v891 = vpop.f32.mrf.mxu0
        %v892 = vadd.f32 %v456, %v891
        %893 = vmatmul.bf16.gmra.mxu0 %v644
        %v894 = vpop.f32.mrf.mxu0
        %v895 = vadd.f32 %v461, %v894
        %v896 = vpop.f32.mrf.mxu0
        %v897 = vadd.f32 %v466, %v896
        %898 = vmatmul.bf16.gmra.mxu0 %v647
        %v899 = vpop.f32.mrf.mxu0
        %v900 = vadd.f32 %v471, %v899
        %v901 = vpop.f32.mrf.mxu0
        %v902 = vadd.f32 %v476, %v901
        %903 = vmatmul.bf16.gmra.mxu0 %v650
        %v904 = vpop.f32.mrf.mxu0
        %v905 = vadd.f32 %v481, %v904
        %v906 = vpop.f32.mrf.mxu0
        %v907 = vadd.f32 %v486, %v906
        %908 = vmatmul.bf16.gmra.mxu0 %v653
        %v909 = vpop.f32.mrf.mxu0
        %v910 = vadd.f32 %v491, %v909
        %v911 = vpop.f32.mrf.mxu0
        %v912 = vadd.f32 %v496, %v911
        %913 = vmatmul.bf16.gmra.mxu0 %v656
        %v914 = vpop.f32.mrf.mxu0
        %v915 = vadd.f32 %v501, %v914
        %v916 = vpop.f32.mrf.mxu0
        %v917 = vadd.f32 %v506, %v916
        %918 = vmatmul.bf16.gmra.mxu0 %v659
        %v919 = vpop.f32.mrf.mxu0
        %v920 = vadd.f32 %v511, %v919
        %v921 = vpop.f32.mrf.mxu0
        %v922 = vadd.f32 %v516, %v921
        %923 = vmatmul.bf16.gmra.mxu0 %v662
        %v924 = vpop.f32.mrf.mxu0
        %v925 = vadd.f32 %v521, %v924
        %v926 = vpop.f32.mrf.mxu0
        %v927 = vadd.f32 %v526, %v926
        %928 = vmatmul.bf16.gmra.mxu0 %v665
        %v929 = vpop.f32.mrf.mxu0
        %v930 = vadd.f32 %v531, %v929
        %v931 = vpop.f32.mrf.mxu0
        %v932 = vadd.f32 %v536, %v931
        %933 = vdwg.mxu0
        %934 = vmatpush.bf16.msra.mxu0 0
        %935 = vmatpush.bf16.msra.mxu0 0
        %936 = vmatpush.bf16.msra.mxu0 0
        %937 = vmatpush.bf16.msra.mxu0 0
        %938 = vmatpush.bf16.msra.mxu0 %v313
        %939 = vmatpush.bf16.msra.mxu0 %v309
        %940 = vmatpush.bf16.msra.mxu0 %v305
        %941 = vmatpush.bf16.msra.mxu0 %v301
        %942 = vmatmul.bf16.gmra.mxu0 %v620
        %v943 = vpop.f32.mrf.mxu0
        %v944 = vadd.f32 %v381, %v943
        %v945 = vpop.f32.mrf.mxu0
        %v946 = vadd.f32 %v386, %v945
        %947 = vmatmul.bf16.gmra.mxu0 %v623
        %v948 = vpop.f32.mrf.mxu0
        %v949 = vadd.f32 %v391, %v948
        %v950 = vpop.f32.mrf.mxu0
        %v951 = vadd.f32 %v396, %v950
        %952 = vmatmul.bf16.gmra.mxu0 %v626
        %v953 = vpop.f32.mrf.mxu0
        %v954 = vadd.f32 %v401, %v953
        %v955 = vpop.f32.mrf.mxu0
        %v956 = vadd.f32 %v406, %v955
        %957 = vmatmul.bf16.gmra.mxu0 %v629
        %v958 = vpop.f32.mrf.mxu0
        %v959 = vadd.f32 %v411, %v958
        %v960 = vpop.f32.mrf.mxu0
        %v961 = vadd.f32 %v416, %v960
        %962 = vmatmul.bf16.gmra.mxu0 %v632
        %v963 = vpop.f32.mrf.mxu0
        %v964 = vadd.f32 %v421, %v963
        %v965 = vpop.f32.mrf.mxu0
        %v966 = vadd.f32 %v426, %v965
        %967 = vmatmul.bf16.gmra.mxu0 %v635
        %v968 = vpop.f32.mrf.mxu0
        %v969 = vadd.f32 %v431, %v968
        %v970 = vpop.f32.mrf.mxu0
        %v971 = vadd.f32 %v436, %v970
        %972 = vmatmul.bf16.gmra.mxu0 %v638
        %v973 = vpop.f32.mrf.mxu0
        %v974 = vadd.f32 %v441, %v973
        %v975 = vpop.f32.mrf.mxu0
        %v976 = vadd.f32 %v446, %v975
        %977 = vmatmul.bf16.gmra.mxu0 %v641
        %v978 = vpop.f32.mrf.mxu0
        %v979 = vadd.f32 %v451, %v978
        %v980 = vpop.f32.mrf.mxu0
        %v981 = vadd.f32 %v456, %v980
        %982 = vmatmul.bf16.gmra.mxu0 %v644
        %v983 = vpop.f32.mrf.mxu0
        %v984 = vadd.f32 %v461, %v983
        %v985 = vpop.f32.mrf.mxu0
        %v986 = vadd.f32 %v466, %v985
        %987 = vmatmul.bf16.gmra.mxu0 %v647
        %v988 = vpop.f32.mrf.mxu0
        %v989 = vadd.f32 %v471, %v988
        %v990 = vpop.f32.mrf.mxu0
        %v991 = vadd.f32 %v476, %v990
        %992 = vmatmul.bf16.gmra.mxu0 %v650
        %v993 = vpop.f32.mrf.mxu0
        %v994 = vadd.f32 %v481, %v993
        %v995 = vpop.f32.mrf.mxu0
        %v996 = vadd.f32 %v486, %v995
        %997 = vmatmul.bf16.gmra.mxu0 %v653
        %v998 = vpop.f32.mrf.mxu0
        %v999 = vadd.f32 %v491, %v998
        %v1000 = vpop.f32.mrf.mxu0
        %v1001 = vadd.f32 %v496, %v1000
        %1002 = vmatmul.bf16.gmra.mxu0 %v656
        %v1003 = vpop.f32.mrf.mxu0
        %v1004 = vadd.f32 %v501, %v1003
        %v1005 = vpop.f32.mrf.mxu0
        %v1006 = vadd.f32 %v506, %v1005
        %1007 = vmatmul.bf16.gmra.mxu0 %v659
        %v1008 = vpop.f32.mrf.mxu0
        %v1009 = vadd.f32 %v511, %v1008
        %v1010 = vpop.f32.mrf.mxu0
        %v1011 = vadd.f32 %v516, %v1010
        %1012 = vmatmul.bf16.gmra.mxu0 %v662
        %v1013 = vpop.f32.mrf.mxu0
        %v1014 = vadd.f32 %v521, %v1013
        %v1015 = vpop.f32.mrf.mxu0
        %v1016 = vadd.f32 %v526, %v1015
        %1017 = vmatmul.bf16.gmra.mxu0 %v665
        %v1018 = vpop.f32.mrf.mxu0
        %v1019 = vadd.f32 %v531, %v1018
        %v1020 = vpop.f32.mrf.mxu0
        %v1021 = vadd.f32 %v536, %v1020
        %1022 = vdwg.mxu0
        %v1023 = vpack.c.bf16 %v766, %v677
        %v1024 = vpack.c.bf16 %v944, %v855
        %v1025 = vpack.c.bf16 %v768, %v679
        %v1026 = vpack.c.bf16 %v946, %v857
        %v1027 = vpack.c.bf16 %v771, %v682
        %v1028 = vpack.c.bf16 %v949, %v860
        %v1029 = vpack.c.bf16 %v773, %v684
        %v1030 = vpack.c.bf16 %v951, %v862
        %v1031 = vpack.c.bf16 %v776, %v687
        %v1032 = vpack.c.bf16 %v954, %v865
        %v1033 = vpack.c.bf16 %v778, %v689
        %v1034 = vpack.c.bf16 %v956, %v867
        %v1035 = vpack.c.bf16 %v781, %v692
        %v1036 = vpack.c.bf16 %v959, %v870
        %v1037 = vpack.c.bf16 %v783, %v694
        %v1038 = vpack.c.bf16 %v961, %v872
        %v1039 = vpack.c.bf16 %v786, %v697
        %v1040 = vpack.c.bf16 %v964, %v875
        %v1041 = vpack.c.bf16 %v788, %v699
        %v1042 = vpack.c.bf16 %v966, %v877
        %v1043 = vpack.c.bf16 %v791, %v702
        %v1044 = vpack.c.bf16 %v969, %v880
        %v1045 = vpack.c.bf16 %v793, %v704
        %v1046 = vpack.c.bf16 %v971, %v882
        %v1047 = vpack.c.bf16 %v796, %v707
        %v1048 = vpack.c.bf16 %v974, %v885
        %v1049 = vpack.c.bf16 %v798, %v709
        %v1050 = vpack.c.bf16 %v976, %v887
        %v1051 = vpack.c.bf16 %v801, %v712
        %v1052 = vpack.c.bf16 %v979, %v890
        %v1053 = vpack.c.bf16 %v803, %v714
        %v1054 = vpack.c.bf16 %v981, %v892
        %v1055 = vpack.c.bf16 %v806, %v717
        %v1056 = vpack.c.bf16 %v984, %v895
        %v1057 = vpack.c.bf16 %v808, %v719
        %v1058 = vpack.c.bf16 %v986, %v897
        %v1059 = vpack.c.bf16 %v811, %v722
        %v1060 = vpack.c.bf16 %v989, %v900
        %v1061 = vpack.c.bf16 %v813, %v724
        %v1062 = vpack.c.bf16 %v991, %v902
        %v1063 = vpack.c.bf16 %v816, %v727
        %v1064 = vpack.c.bf16 %v994, %v905
        %v1065 = vpack.c.bf16 %v818, %v729
        %v1066 = vpack.c.bf16 %v996, %v907
        %v1067 = vpack.c.bf16 %v821, %v732
        %v1068 = vpack.c.bf16 %v999, %v910
        %v1069 = vpack.c.bf16 %v823, %v734
        %v1070 = vpack.c.bf16 %v1001, %v912
        %v1071 = vpack.c.bf16 %v826, %v737
        %v1072 = vpack.c.bf16 %v1004, %v915
        %v1073 = vpack.c.bf16 %v828, %v739
        %v1074 = vpack.c.bf16 %v1006, %v917
        %v1075 = vpack.c.bf16 %v831, %v742
        %v1076 = vpack.c.bf16 %v1009, %v920
        %v1077 = vpack.c.bf16 %v833, %v744
        %v1078 = vpack.c.bf16 %v1011, %v922
        %v1079 = vpack.c.bf16 %v836, %v747
        %v1080 = vpack.c.bf16 %v1014, %v925
        %v1081 = vpack.c.bf16 %v838, %v749
        %v1082 = vpack.c.bf16 %v1016, %v927
        %v1083 = vpack.c.bf16 %v841, %v752
        %v1084 = vpack.c.bf16 %v1019, %v930
        %v1085 = vpack.c.bf16 %v843, %v754
        %v1086 = vpack.c.bf16 %v1021, %v932
        %v1087 = vunpack.c.l.bf16 %v1023
        %v1088 = vunpack.c.h.bf16 %v1023
        %v1089 = vunpack.c.l.bf16 %v1024
        %v1090 = vunpack.c.h.bf16 %v1024
        %v1091 = vunpack.c.l.bf16 %v1025
        %v1092 = vunpack.c.h.bf16 %v1025
        %v1093 = vunpack.c.l.bf16 %v1026
        %v1094 = vunpack.c.h.bf16 %v1026
        %v1095 = vunpack.c.l.bf16 %v1027
        %v1096 = vunpack.c.h.bf16 %v1027
        %v1097 = vunpack.c.l.bf16 %v1028
        %v1098 = vunpack.c.h.bf16 %v1028
        %v1099 = vunpack.c.l.bf16 %v1029
        %v1100 = vunpack.c.h.bf16 %v1029
        %v1101 = vunpack.c.l.bf16 %v1030
        %v1102 = vunpack.c.h.bf16 %v1030
        %v1103 = vunpack.c.l.bf16 %v1031
        %v1104 = vunpack.c.h.bf16 %v1031
        %v1105 = vunpack.c.l.bf16 %v1032
        %v1106 = vunpack.c.h.bf16 %v1032
        %v1107 = vunpack.c.l.bf16 %v1033
        %v1108 = vunpack.c.h.bf16 %v1033
        %v1109 = vunpack.c.l.bf16 %v1034
        %v1110 = vunpack.c.h.bf16 %v1034
        %v1111 = vunpack.c.l.bf16 %v1035
        %v1112 = vunpack.c.h.bf16 %v1035
        %v1113 = vunpack.c.l.bf16 %v1036
        %v1114 = vunpack.c.h.bf16 %v1036
        %v1115 = vunpack.c.l.bf16 %v1037
        %v1116 = vunpack.c.h.bf16 %v1037
        %v1117 = vunpack.c.l.bf16 %v1038
        %v1118 = vunpack.c.h.bf16 %v1038
        %v1119 = vunpack.c.l.bf16 %v1039
        %v1120 = vunpack.c.h.bf16 %v1039
        %v1121 = vunpack.c.l.bf16 %v1040
        %v1122 = vunpack.c.h.bf16 %v1040
        %v1123 = vunpack.c.l.bf16 %v1041
        %v1124 = vunpack.c.h.bf16 %v1041
        %v1125 = vunpack.c.l.bf16 %v1042
        %v1126 = vunpack.c.h.bf16 %v1042
        %v1127 = vunpack.c.l.bf16 %v1043
        %v1128 = vunpack.c.h.bf16 %v1043
        %v1129 = vunpack.c.l.bf16 %v1044
        %v1130 = vunpack.c.h.bf16 %v1044
        %v1131 = vunpack.c.l.bf16 %v1045
        %v1132 = vunpack.c.h.bf16 %v1045
        %v1133 = vunpack.c.l.bf16 %v1046
        %v1134 = vunpack.c.h.bf16 %v1046
        %v1135 = vunpack.c.l.bf16 %v1047
        %v1136 = vunpack.c.h.bf16 %v1047
        %v1137 = vunpack.c.l.bf16 %v1048
        %v1138 = vunpack.c.h.bf16 %v1048
        %v1139 = vunpack.c.l.bf16 %v1049
        %v1140 = vunpack.c.h.bf16 %v1049
        %v1141 = vunpack.c.l.bf16 %v1050
        %v1142 = vunpack.c.h.bf16 %v1050
        %v1143 = vunpack.c.l.bf16 %v1051
        %v1144 = vunpack.c.h.bf16 %v1051
        %v1145 = vunpack.c.l.bf16 %v1052
        %v1146 = vunpack.c.h.bf16 %v1052
        %v1147 = vunpack.c.l.bf16 %v1053
        %v1148 = vunpack.c.h.bf16 %v1053
        %v1149 = vunpack.c.l.bf16 %v1054
        %v1150 = vunpack.c.h.bf16 %v1054
        %v1151 = vunpack.c.l.bf16 %v1055
        %v1152 = vunpack.c.h.bf16 %v1055
        %v1153 = vunpack.c.l.bf16 %v1056
        %v1154 = vunpack.c.h.bf16 %v1056
        %v1155 = vunpack.c.l.bf16 %v1057
        %v1156 = vunpack.c.h.bf16 %v1057
        %v1157 = vunpack.c.l.bf16 %v1058
        %v1158 = vunpack.c.h.bf16 %v1058
        %v1159 = vunpack.c.l.bf16 %v1059
        %v1160 = vunpack.c.h.bf16 %v1059
        %v1161 = vunpack.c.l.bf16 %v1060
        %v1162 = vunpack.c.h.bf16 %v1060
        %v1163 = vunpack.c.l.bf16 %v1061
        %v1164 = vunpack.c.h.bf16 %v1061
        %v1165 = vunpack.c.l.bf16 %v1062
        %v1166 = vunpack.c.h.bf16 %v1062
        %v1167 = vunpack.c.l.bf16 %v1063
        %v1168 = vunpack.c.h.bf16 %v1063
        %v1169 = vunpack.c.l.bf16 %v1064
        %v1170 = vunpack.c.h.bf16 %v1064
        %v1171 = vunpack.c.l.bf16 %v1065
        %v1172 = vunpack.c.h.bf16 %v1065
        %v1173 = vunpack.c.l.bf16 %v1066
        %v1174 = vunpack.c.h.bf16 %v1066
        %v1175 = vunpack.c.l.bf16 %v1067
        %v1176 = vunpack.c.h.bf16 %v1067
        %v1177 = vunpack.c.l.bf16 %v1068
        %v1178 = vunpack.c.h.bf16 %v1068
        %v1179 = vunpack.c.l.bf16 %v1069
        %v1180 = vunpack.c.h.bf16 %v1069
        %v1181 = vunpack.c.l.bf16 %v1070
        %v1182 = vunpack.c.h.bf16 %v1070
        %v1183 = vunpack.c.l.bf16 %v1071
        %v1184 = vunpack.c.h.bf16 %v1071
        %v1185 = vunpack.c.l.bf16 %v1072
        %v1186 = vunpack.c.h.bf16 %v1072
        %v1187 = vunpack.c.l.bf16 %v1073
        %v1188 = vunpack.c.h.bf16 %v1073
        %v1189 = vunpack.c.l.bf16 %v1074
        %v1190 = vunpack.c.h.bf16 %v1074
        %v1191 = vunpack.c.l.bf16 %v1075
        %v1192 = vunpack.c.h.bf16 %v1075
        %v1193 = vunpack.c.l.bf16 %v1076
        %v1194 = vunpack.c.h.bf16 %v1076
        %v1195 = vunpack.c.l.bf16 %v1077
        %v1196 = vunpack.c.h.bf16 %v1077
        %v1197 = vunpack.c.l.bf16 %v1078
        %v1198 = vunpack.c.h.bf16 %v1078
        %v1199 = vunpack.c.l.bf16 %v1079
        %v1200 = vunpack.c.h.bf16 %v1079
        %v1201 = vunpack.c.l.bf16 %v1080
        %v1202 = vunpack.c.h.bf16 %v1080
        %v1203 = vunpack.c.l.bf16 %v1081
        %v1204 = vunpack.c.h.bf16 %v1081
        %v1205 = vunpack.c.l.bf16 %v1082
        %v1206 = vunpack.c.h.bf16 %v1082
        %v1207 = vunpack.c.l.bf16 %v1083
        %v1208 = vunpack.c.h.bf16 %v1083
        %v1209 = vunpack.c.l.bf16 %v1084
        %v1210 = vunpack.c.h.bf16 %v1084
        %v1211 = vunpack.c.l.bf16 %v1085
        %v1212 = vunpack.c.h.bf16 %v1085
        %v1213 = vunpack.c.l.bf16 %v1086
        %v1214 = vunpack.c.h.bf16 %v1086
        %v1215 = vmul.f32 %v1087, %v1087
        %v1216 = vmul.f32 %v1088, %v1088
        %v1217 = vmul.f32 %v1089, %v1089
        %v1218 = vmul.f32 %v1090, %v1090
        %v1219 = vmul.f32 %v1091, %v1091
        %v1220 = vmul.f32 %v1092, %v1092
        %v1221 = vmul.f32 %v1093, %v1093
        %v1222 = vmul.f32 %v1094, %v1094
        %v1223 = vmul.f32 %v1095, %v1095
        %v1224 = vmul.f32 %v1096, %v1096
        %v1225 = vmul.f32 %v1097, %v1097
        %v1226 = vmul.f32 %v1098, %v1098
        %v1227 = vmul.f32 %v1099, %v1099
        %v1228 = vmul.f32 %v1100, %v1100
        %v1229 = vmul.f32 %v1101, %v1101
        %v1230 = vmul.f32 %v1102, %v1102
        %v1231 = vmul.f32 %v1103, %v1103
        %v1232 = vmul.f32 %v1104, %v1104
        %v1233 = vmul.f32 %v1105, %v1105
        %v1234 = vmul.f32 %v1106, %v1106
        %v1235 = vmul.f32 %v1107, %v1107
        %v1236 = vmul.f32 %v1108, %v1108
        %v1237 = vmul.f32 %v1109, %v1109
        %v1238 = vmul.f32 %v1110, %v1110
        %v1239 = vmul.f32 %v1111, %v1111
        %v1240 = vmul.f32 %v1112, %v1112
        %v1241 = vmul.f32 %v1113, %v1113
        %v1242 = vmul.f32 %v1114, %v1114
        %v1243 = vmul.f32 %v1115, %v1115
        %v1244 = vmul.f32 %v1116, %v1116
        %v1245 = vmul.f32 %v1117, %v1117
        %v1246 = vmul.f32 %v1118, %v1118
        %v1247 = vmul.f32 %v1119, %v1119
        %v1248 = vmul.f32 %v1120, %v1120
        %v1249 = vmul.f32 %v1121, %v1121
        %v1250 = vmul.f32 %v1122, %v1122
        %v1251 = vmul.f32 %v1123, %v1123
        %v1252 = vmul.f32 %v1124, %v1124
        %v1253 = vmul.f32 %v1125, %v1125
        %v1254 = vmul.f32 %v1126, %v1126
        %v1255 = vmul.f32 %v1127, %v1127
        %v1256 = vmul.f32 %v1128, %v1128
        %v1257 = vmul.f32 %v1129, %v1129
        %v1258 = vmul.f32 %v1130, %v1130
        %v1259 = vmul.f32 %v1131, %v1131
        %v1260 = vmul.f32 %v1132, %v1132
        %v1261 = vmul.f32 %v1133, %v1133
        %v1262 = vmul.f32 %v1134, %v1134
        %v1263 = vmul.f32 %v1135, %v1135
        %v1264 = vmul.f32 %v1136, %v1136
        %v1265 = vmul.f32 %v1137, %v1137
        %v1266 = vmul.f32 %v1138, %v1138
        %v1267 = vmul.f32 %v1139, %v1139
        %v1268 = vmul.f32 %v1140, %v1140
        %v1269 = vmul.f32 %v1141, %v1141
        %v1270 = vmul.f32 %v1142, %v1142
        %v1271 = vmul.f32 %v1143, %v1143
        %v1272 = vmul.f32 %v1144, %v1144
        %v1273 = vmul.f32 %v1145, %v1145
        %v1274 = vmul.f32 %v1146, %v1146
        %v1275 = vmul.f32 %v1147, %v1147
        %v1276 = vmul.f32 %v1148, %v1148
        %v1277 = vmul.f32 %v1149, %v1149
        %v1278 = vmul.f32 %v1150, %v1150
        %v1279 = vmul.f32 %v1151, %v1151
        %v1280 = vmul.f32 %v1152, %v1152
        %v1281 = vmul.f32 %v1153, %v1153
        %v1282 = vmul.f32 %v1154, %v1154
        %v1283 = vmul.f32 %v1155, %v1155
        %v1284 = vmul.f32 %v1156, %v1156
        %v1285 = vmul.f32 %v1157, %v1157
        %v1286 = vmul.f32 %v1158, %v1158
        %v1287 = vmul.f32 %v1159, %v1159
        %v1288 = vmul.f32 %v1160, %v1160
        %v1289 = vmul.f32 %v1161, %v1161
        %v1290 = vmul.f32 %v1162, %v1162
        %v1291 = vmul.f32 %v1163, %v1163
        %v1292 = vmul.f32 %v1164, %v1164
        %v1293 = vmul.f32 %v1165, %v1165
        %v1294 = vmul.f32 %v1166, %v1166
        %v1295 = vmul.f32 %v1167, %v1167
        %v1296 = vmul.f32 %v1168, %v1168
        %v1297 = vmul.f32 %v1169, %v1169
        %v1298 = vmul.f32 %v1170, %v1170
        %v1299 = vmul.f32 %v1171, %v1171
        %v1300 = vmul.f32 %v1172, %v1172
        %v1301 = vmul.f32 %v1173, %v1173
        %v1302 = vmul.f32 %v1174, %v1174
        %v1303 = vmul.f32 %v1175, %v1175
        %v1304 = vmul.f32 %v1176, %v1176
        %v1305 = vmul.f32 %v1177, %v1177
        %v1306 = vmul.f32 %v1178, %v1178
        %v1307 = vmul.f32 %v1179, %v1179
        %v1308 = vmul.f32 %v1180, %v1180
        %v1309 = vmul.f32 %v1181, %v1181
        %v1310 = vmul.f32 %v1182, %v1182
        %v1311 = vmul.f32 %v1183, %v1183
        %v1312 = vmul.f32 %v1184, %v1184
        %v1313 = vmul.f32 %v1185, %v1185
        %v1314 = vmul.f32 %v1186, %v1186
        %v1315 = vmul.f32 %v1187, %v1187
        %v1316 = vmul.f32 %v1188, %v1188
        %v1317 = vmul.f32 %v1189, %v1189
        %v1318 = vmul.f32 %v1190, %v1190
        %v1319 = vmul.f32 %v1191, %v1191
        %v1320 = vmul.f32 %v1192, %v1192
        %v1321 = vmul.f32 %v1193, %v1193
        %v1322 = vmul.f32 %v1194, %v1194
        %v1323 = vmul.f32 %v1195, %v1195
        %v1324 = vmul.f32 %v1196, %v1196
        %v1325 = vmul.f32 %v1197, %v1197
        %v1326 = vmul.f32 %v1198, %v1198
        %v1327 = vmul.f32 %v1199, %v1199
        %v1328 = vmul.f32 %v1200, %v1200
        %v1329 = vmul.f32 %v1201, %v1201
        %v1330 = vmul.f32 %v1202, %v1202
        %v1331 = vmul.f32 %v1203, %v1203
        %v1332 = vmul.f32 %v1204, %v1204
        %v1333 = vmul.f32 %v1205, %v1205
        %v1334 = vmul.f32 %v1206, %v1206
        %v1335 = vmul.f32 %v1207, %v1207
        %v1336 = vmul.f32 %v1208, %v1208
        %v1337 = vmul.f32 %v1209, %v1209
        %v1338 = vmul.f32 %v1210, %v1210
        %v1339 = vmul.f32 %v1211, %v1211
        %v1340 = vmul.f32 %v1212, %v1212
        %v1341 = vmul.f32 %v1213, %v1213
        %v1342 = vmul.f32 %v1214, %v1214
        %v1343 = vpack.c.bf16 %v1216, %v1215
        %v1344 = vpack.c.bf16 %v1218, %v1217
        %v1345 = vpack.c.bf16 %v1220, %v1219
        %v1346 = vpack.c.bf16 %v1222, %v1221
        %v1347 = vpack.c.bf16 %v1224, %v1223
        %v1348 = vpack.c.bf16 %v1226, %v1225
        %v1349 = vpack.c.bf16 %v1228, %v1227
        %v1350 = vpack.c.bf16 %v1230, %v1229
        %v1351 = vpack.c.bf16 %v1232, %v1231
        %v1352 = vpack.c.bf16 %v1234, %v1233
        %v1353 = vpack.c.bf16 %v1236, %v1235
        %v1354 = vpack.c.bf16 %v1238, %v1237
        %v1355 = vpack.c.bf16 %v1240, %v1239
        %v1356 = vpack.c.bf16 %v1242, %v1241
        %v1357 = vpack.c.bf16 %v1244, %v1243
        %v1358 = vpack.c.bf16 %v1246, %v1245
        %v1359 = vpack.c.bf16 %v1248, %v1247
        %v1360 = vpack.c.bf16 %v1250, %v1249
        %v1361 = vpack.c.bf16 %v1252, %v1251
        %v1362 = vpack.c.bf16 %v1254, %v1253
        %v1363 = vpack.c.bf16 %v1256, %v1255
        %v1364 = vpack.c.bf16 %v1258, %v1257
        %v1365 = vpack.c.bf16 %v1260, %v1259
        %v1366 = vpack.c.bf16 %v1262, %v1261
        %v1367 = vpack.c.bf16 %v1264, %v1263
        %v1368 = vpack.c.bf16 %v1266, %v1265
        %v1369 = vpack.c.bf16 %v1268, %v1267
        %v1370 = vpack.c.bf16 %v1270, %v1269
        %v1371 = vpack.c.bf16 %v1272, %v1271
        %v1372 = vpack.c.bf16 %v1274, %v1273
        %v1373 = vpack.c.bf16 %v1276, %v1275
        %v1374 = vpack.c.bf16 %v1278, %v1277
        %v1375 = vpack.c.bf16 %v1280, %v1279
        %v1376 = vpack.c.bf16 %v1282, %v1281
        %v1377 = vpack.c.bf16 %v1284, %v1283
        %v1378 = vpack.c.bf16 %v1286, %v1285
        %v1379 = vpack.c.bf16 %v1288, %v1287
        %v1380 = vpack.c.bf16 %v1290, %v1289
        %v1381 = vpack.c.bf16 %v1292, %v1291
        %v1382 = vpack.c.bf16 %v1294, %v1293
        %v1383 = vpack.c.bf16 %v1296, %v1295
        %v1384 = vpack.c.bf16 %v1298, %v1297
        %v1385 = vpack.c.bf16 %v1300, %v1299
        %v1386 = vpack.c.bf16 %v1302, %v1301
        %v1387 = vpack.c.bf16 %v1304, %v1303
        %v1388 = vpack.c.bf16 %v1306, %v1305
        %v1389 = vpack.c.bf16 %v1308, %v1307
        %v1390 = vpack.c.bf16 %v1310, %v1309
        %v1391 = vpack.c.bf16 %v1312, %v1311
        %v1392 = vpack.c.bf16 %v1314, %v1313
        %v1393 = vpack.c.bf16 %v1316, %v1315
        %v1394 = vpack.c.bf16 %v1318, %v1317
        %v1395 = vpack.c.bf16 %v1320, %v1319
        %v1396 = vpack.c.bf16 %v1322, %v1321
        %v1397 = vpack.c.bf16 %v1324, %v1323
        %v1398 = vpack.c.bf16 %v1326, %v1325
        %v1399 = vpack.c.bf16 %v1328, %v1327
        %v1400 = vpack.c.bf16 %v1330, %v1329
        %v1401 = vpack.c.bf16 %v1332, %v1331
        %v1402 = vpack.c.bf16 %v1334, %v1333
        %v1403 = vpack.c.bf16 %v1336, %v1335
        %v1404 = vpack.c.bf16 %v1338, %v1337
        %v1405 = vpack.c.bf16 %v1340, %v1339
        %v1406 = vpack.c.bf16 %v1342, %v1341
        %v1407 = vunpack.c.l.bf16 %v1343
        %v1408 = vunpack.c.h.bf16 %v1343
        %v1409 = vunpack.c.l.bf16 %v1344
        %v1410 = vunpack.c.h.bf16 %v1344
        %v1411 = vunpack.c.l.bf16 %v1345
        %v1412 = vunpack.c.h.bf16 %v1345
        %v1413 = vunpack.c.l.bf16 %v1346
        %v1414 = vunpack.c.h.bf16 %v1346
        %v1415 = vunpack.c.l.bf16 %v1347
        %v1416 = vunpack.c.h.bf16 %v1347
        %v1417 = vunpack.c.l.bf16 %v1348
        %v1418 = vunpack.c.h.bf16 %v1348
        %v1419 = vunpack.c.l.bf16 %v1349
        %v1420 = vunpack.c.h.bf16 %v1349
        %v1421 = vunpack.c.l.bf16 %v1350
        %v1422 = vunpack.c.h.bf16 %v1350
        %v1423 = vunpack.c.l.bf16 %v1351
        %v1424 = vunpack.c.h.bf16 %v1351
        %v1425 = vunpack.c.l.bf16 %v1352
        %v1426 = vunpack.c.h.bf16 %v1352
        %v1427 = vunpack.c.l.bf16 %v1353
        %v1428 = vunpack.c.h.bf16 %v1353
        %v1429 = vunpack.c.l.bf16 %v1354
        %v1430 = vunpack.c.h.bf16 %v1354
        %v1431 = vunpack.c.l.bf16 %v1355
        %v1432 = vunpack.c.h.bf16 %v1355
        %v1433 = vunpack.c.l.bf16 %v1356
        %v1434 = vunpack.c.h.bf16 %v1356
        %v1435 = vunpack.c.l.bf16 %v1357
        %v1436 = vunpack.c.h.bf16 %v1357
        %v1437 = vunpack.c.l.bf16 %v1358
        %v1438 = vunpack.c.h.bf16 %v1358
        %v1439 = vunpack.c.l.bf16 %v1359
        %v1440 = vunpack.c.h.bf16 %v1359
        %v1441 = vunpack.c.l.bf16 %v1360
        %v1442 = vunpack.c.h.bf16 %v1360
        %v1443 = vunpack.c.l.bf16 %v1361
        %v1444 = vunpack.c.h.bf16 %v1361
        %v1445 = vunpack.c.l.bf16 %v1362
        %v1446 = vunpack.c.h.bf16 %v1362
        %v1447 = vunpack.c.l.bf16 %v1363
        %v1448 = vunpack.c.h.bf16 %v1363
        %v1449 = vunpack.c.l.bf16 %v1364
        %v1450 = vunpack.c.h.bf16 %v1364
        %v1451 = vunpack.c.l.bf16 %v1365
        %v1452 = vunpack.c.h.bf16 %v1365
        %v1453 = vunpack.c.l.bf16 %v1366
        %v1454 = vunpack.c.h.bf16 %v1366
        %v1455 = vunpack.c.l.bf16 %v1367
        %v1456 = vunpack.c.h.bf16 %v1367
        %v1457 = vunpack.c.l.bf16 %v1368
        %v1458 = vunpack.c.h.bf16 %v1368
        %v1459 = vunpack.c.l.bf16 %v1369
        %v1460 = vunpack.c.h.bf16 %v1369
        %v1461 = vunpack.c.l.bf16 %v1370
        %v1462 = vunpack.c.h.bf16 %v1370
        %v1463 = vunpack.c.l.bf16 %v1371
        %v1464 = vunpack.c.h.bf16 %v1371
        %v1465 = vunpack.c.l.bf16 %v1372
        %v1466 = vunpack.c.h.bf16 %v1372
        %v1467 = vunpack.c.l.bf16 %v1373
        %v1468 = vunpack.c.h.bf16 %v1373
        %v1469 = vunpack.c.l.bf16 %v1374
        %v1470 = vunpack.c.h.bf16 %v1374
        %v1471 = vunpack.c.l.bf16 %v1375
        %v1472 = vunpack.c.h.bf16 %v1375
        %v1473 = vunpack.c.l.bf16 %v1376
        %v1474 = vunpack.c.h.bf16 %v1376
        %v1475 = vunpack.c.l.bf16 %v1377
        %v1476 = vunpack.c.h.bf16 %v1377
        %v1477 = vunpack.c.l.bf16 %v1378
        %v1478 = vunpack.c.h.bf16 %v1378
        %v1479 = vunpack.c.l.bf16 %v1379
        %v1480 = vunpack.c.h.bf16 %v1379
        %v1481 = vunpack.c.l.bf16 %v1380
        %v1482 = vunpack.c.h.bf16 %v1380
        %v1483 = vunpack.c.l.bf16 %v1381
        %v1484 = vunpack.c.h.bf16 %v1381
        %v1485 = vunpack.c.l.bf16 %v1382
        %v1486 = vunpack.c.h.bf16 %v1382
        %v1487 = vunpack.c.l.bf16 %v1383
        %v1488 = vunpack.c.h.bf16 %v1383
        %v1489 = vunpack.c.l.bf16 %v1384
        %v1490 = vunpack.c.h.bf16 %v1384
        %v1491 = vunpack.c.l.bf16 %v1385
        %v1492 = vunpack.c.h.bf16 %v1385
        %v1493 = vunpack.c.l.bf16 %v1386
        %v1494 = vunpack.c.h.bf16 %v1386
        %v1495 = vunpack.c.l.bf16 %v1387
        %v1496 = vunpack.c.h.bf16 %v1387
        %v1497 = vunpack.c.l.bf16 %v1388
        %v1498 = vunpack.c.h.bf16 %v1388
        %v1499 = vunpack.c.l.bf16 %v1389
        %v1500 = vunpack.c.h.bf16 %v1389
        %v1501 = vunpack.c.l.bf16 %v1390
        %v1502 = vunpack.c.h.bf16 %v1390
        %v1503 = vunpack.c.l.bf16 %v1391
        %v1504 = vunpack.c.h.bf16 %v1391
        %v1505 = vunpack.c.l.bf16 %v1392
        %v1506 = vunpack.c.h.bf16 %v1392
        %v1507 = vunpack.c.l.bf16 %v1393
        %v1508 = vunpack.c.h.bf16 %v1393
        %v1509 = vunpack.c.l.bf16 %v1394
        %v1510 = vunpack.c.h.bf16 %v1394
        %v1511 = vunpack.c.l.bf16 %v1395
        %v1512 = vunpack.c.h.bf16 %v1395
        %v1513 = vunpack.c.l.bf16 %v1396
        %v1514 = vunpack.c.h.bf16 %v1396
        %v1515 = vunpack.c.l.bf16 %v1397
        %v1516 = vunpack.c.h.bf16 %v1397
        %v1517 = vunpack.c.l.bf16 %v1398
        %v1518 = vunpack.c.h.bf16 %v1398
        %v1519 = vunpack.c.l.bf16 %v1399
        %v1520 = vunpack.c.h.bf16 %v1399
        %v1521 = vunpack.c.l.bf16 %v1400
        %v1522 = vunpack.c.h.bf16 %v1400
        %v1523 = vunpack.c.l.bf16 %v1401
        %v1524 = vunpack.c.h.bf16 %v1401
        %v1525 = vunpack.c.l.bf16 %v1402
        %v1526 = vunpack.c.h.bf16 %v1402
        %v1527 = vunpack.c.l.bf16 %v1403
        %v1528 = vunpack.c.h.bf16 %v1403
        %v1529 = vunpack.c.l.bf16 %v1404
        %v1530 = vunpack.c.h.bf16 %v1404
        %v1531 = vunpack.c.l.bf16 %v1405
        %v1532 = vunpack.c.h.bf16 %v1405
        %v1533 = vunpack.c.l.bf16 %v1406
        %v1534 = vunpack.c.h.bf16 %v1406
        %v1535 = vmul.f32 %v1087, %v1407
        %v1536 = vmul.f32 %v1088, %v1408
        %v1537 = vmul.f32 %v1089, %v1409
        %v1538 = vmul.f32 %v1090, %v1410
        %v1539 = vmul.f32 %v1091, %v1411
        %v1540 = vmul.f32 %v1092, %v1412
        %v1541 = vmul.f32 %v1093, %v1413
        %v1542 = vmul.f32 %v1094, %v1414
        %v1543 = vmul.f32 %v1095, %v1415
        %v1544 = vmul.f32 %v1096, %v1416
        %v1545 = vmul.f32 %v1097, %v1417
        %v1546 = vmul.f32 %v1098, %v1418
        %v1547 = vmul.f32 %v1099, %v1419
        %v1548 = vmul.f32 %v1100, %v1420
        %v1549 = vmul.f32 %v1101, %v1421
        %v1550 = vmul.f32 %v1102, %v1422
        %v1551 = vmul.f32 %v1103, %v1423
        %v1552 = vmul.f32 %v1104, %v1424
        %v1553 = vmul.f32 %v1105, %v1425
        %v1554 = vmul.f32 %v1106, %v1426
        %v1555 = vmul.f32 %v1107, %v1427
        %v1556 = vmul.f32 %v1108, %v1428
        %v1557 = vmul.f32 %v1109, %v1429
        %v1558 = vmul.f32 %v1110, %v1430
        %v1559 = vmul.f32 %v1111, %v1431
        %v1560 = vmul.f32 %v1112, %v1432
        %v1561 = vmul.f32 %v1113, %v1433
        %v1562 = vmul.f32 %v1114, %v1434
        %v1563 = vmul.f32 %v1115, %v1435
        %v1564 = vmul.f32 %v1116, %v1436
        %v1565 = vmul.f32 %v1117, %v1437
        %v1566 = vmul.f32 %v1118, %v1438
        %v1567 = vmul.f32 %v1119, %v1439
        %v1568 = vmul.f32 %v1120, %v1440
        %v1569 = vmul.f32 %v1121, %v1441
        %v1570 = vmul.f32 %v1122, %v1442
        %v1571 = vmul.f32 %v1123, %v1443
        %v1572 = vmul.f32 %v1124, %v1444
        %v1573 = vmul.f32 %v1125, %v1445
        %v1574 = vmul.f32 %v1126, %v1446
        %v1575 = vmul.f32 %v1127, %v1447
        %v1576 = vmul.f32 %v1128, %v1448
        %v1577 = vmul.f32 %v1129, %v1449
        %v1578 = vmul.f32 %v1130, %v1450
        %v1579 = vmul.f32 %v1131, %v1451
        %v1580 = vmul.f32 %v1132, %v1452
        %v1581 = vmul.f32 %v1133, %v1453
        %v1582 = vmul.f32 %v1134, %v1454
        %v1583 = vmul.f32 %v1135, %v1455
        %v1584 = vmul.f32 %v1136, %v1456
        %v1585 = vmul.f32 %v1137, %v1457
        %v1586 = vmul.f32 %v1138, %v1458
        %v1587 = vmul.f32 %v1139, %v1459
        %v1588 = vmul.f32 %v1140, %v1460
        %v1589 = vmul.f32 %v1141, %v1461
        %v1590 = vmul.f32 %v1142, %v1462
        %v1591 = vmul.f32 %v1143, %v1463
        %v1592 = vmul.f32 %v1144, %v1464
        %v1593 = vmul.f32 %v1145, %v1465
        %v1594 = vmul.f32 %v1146, %v1466
        %v1595 = vmul.f32 %v1147, %v1467
        %v1596 = vmul.f32 %v1148, %v1468
        %v1597 = vmul.f32 %v1149, %v1469
        %v1598 = vmul.f32 %v1150, %v1470
        %v1599 = vmul.f32 %v1151, %v1471
        %v1600 = vmul.f32 %v1152, %v1472
        %v1601 = vmul.f32 %v1153, %v1473
        %v1602 = vmul.f32 %v1154, %v1474
        %v1603 = vmul.f32 %v1155, %v1475
        %v1604 = vmul.f32 %v1156, %v1476
        %v1605 = vmul.f32 %v1157, %v1477
        %v1606 = vmul.f32 %v1158, %v1478
        %v1607 = vmul.f32 %v1159, %v1479
        %v1608 = vmul.f32 %v1160, %v1480
        %v1609 = vmul.f32 %v1161, %v1481
        %v1610 = vmul.f32 %v1162, %v1482
        %v1611 = vmul.f32 %v1163, %v1483
        %v1612 = vmul.f32 %v1164, %v1484
        %v1613 = vmul.f32 %v1165, %v1485
        %v1614 = vmul.f32 %v1166, %v1486
        %v1615 = vmul.f32 %v1167, %v1487
        %v1616 = vmul.f32 %v1168, %v1488
        %v1617 = vmul.f32 %v1169, %v1489
        %v1618 = vmul.f32 %v1170, %v1490
        %v1619 = vmul.f32 %v1171, %v1491
        %v1620 = vmul.f32 %v1172, %v1492
        %v1621 = vmul.f32 %v1173, %v1493
        %v1622 = vmul.f32 %v1174, %v1494
        %v1623 = vmul.f32 %v1175, %v1495
        %v1624 = vmul.f32 %v1176, %v1496
        %v1625 = vmul.f32 %v1177, %v1497
        %v1626 = vmul.f32 %v1178, %v1498
        %v1627 = vmul.f32 %v1179, %v1499
        %v1628 = vmul.f32 %v1180, %v1500
        %v1629 = vmul.f32 %v1181, %v1501
        %v1630 = vmul.f32 %v1182, %v1502
        %v1631 = vmul.f32 %v1183, %v1503
        %v1632 = vmul.f32 %v1184, %v1504
        %v1633 = vmul.f32 %v1185, %v1505
        %v1634 = vmul.f32 %v1186, %v1506
        %v1635 = vmul.f32 %v1187, %v1507
        %v1636 = vmul.f32 %v1188, %v1508
        %v1637 = vmul.f32 %v1189, %v1509
        %v1638 = vmul.f32 %v1190, %v1510
        %v1639 = vmul.f32 %v1191, %v1511
        %v1640 = vmul.f32 %v1192, %v1512
        %v1641 = vmul.f32 %v1193, %v1513
        %v1642 = vmul.f32 %v1194, %v1514
        %v1643 = vmul.f32 %v1195, %v1515
        %v1644 = vmul.f32 %v1196, %v1516
        %v1645 = vmul.f32 %v1197, %v1517
        %v1646 = vmul.f32 %v1198, %v1518
        %v1647 = vmul.f32 %v1199, %v1519
        %v1648 = vmul.f32 %v1200, %v1520
        %v1649 = vmul.f32 %v1201, %v1521
        %v1650 = vmul.f32 %v1202, %v1522
        %v1651 = vmul.f32 %v1203, %v1523
        %v1652 = vmul.f32 %v1204, %v1524
        %v1653 = vmul.f32 %v1205, %v1525
        %v1654 = vmul.f32 %v1206, %v1526
        %v1655 = vmul.f32 %v1207, %v1527
        %v1656 = vmul.f32 %v1208, %v1528
        %v1657 = vmul.f32 %v1209, %v1529
        %v1658 = vmul.f32 %v1210, %v1530
        %v1659 = vmul.f32 %v1211, %v1531
        %v1660 = vmul.f32 %v1212, %v1532
        %v1661 = vmul.f32 %v1213, %v1533
        %v1662 = vmul.f32 %v1214, %v1534
        %v1663 = vpack.c.bf16 %v1536, %v1535
        %v1664 = vpack.c.bf16 %v1538, %v1537
        %v1665 = vpack.c.bf16 %v1540, %v1539
        %v1666 = vpack.c.bf16 %v1542, %v1541
        %v1667 = vpack.c.bf16 %v1544, %v1543
        %v1668 = vpack.c.bf16 %v1546, %v1545
        %v1669 = vpack.c.bf16 %v1548, %v1547
        %v1670 = vpack.c.bf16 %v1550, %v1549
        %v1671 = vpack.c.bf16 %v1552, %v1551
        %v1672 = vpack.c.bf16 %v1554, %v1553
        %v1673 = vpack.c.bf16 %v1556, %v1555
        %v1674 = vpack.c.bf16 %v1558, %v1557
        %v1675 = vpack.c.bf16 %v1560, %v1559
        %v1676 = vpack.c.bf16 %v1562, %v1561
        %v1677 = vpack.c.bf16 %v1564, %v1563
        %v1678 = vpack.c.bf16 %v1566, %v1565
        %v1679 = vpack.c.bf16 %v1568, %v1567
        %v1680 = vpack.c.bf16 %v1570, %v1569
        %v1681 = vpack.c.bf16 %v1572, %v1571
        %v1682 = vpack.c.bf16 %v1574, %v1573
        %v1683 = vpack.c.bf16 %v1576, %v1575
        %v1684 = vpack.c.bf16 %v1578, %v1577
        %v1685 = vpack.c.bf16 %v1580, %v1579
        %v1686 = vpack.c.bf16 %v1582, %v1581
        %v1687 = vpack.c.bf16 %v1584, %v1583
        %v1688 = vpack.c.bf16 %v1586, %v1585
        %v1689 = vpack.c.bf16 %v1588, %v1587
        %v1690 = vpack.c.bf16 %v1590, %v1589
        %v1691 = vpack.c.bf16 %v1592, %v1591
        %v1692 = vpack.c.bf16 %v1594, %v1593
        %v1693 = vpack.c.bf16 %v1596, %v1595
        %v1694 = vpack.c.bf16 %v1598, %v1597
        %v1695 = vpack.c.bf16 %v1600, %v1599
        %v1696 = vpack.c.bf16 %v1602, %v1601
        %v1697 = vpack.c.bf16 %v1604, %v1603
        %v1698 = vpack.c.bf16 %v1606, %v1605
        %v1699 = vpack.c.bf16 %v1608, %v1607
        %v1700 = vpack.c.bf16 %v1610, %v1609
        %v1701 = vpack.c.bf16 %v1612, %v1611
        %v1702 = vpack.c.bf16 %v1614, %v1613
        %v1703 = vpack.c.bf16 %v1616, %v1615
        %v1704 = vpack.c.bf16 %v1618, %v1617
        %v1705 = vpack.c.bf16 %v1620, %v1619
        %v1706 = vpack.c.bf16 %v1622, %v1621
        %v1707 = vpack.c.bf16 %v1624, %v1623
        %v1708 = vpack.c.bf16 %v1626, %v1625
        %v1709 = vpack.c.bf16 %v1628, %v1627
        %v1710 = vpack.c.bf16 %v1630, %v1629
        %v1711 = vpack.c.bf16 %v1632, %v1631
        %v1712 = vpack.c.bf16 %v1634, %v1633
        %v1713 = vpack.c.bf16 %v1636, %v1635
        %v1714 = vpack.c.bf16 %v1638, %v1637
        %v1715 = vpack.c.bf16 %v1640, %v1639
        %v1716 = vpack.c.bf16 %v1642, %v1641
        %v1717 = vpack.c.bf16 %v1644, %v1643
        %v1718 = vpack.c.bf16 %v1646, %v1645
        %v1719 = vpack.c.bf16 %v1648, %v1647
        %v1720 = vpack.c.bf16 %v1650, %v1649
        %v1721 = vpack.c.bf16 %v1652, %v1651
        %v1722 = vpack.c.bf16 %v1654, %v1653
        %v1723 = vpack.c.bf16 %v1656, %v1655
        %v1724 = vpack.c.bf16 %v1658, %v1657
        %v1725 = vpack.c.bf16 %v1660, %v1659
        %v1726 = vpack.c.bf16 %v1662, %v1661
        %v1727 = vunpack.c.l.bf16 %v1663
        %v1728 = vunpack.c.h.bf16 %v1663
        %v1729 = vunpack.c.l.bf16 %v1664
        %v1730 = vunpack.c.h.bf16 %v1664
        %v1731 = vunpack.c.l.bf16 %v1665
        %v1732 = vunpack.c.h.bf16 %v1665
        %v1733 = vunpack.c.l.bf16 %v1666
        %v1734 = vunpack.c.h.bf16 %v1666
        %v1735 = vunpack.c.l.bf16 %v1667
        %v1736 = vunpack.c.h.bf16 %v1667
        %v1737 = vunpack.c.l.bf16 %v1668
        %v1738 = vunpack.c.h.bf16 %v1668
        %v1739 = vunpack.c.l.bf16 %v1669
        %v1740 = vunpack.c.h.bf16 %v1669
        %v1741 = vunpack.c.l.bf16 %v1670
        %v1742 = vunpack.c.h.bf16 %v1670
        %v1743 = vunpack.c.l.bf16 %v1671
        %v1744 = vunpack.c.h.bf16 %v1671
        %v1745 = vunpack.c.l.bf16 %v1672
        %v1746 = vunpack.c.h.bf16 %v1672
        %v1747 = vunpack.c.l.bf16 %v1673
        %v1748 = vunpack.c.h.bf16 %v1673
        %v1749 = vunpack.c.l.bf16 %v1674
        %v1750 = vunpack.c.h.bf16 %v1674
        %v1751 = vunpack.c.l.bf16 %v1675
        %v1752 = vunpack.c.h.bf16 %v1675
        %v1753 = vunpack.c.l.bf16 %v1676
        %v1754 = vunpack.c.h.bf16 %v1676
        %v1755 = vunpack.c.l.bf16 %v1677
        %v1756 = vunpack.c.h.bf16 %v1677
        %v1757 = vunpack.c.l.bf16 %v1678
        %v1758 = vunpack.c.h.bf16 %v1678
        %v1759 = vunpack.c.l.bf16 %v1679
        %v1760 = vunpack.c.h.bf16 %v1679
        %v1761 = vunpack.c.l.bf16 %v1680
        %v1762 = vunpack.c.h.bf16 %v1680
        %v1763 = vunpack.c.l.bf16 %v1681
        %v1764 = vunpack.c.h.bf16 %v1681
        %v1765 = vunpack.c.l.bf16 %v1682
        %v1766 = vunpack.c.h.bf16 %v1682
        %v1767 = vunpack.c.l.bf16 %v1683
        %v1768 = vunpack.c.h.bf16 %v1683
        %v1769 = vunpack.c.l.bf16 %v1684
        %v1770 = vunpack.c.h.bf16 %v1684
        %v1771 = vunpack.c.l.bf16 %v1685
        %v1772 = vunpack.c.h.bf16 %v1685
        %v1773 = vunpack.c.l.bf16 %v1686
        %v1774 = vunpack.c.h.bf16 %v1686
        %v1775 = vunpack.c.l.bf16 %v1687
        %v1776 = vunpack.c.h.bf16 %v1687
        %v1777 = vunpack.c.l.bf16 %v1688
        %v1778 = vunpack.c.h.bf16 %v1688
        %v1779 = vunpack.c.l.bf16 %v1689
        %v1780 = vunpack.c.h.bf16 %v1689
        %v1781 = vunpack.c.l.bf16 %v1690
        %v1782 = vunpack.c.h.bf16 %v1690
        %v1783 = vunpack.c.l.bf16 %v1691
        %v1784 = vunpack.c.h.bf16 %v1691
        %v1785 = vunpack.c.l.bf16 %v1692
        %v1786 = vunpack.c.h.bf16 %v1692
        %v1787 = vunpack.c.l.bf16 %v1693
        %v1788 = vunpack.c.h.bf16 %v1693
        %v1789 = vunpack.c.l.bf16 %v1694
        %v1790 = vunpack.c.h.bf16 %v1694
        %v1791 = vunpack.c.l.bf16 %v1695
        %v1792 = vunpack.c.h.bf16 %v1695
        %v1793 = vunpack.c.l.bf16 %v1696
        %v1794 = vunpack.c.h.bf16 %v1696
        %v1795 = vunpack.c.l.bf16 %v1697
        %v1796 = vunpack.c.h.bf16 %v1697
        %v1797 = vunpack.c.l.bf16 %v1698
        %v1798 = vunpack.c.h.bf16 %v1698
        %v1799 = vunpack.c.l.bf16 %v1699
        %v1800 = vunpack.c.h.bf16 %v1699
        %v1801 = vunpack.c.l.bf16 %v1700
        %v1802 = vunpack.c.h.bf16 %v1700
        %v1803 = vunpack.c.l.bf16 %v1701
        %v1804 = vunpack.c.h.bf16 %v1701
        %v1805 = vunpack.c.l.bf16 %v1702
        %v1806 = vunpack.c.h.bf16 %v1702
        %v1807 = vunpack.c.l.bf16 %v1703
        %v1808 = vunpack.c.h.bf16 %v1703
        %v1809 = vunpack.c.l.bf16 %v1704
        %v1810 = vunpack.c.h.bf16 %v1704
        %v1811 = vunpack.c.l.bf16 %v1705
        %v1812 = vunpack.c.h.bf16 %v1705
        %v1813 = vunpack.c.l.bf16 %v1706
        %v1814 = vunpack.c.h.bf16 %v1706
        %v1815 = vunpack.c.l.bf16 %v1707
        %v1816 = vunpack.c.h.bf16 %v1707
        %v1817 = vunpack.c.l.bf16 %v1708
        %v1818 = vunpack.c.h.bf16 %v1708
        %v1819 = vunpack.c.l.bf16 %v1709
        %v1820 = vunpack.c.h.bf16 %v1709
        %v1821 = vunpack.c.l.bf16 %v1710
        %v1822 = vunpack.c.h.bf16 %v1710
        %v1823 = vunpack.c.l.bf16 %v1711
        %v1824 = vunpack.c.h.bf16 %v1711
        %v1825 = vunpack.c.l.bf16 %v1712
        %v1826 = vunpack.c.h.bf16 %v1712
        %v1827 = vunpack.c.l.bf16 %v1713
        %v1828 = vunpack.c.h.bf16 %v1713
        %v1829 = vunpack.c.l.bf16 %v1714
        %v1830 = vunpack.c.h.bf16 %v1714
        %v1831 = vunpack.c.l.bf16 %v1715
        %v1832 = vunpack.c.h.bf16 %v1715
        %v1833 = vunpack.c.l.bf16 %v1716
        %v1834 = vunpack.c.h.bf16 %v1716
        %v1835 = vunpack.c.l.bf16 %v1717
        %v1836 = vunpack.c.h.bf16 %v1717
        %v1837 = vunpack.c.l.bf16 %v1718
        %v1838 = vunpack.c.h.bf16 %v1718
        %v1839 = vunpack.c.l.bf16 %v1719
        %v1840 = vunpack.c.h.bf16 %v1719
        %v1841 = vunpack.c.l.bf16 %v1720
        %v1842 = vunpack.c.h.bf16 %v1720
        %v1843 = vunpack.c.l.bf16 %v1721
        %v1844 = vunpack.c.h.bf16 %v1721
        %v1845 = vunpack.c.l.bf16 %v1722
        %v1846 = vunpack.c.h.bf16 %v1722
        %v1847 = vunpack.c.l.bf16 %v1723
        %v1848 = vunpack.c.h.bf16 %v1723
        %v1849 = vunpack.c.l.bf16 %v1724
        %v1850 = vunpack.c.h.bf16 %v1724
        %v1851 = vunpack.c.l.bf16 %v1725
        %v1852 = vunpack.c.h.bf16 %v1725
        %v1853 = vunpack.c.l.bf16 %v1726
        %v1854 = vunpack.c.h.bf16 %v1726
        %v1855 = vmul.f32 %v1727, 0.044677734
        %v1856 = vmul.f32 %v1728, 0.044677734
        %v1857 = vmul.f32 %v1729, 0.044677734
        %v1858 = vmul.f32 %v1730, 0.044677734
        %v1859 = vmul.f32 %v1731, 0.044677734
        %v1860 = vmul.f32 %v1732, 0.044677734
        %v1861 = vmul.f32 %v1733, 0.044677734
        %v1862 = vmul.f32 %v1734, 0.044677734
        %v1863 = vmul.f32 %v1735, 0.044677734
        %v1864 = vmul.f32 %v1736, 0.044677734
        %v1865 = vmul.f32 %v1737, 0.044677734
        %v1866 = vmul.f32 %v1738, 0.044677734
        %v1867 = vmul.f32 %v1739, 0.044677734
        %v1868 = vmul.f32 %v1740, 0.044677734
        %v1869 = vmul.f32 %v1741, 0.044677734
        %v1870 = vmul.f32 %v1742, 0.044677734
        %v1871 = vmul.f32 %v1743, 0.044677734
        %v1872 = vmul.f32 %v1744, 0.044677734
        %v1873 = vmul.f32 %v1745, 0.044677734
        %v1874 = vmul.f32 %v1746, 0.044677734
        %v1875 = vmul.f32 %v1747, 0.044677734
        %v1876 = vmul.f32 %v1748, 0.044677734
        %v1877 = vmul.f32 %v1749, 0.044677734
        %v1878 = vmul.f32 %v1750, 0.044677734
        %v1879 = vmul.f32 %v1751, 0.044677734
        %v1880 = vmul.f32 %v1752, 0.044677734
        %v1881 = vmul.f32 %v1753, 0.044677734
        %v1882 = vmul.f32 %v1754, 0.044677734
        %v1883 = vmul.f32 %v1755, 0.044677734
        %v1884 = vmul.f32 %v1756, 0.044677734
        %v1885 = vmul.f32 %v1757, 0.044677734
        %v1886 = vmul.f32 %v1758, 0.044677734
        %v1887 = vmul.f32 %v1759, 0.044677734
        %v1888 = vmul.f32 %v1760, 0.044677734
        %v1889 = vmul.f32 %v1761, 0.044677734
        %v1890 = vmul.f32 %v1762, 0.044677734
        %v1891 = vmul.f32 %v1763, 0.044677734
        %v1892 = vmul.f32 %v1764, 0.044677734
        %v1893 = vmul.f32 %v1765, 0.044677734
        %v1894 = vmul.f32 %v1766, 0.044677734
        %v1895 = vmul.f32 %v1767, 0.044677734
        %v1896 = vmul.f32 %v1768, 0.044677734
        %v1897 = vmul.f32 %v1769, 0.044677734
        %v1898 = vmul.f32 %v1770, 0.044677734
        %v1899 = vmul.f32 %v1771, 0.044677734
        %v1900 = vmul.f32 %v1772, 0.044677734
        %v1901 = vmul.f32 %v1773, 0.044677734
        %v1902 = vmul.f32 %v1774, 0.044677734
        %v1903 = vmul.f32 %v1775, 0.044677734
        %v1904 = vmul.f32 %v1776, 0.044677734
        %v1905 = vmul.f32 %v1777, 0.044677734
        %v1906 = vmul.f32 %v1778, 0.044677734
        %v1907 = vmul.f32 %v1779, 0.044677734
        %v1908 = vmul.f32 %v1780, 0.044677734
        %v1909 = vmul.f32 %v1781, 0.044677734
        %v1910 = vmul.f32 %v1782, 0.044677734
        %v1911 = vmul.f32 %v1783, 0.044677734
        %v1912 = vmul.f32 %v1784, 0.044677734
        %v1913 = vmul.f32 %v1785, 0.044677734
        %v1914 = vmul.f32 %v1786, 0.044677734
        %v1915 = vmul.f32 %v1787, 0.044677734
        %v1916 = vmul.f32 %v1788, 0.044677734
        %v1917 = vmul.f32 %v1789, 0.044677734
        %v1918 = vmul.f32 %v1790, 0.044677734
        %v1919 = vmul.f32 %v1791, 0.044677734
        %v1920 = vmul.f32 %v1792, 0.044677734
        %v1921 = vmul.f32 %v1793, 0.044677734
        %v1922 = vmul.f32 %v1794, 0.044677734
        %v1923 = vmul.f32 %v1795, 0.044677734
        %v1924 = vmul.f32 %v1796, 0.044677734
        %v1925 = vmul.f32 %v1797, 0.044677734
        %v1926 = vmul.f32 %v1798, 0.044677734
        %v1927 = vmul.f32 %v1799, 0.044677734
        %v1928 = vmul.f32 %v1800, 0.044677734
        %v1929 = vmul.f32 %v1801, 0.044677734
        %v1930 = vmul.f32 %v1802, 0.044677734
        %v1931 = vmul.f32 %v1803, 0.044677734
        %v1932 = vmul.f32 %v1804, 0.044677734
        %v1933 = vmul.f32 %v1805, 0.044677734
        %v1934 = vmul.f32 %v1806, 0.044677734
        %v1935 = vmul.f32 %v1807, 0.044677734
        %v1936 = vmul.f32 %v1808, 0.044677734
        %v1937 = vmul.f32 %v1809, 0.044677734
        %v1938 = vmul.f32 %v1810, 0.044677734
        %v1939 = vmul.f32 %v1811, 0.044677734
        %v1940 = vmul.f32 %v1812, 0.044677734
        %v1941 = vmul.f32 %v1813, 0.044677734
        %v1942 = vmul.f32 %v1814, 0.044677734
        %v1943 = vmul.f32 %v1815, 0.044677734
        %v1944 = vmul.f32 %v1816, 0.044677734
        %v1945 = vmul.f32 %v1817, 0.044677734
        %v1946 = vmul.f32 %v1818, 0.044677734
        %v1947 = vmul.f32 %v1819, 0.044677734
        %v1948 = vmul.f32 %v1820, 0.044677734
        %v1949 = vmul.f32 %v1821, 0.044677734
        %v1950 = vmul.f32 %v1822, 0.044677734
        %v1951 = vmul.f32 %v1823, 0.044677734
        %v1952 = vmul.f32 %v1824, 0.044677734
        %v1953 = vmul.f32 %v1825, 0.044677734
        %v1954 = vmul.f32 %v1826, 0.044677734
        %v1955 = vmul.f32 %v1827, 0.044677734
        %v1956 = vmul.f32 %v1828, 0.044677734
        %v1957 = vmul.f32 %v1829, 0.044677734
        %v1958 = vmul.f32 %v1830, 0.044677734
        %v1959 = vmul.f32 %v1831, 0.044677734
        %v1960 = vmul.f32 %v1832, 0.044677734
        %v1961 = vmul.f32 %v1833, 0.044677734
        %v1962 = vmul.f32 %v1834, 0.044677734
        %v1963 = vmul.f32 %v1835, 0.044677734
        %v1964 = vmul.f32 %v1836, 0.044677734
        %v1965 = vmul.f32 %v1837, 0.044677734
        %v1966 = vmul.f32 %v1838, 0.044677734
        %v1967 = vmul.f32 %v1839, 0.044677734
        %v1968 = vmul.f32 %v1840, 0.044677734
        %v1969 = vmul.f32 %v1841, 0.044677734
        %v1970 = vmul.f32 %v1842, 0.044677734
        %v1971 = vmul.f32 %v1843, 0.044677734
        %v1972 = vmul.f32 %v1844, 0.044677734
        %v1973 = vmul.f32 %v1845, 0.044677734
        %v1974 = vmul.f32 %v1846, 0.044677734
        %v1975 = vmul.f32 %v1847, 0.044677734
        %v1976 = vmul.f32 %v1848, 0.044677734
        %v1977 = vmul.f32 %v1849, 0.044677734
        %v1978 = vmul.f32 %v1850, 0.044677734
        %v1979 = vmul.f32 %v1851, 0.044677734
        %v1980 = vmul.f32 %v1852, 0.044677734
        %v1981 = vmul.f32 %v1853, 0.044677734
        %v1982 = vmul.f32 %v1854, 0.044677734
        %v1983 = vpack.c.bf16 %v1856, %v1855
        %v1984 = vpack.c.bf16 %v1858, %v1857
        %v1985 = vpack.c.bf16 %v1860, %v1859
        %v1986 = vpack.c.bf16 %v1862, %v1861
        %v1987 = vpack.c.bf16 %v1864, %v1863
        %v1988 = vpack.c.bf16 %v1866, %v1865
        %v1989 = vpack.c.bf16 %v1868, %v1867
        %v1990 = vpack.c.bf16 %v1870, %v1869
        %v1991 = vpack.c.bf16 %v1872, %v1871
        %v1992 = vpack.c.bf16 %v1874, %v1873
        %v1993 = vpack.c.bf16 %v1876, %v1875
        %v1994 = vpack.c.bf16 %v1878, %v1877
        %v1995 = vpack.c.bf16 %v1880, %v1879
        %v1996 = vpack.c.bf16 %v1882, %v1881
        %v1997 = vpack.c.bf16 %v1884, %v1883
        %v1998 = vpack.c.bf16 %v1886, %v1885
        %v1999 = vpack.c.bf16 %v1888, %v1887
        %v2000 = vpack.c.bf16 %v1890, %v1889
        %v2001 = vpack.c.bf16 %v1892, %v1891
        %v2002 = vpack.c.bf16 %v1894, %v1893
        %v2003 = vpack.c.bf16 %v1896, %v1895
        %v2004 = vpack.c.bf16 %v1898, %v1897
        %v2005 = vpack.c.bf16 %v1900, %v1899
        %v2006 = vpack.c.bf16 %v1902, %v1901
        %v2007 = vpack.c.bf16 %v1904, %v1903
        %v2008 = vpack.c.bf16 %v1906, %v1905
        %v2009 = vpack.c.bf16 %v1908, %v1907
        %v2010 = vpack.c.bf16 %v1910, %v1909
        %v2011 = vpack.c.bf16 %v1912, %v1911
        %v2012 = vpack.c.bf16 %v1914, %v1913
        %v2013 = vpack.c.bf16 %v1916, %v1915
        %v2014 = vpack.c.bf16 %v1918, %v1917
        %v2015 = vpack.c.bf16 %v1920, %v1919
        %v2016 = vpack.c.bf16 %v1922, %v1921
        %v2017 = vpack.c.bf16 %v1924, %v1923
        %v2018 = vpack.c.bf16 %v1926, %v1925
        %v2019 = vpack.c.bf16 %v1928, %v1927
        %v2020 = vpack.c.bf16 %v1930, %v1929
        %v2021 = vpack.c.bf16 %v1932, %v1931
        %v2022 = vpack.c.bf16 %v1934, %v1933
        %v2023 = vpack.c.bf16 %v1936, %v1935
        %v2024 = vpack.c.bf16 %v1938, %v1937
        %v2025 = vpack.c.bf16 %v1940, %v1939
        %v2026 = vpack.c.bf16 %v1942, %v1941
        %v2027 = vpack.c.bf16 %v1944, %v1943
        %v2028 = vpack.c.bf16 %v1946, %v1945
        %v2029 = vpack.c.bf16 %v1948, %v1947
        %v2030 = vpack.c.bf16 %v1950, %v1949
        %v2031 = vpack.c.bf16 %v1952, %v1951
        %v2032 = vpack.c.bf16 %v1954, %v1953
        %v2033 = vpack.c.bf16 %v1956, %v1955
        %v2034 = vpack.c.bf16 %v1958, %v1957
        %v2035 = vpack.c.bf16 %v1960, %v1959
        %v2036 = vpack.c.bf16 %v1962, %v1961
        %v2037 = vpack.c.bf16 %v1964, %v1963
        %v2038 = vpack.c.bf16 %v1966, %v1965
        %v2039 = vpack.c.bf16 %v1968, %v1967
        %v2040 = vpack.c.bf16 %v1970, %v1969
        %v2041 = vpack.c.bf16 %v1972, %v1971
        %v2042 = vpack.c.bf16 %v1974, %v1973
        %v2043 = vpack.c.bf16 %v1976, %v1975
        %v2044 = vpack.c.bf16 %v1978, %v1977
        %v2045 = vpack.c.bf16 %v1980, %v1979
        %v2046 = vpack.c.bf16 %v1982, %v1981
        %v2047 = vunpack.c.l.bf16 %v1983
        %v2048 = vunpack.c.h.bf16 %v1983
        %v2049 = vunpack.c.l.bf16 %v1984
        %v2050 = vunpack.c.h.bf16 %v1984
        %v2051 = vunpack.c.l.bf16 %v1985
        %v2052 = vunpack.c.h.bf16 %v1985
        %v2053 = vunpack.c.l.bf16 %v1986
        %v2054 = vunpack.c.h.bf16 %v1986
        %v2055 = vunpack.c.l.bf16 %v1987
        %v2056 = vunpack.c.h.bf16 %v1987
        %v2057 = vunpack.c.l.bf16 %v1988
        %v2058 = vunpack.c.h.bf16 %v1988
        %v2059 = vunpack.c.l.bf16 %v1989
        %v2060 = vunpack.c.h.bf16 %v1989
        %v2061 = vunpack.c.l.bf16 %v1990
        %v2062 = vunpack.c.h.bf16 %v1990
        %v2063 = vunpack.c.l.bf16 %v1991
        %v2064 = vunpack.c.h.bf16 %v1991
        %v2065 = vunpack.c.l.bf16 %v1992
        %v2066 = vunpack.c.h.bf16 %v1992
        %v2067 = vunpack.c.l.bf16 %v1993
        %v2068 = vunpack.c.h.bf16 %v1993
        %v2069 = vunpack.c.l.bf16 %v1994
        %v2070 = vunpack.c.h.bf16 %v1994
        %v2071 = vunpack.c.l.bf16 %v1995
        %v2072 = vunpack.c.h.bf16 %v1995
        %v2073 = vunpack.c.l.bf16 %v1996
        %v2074 = vunpack.c.h.bf16 %v1996
        %v2075 = vunpack.c.l.bf16 %v1997
        %v2076 = vunpack.c.h.bf16 %v1997
        %v2077 = vunpack.c.l.bf16 %v1998
        %v2078 = vunpack.c.h.bf16 %v1998
        %v2079 = vunpack.c.l.bf16 %v1999
        %v2080 = vunpack.c.h.bf16 %v1999
        %v2081 = vunpack.c.l.bf16 %v2000
        %v2082 = vunpack.c.h.bf16 %v2000
        %v2083 = vunpack.c.l.bf16 %v2001
        %v2084 = vunpack.c.h.bf16 %v2001
        %v2085 = vunpack.c.l.bf16 %v2002
        %v2086 = vunpack.c.h.bf16 %v2002
        %v2087 = vunpack.c.l.bf16 %v2003
        %v2088 = vunpack.c.h.bf16 %v2003
        %v2089 = vunpack.c.l.bf16 %v2004
        %v2090 = vunpack.c.h.bf16 %v2004
        %v2091 = vunpack.c.l.bf16 %v2005
        %v2092 = vunpack.c.h.bf16 %v2005
        %v2093 = vunpack.c.l.bf16 %v2006
        %v2094 = vunpack.c.h.bf16 %v2006
        %v2095 = vunpack.c.l.bf16 %v2007
        %v2096 = vunpack.c.h.bf16 %v2007
        %v2097 = vunpack.c.l.bf16 %v2008
        %v2098 = vunpack.c.h.bf16 %v2008
        %v2099 = vunpack.c.l.bf16 %v2009
        %v2100 = vunpack.c.h.bf16 %v2009
        %v2101 = vunpack.c.l.bf16 %v2010
        %v2102 = vunpack.c.h.bf16 %v2010
        %v2103 = vunpack.c.l.bf16 %v2011
        %v2104 = vunpack.c.h.bf16 %v2011
        %v2105 = vunpack.c.l.bf16 %v2012
        %v2106 = vunpack.c.h.bf16 %v2012
        %v2107 = vunpack.c.l.bf16 %v2013
        %v2108 = vunpack.c.h.bf16 %v2013
        %v2109 = vunpack.c.l.bf16 %v2014
        %v2110 = vunpack.c.h.bf16 %v2014
        %v2111 = vunpack.c.l.bf16 %v2015
        %v2112 = vunpack.c.h.bf16 %v2015
        %v2113 = vunpack.c.l.bf16 %v2016
        %v2114 = vunpack.c.h.bf16 %v2016
        %v2115 = vunpack.c.l.bf16 %v2017
        %v2116 = vunpack.c.h.bf16 %v2017
        %v2117 = vunpack.c.l.bf16 %v2018
        %v2118 = vunpack.c.h.bf16 %v2018
        %v2119 = vunpack.c.l.bf16 %v2019
        %v2120 = vunpack.c.h.bf16 %v2019
        %v2121 = vunpack.c.l.bf16 %v2020
        %v2122 = vunpack.c.h.bf16 %v2020
        %v2123 = vunpack.c.l.bf16 %v2021
        %v2124 = vunpack.c.h.bf16 %v2021
        %v2125 = vunpack.c.l.bf16 %v2022
        %v2126 = vunpack.c.h.bf16 %v2022
        %v2127 = vunpack.c.l.bf16 %v2023
        %v2128 = vunpack.c.h.bf16 %v2023
        %v2129 = vunpack.c.l.bf16 %v2024
        %v2130 = vunpack.c.h.bf16 %v2024
        %v2131 = vunpack.c.l.bf16 %v2025
        %v2132 = vunpack.c.h.bf16 %v2025
        %v2133 = vunpack.c.l.bf16 %v2026
        %v2134 = vunpack.c.h.bf16 %v2026
        %v2135 = vunpack.c.l.bf16 %v2027
        %v2136 = vunpack.c.h.bf16 %v2027
        %v2137 = vunpack.c.l.bf16 %v2028
        %v2138 = vunpack.c.h.bf16 %v2028
        %v2139 = vunpack.c.l.bf16 %v2029
        %v2140 = vunpack.c.h.bf16 %v2029
        %v2141 = vunpack.c.l.bf16 %v2030
        %v2142 = vunpack.c.h.bf16 %v2030
        %v2143 = vunpack.c.l.bf16 %v2031
        %v2144 = vunpack.c.h.bf16 %v2031
        %v2145 = vunpack.c.l.bf16 %v2032
        %v2146 = vunpack.c.h.bf16 %v2032
        %v2147 = vunpack.c.l.bf16 %v2033
        %v2148 = vunpack.c.h.bf16 %v2033
        %v2149 = vunpack.c.l.bf16 %v2034
        %v2150 = vunpack.c.h.bf16 %v2034
        %v2151 = vunpack.c.l.bf16 %v2035
        %v2152 = vunpack.c.h.bf16 %v2035
        %v2153 = vunpack.c.l.bf16 %v2036
        %v2154 = vunpack.c.h.bf16 %v2036
        %v2155 = vunpack.c.l.bf16 %v2037
        %v2156 = vunpack.c.h.bf16 %v2037
        %v2157 = vunpack.c.l.bf16 %v2038
        %v2158 = vunpack.c.h.bf16 %v2038
        %v2159 = vunpack.c.l.bf16 %v2039
        %v2160 = vunpack.c.h.bf16 %v2039
        %v2161 = vunpack.c.l.bf16 %v2040
        %v2162 = vunpack.c.h.bf16 %v2040
        %v2163 = vunpack.c.l.bf16 %v2041
        %v2164 = vunpack.c.h.bf16 %v2041
        %v2165 = vunpack.c.l.bf16 %v2042
        %v2166 = vunpack.c.h.bf16 %v2042
        %v2167 = vunpack.c.l.bf16 %v2043
        %v2168 = vunpack.c.h.bf16 %v2043
        %v2169 = vunpack.c.l.bf16 %v2044
        %v2170 = vunpack.c.h.bf16 %v2044
        %v2171 = vunpack.c.l.bf16 %v2045
        %v2172 = vunpack.c.h.bf16 %v2045
        %v2173 = vunpack.c.l.bf16 %v2046
        %v2174 = vunpack.c.h.bf16 %v2046
        %v2175 = vadd.f32 %v1087, %v2047
        %v2176 = vadd.f32 %v1088, %v2048
        %v2177 = vadd.f32 %v1089, %v2049
        %v2178 = vadd.f32 %v1090, %v2050
        %v2179 = vadd.f32 %v1091, %v2051
        %v2180 = vadd.f32 %v1092, %v2052
        %v2181 = vadd.f32 %v1093, %v2053
        %v2182 = vadd.f32 %v1094, %v2054
        %v2183 = vadd.f32 %v1095, %v2055
        %v2184 = vadd.f32 %v1096, %v2056
        %v2185 = vadd.f32 %v1097, %v2057
        %v2186 = vadd.f32 %v1098, %v2058
        %v2187 = vadd.f32 %v1099, %v2059
        %v2188 = vadd.f32 %v1100, %v2060
        %v2189 = vadd.f32 %v1101, %v2061
        %v2190 = vadd.f32 %v1102, %v2062
        %v2191 = vadd.f32 %v1103, %v2063
        %v2192 = vadd.f32 %v1104, %v2064
        %v2193 = vadd.f32 %v1105, %v2065
        %v2194 = vadd.f32 %v1106, %v2066
        %v2195 = vadd.f32 %v1107, %v2067
        %v2196 = vadd.f32 %v1108, %v2068
        %v2197 = vadd.f32 %v1109, %v2069
        %v2198 = vadd.f32 %v1110, %v2070
        %v2199 = vadd.f32 %v1111, %v2071
        %v2200 = vadd.f32 %v1112, %v2072
        %v2201 = vadd.f32 %v1113, %v2073
        %v2202 = vadd.f32 %v1114, %v2074
        %v2203 = vadd.f32 %v1115, %v2075
        %v2204 = vadd.f32 %v1116, %v2076
        %v2205 = vadd.f32 %v1117, %v2077
        %v2206 = vadd.f32 %v1118, %v2078
        %v2207 = vadd.f32 %v1119, %v2079
        %v2208 = vadd.f32 %v1120, %v2080
        %v2209 = vadd.f32 %v1121, %v2081
        %v2210 = vadd.f32 %v1122, %v2082
        %v2211 = vadd.f32 %v1123, %v2083
        %v2212 = vadd.f32 %v1124, %v2084
        %v2213 = vadd.f32 %v1125, %v2085
        %v2214 = vadd.f32 %v1126, %v2086
        %v2215 = vadd.f32 %v1127, %v2087
        %v2216 = vadd.f32 %v1128, %v2088
        %v2217 = vadd.f32 %v1129, %v2089
        %v2218 = vadd.f32 %v1130, %v2090
        %v2219 = vadd.f32 %v1131, %v2091
        %v2220 = vadd.f32 %v1132, %v2092
        %v2221 = vadd.f32 %v1133, %v2093
        %v2222 = vadd.f32 %v1134, %v2094
        %v2223 = vadd.f32 %v1135, %v2095
        %v2224 = vadd.f32 %v1136, %v2096
        %v2225 = vadd.f32 %v1137, %v2097
        %v2226 = vadd.f32 %v1138, %v2098
        %v2227 = vadd.f32 %v1139, %v2099
        %v2228 = vadd.f32 %v1140, %v2100
        %v2229 = vadd.f32 %v1141, %v2101
        %v2230 = vadd.f32 %v1142, %v2102
        %v2231 = vadd.f32 %v1143, %v2103
        %v2232 = vadd.f32 %v1144, %v2104
        %v2233 = vadd.f32 %v1145, %v2105
        %v2234 = vadd.f32 %v1146, %v2106
        %v2235 = vadd.f32 %v1147, %v2107
        %v2236 = vadd.f32 %v1148, %v2108
        %v2237 = vadd.f32 %v1149, %v2109
        %v2238 = vadd.f32 %v1150, %v2110
        %v2239 = vadd.f32 %v1151, %v2111
        %v2240 = vadd.f32 %v1152, %v2112
        %v2241 = vadd.f32 %v1153, %v2113
        %v2242 = vadd.f32 %v1154, %v2114
        %v2243 = vadd.f32 %v1155, %v2115
        %v2244 = vadd.f32 %v1156, %v2116
        %v2245 = vadd.f32 %v1157, %v2117
        %v2246 = vadd.f32 %v1158, %v2118
        %v2247 = vadd.f32 %v1159, %v2119
        %v2248 = vadd.f32 %v1160, %v2120
        %v2249 = vadd.f32 %v1161, %v2121
        %v2250 = vadd.f32 %v1162, %v2122
        %v2251 = vadd.f32 %v1163, %v2123
        %v2252 = vadd.f32 %v1164, %v2124
        %v2253 = vadd.f32 %v1165, %v2125
        %v2254 = vadd.f32 %v1166, %v2126
        %v2255 = vadd.f32 %v1167, %v2127
        %v2256 = vadd.f32 %v1168, %v2128
        %v2257 = vadd.f32 %v1169, %v2129
        %v2258 = vadd.f32 %v1170, %v2130
        %v2259 = vadd.f32 %v1171, %v2131
        %v2260 = vadd.f32 %v1172, %v2132
        %v2261 = vadd.f32 %v1173, %v2133
        %v2262 = vadd.f32 %v1174, %v2134
        %v2263 = vadd.f32 %v1175, %v2135
        %v2264 = vadd.f32 %v1176, %v2136
        %v2265 = vadd.f32 %v1177, %v2137
        %v2266 = vadd.f32 %v1178, %v2138
        %v2267 = vadd.f32 %v1179, %v2139
        %v2268 = vadd.f32 %v1180, %v2140
        %v2269 = vadd.f32 %v1181, %v2141
        %v2270 = vadd.f32 %v1182, %v2142
        %v2271 = vadd.f32 %v1183, %v2143
        %v2272 = vadd.f32 %v1184, %v2144
        %v2273 = vadd.f32 %v1185, %v2145
        %v2274 = vadd.f32 %v1186, %v2146
        %v2275 = vadd.f32 %v1187, %v2147
        %v2276 = vadd.f32 %v1188, %v2148
        %v2277 = vadd.f32 %v1189, %v2149
        %v2278 = vadd.f32 %v1190, %v2150
        %v2279 = vadd.f32 %v1191, %v2151
        %v2280 = vadd.f32 %v1192, %v2152
        %v2281 = vadd.f32 %v1193, %v2153
        %v2282 = vadd.f32 %v1194, %v2154
        %v2283 = vadd.f32 %v1195, %v2155
        %v2284 = vadd.f32 %v1196, %v2156
        %v2285 = vadd.f32 %v1197, %v2157
        %v2286 = vadd.f32 %v1198, %v2158
        %v2287 = vadd.f32 %v1199, %v2159
        %v2288 = vadd.f32 %v1200, %v2160
        %v2289 = vadd.f32 %v1201, %v2161
        %v2290 = vadd.f32 %v1202, %v2162
        %v2291 = vadd.f32 %v1203, %v2163
        %v2292 = vadd.f32 %v1204, %v2164
        %v2293 = vadd.f32 %v1205, %v2165
        %v2294 = vadd.f32 %v1206, %v2166
        %v2295 = vadd.f32 %v1207, %v2167
        %v2296 = vadd.f32 %v1208, %v2168
        %v2297 = vadd.f32 %v1209, %v2169
        %v2298 = vadd.f32 %v1210, %v2170
        %v2299 = vadd.f32 %v1211, %v2171
        %v2300 = vadd.f32 %v1212, %v2172
        %v2301 = vadd.f32 %v1213, %v2173
        %v2302 = vadd.f32 %v1214, %v2174
        %v2303 = vpack.c.bf16 %v2176, %v2175
        %v2304 = vpack.c.bf16 %v2178, %v2177
        %v2305 = vpack.c.bf16 %v2180, %v2179
        %v2306 = vpack.c.bf16 %v2182, %v2181
        %v2307 = vpack.c.bf16 %v2184, %v2183
        %v2308 = vpack.c.bf16 %v2186, %v2185
        %v2309 = vpack.c.bf16 %v2188, %v2187
        %v2310 = vpack.c.bf16 %v2190, %v2189
        %v2311 = vpack.c.bf16 %v2192, %v2191
        %v2312 = vpack.c.bf16 %v2194, %v2193
        %v2313 = vpack.c.bf16 %v2196, %v2195
        %v2314 = vpack.c.bf16 %v2198, %v2197
        %v2315 = vpack.c.bf16 %v2200, %v2199
        %v2316 = vpack.c.bf16 %v2202, %v2201
        %v2317 = vpack.c.bf16 %v2204, %v2203
        %v2318 = vpack.c.bf16 %v2206, %v2205
        %v2319 = vpack.c.bf16 %v2208, %v2207
        %v2320 = vpack.c.bf16 %v2210, %v2209
        %v2321 = vpack.c.bf16 %v2212, %v2211
        %v2322 = vpack.c.bf16 %v2214, %v2213
        %v2323 = vpack.c.bf16 %v2216, %v2215
        %v2324 = vpack.c.bf16 %v2218, %v2217
        %v2325 = vpack.c.bf16 %v2220, %v2219
        %v2326 = vpack.c.bf16 %v2222, %v2221
        %v2327 = vpack.c.bf16 %v2224, %v2223
        %v2328 = vpack.c.bf16 %v2226, %v2225
        %v2329 = vpack.c.bf16 %v2228, %v2227
        %v2330 = vpack.c.bf16 %v2230, %v2229
        %v2331 = vpack.c.bf16 %v2232, %v2231
        %v2332 = vpack.c.bf16 %v2234, %v2233
        %v2333 = vpack.c.bf16 %v2236, %v2235
        %v2334 = vpack.c.bf16 %v2238, %v2237
        %v2335 = vpack.c.bf16 %v2240, %v2239
        %v2336 = vpack.c.bf16 %v2242, %v2241
        %v2337 = vpack.c.bf16 %v2244, %v2243
        %v2338 = vpack.c.bf16 %v2246, %v2245
        %v2339 = vpack.c.bf16 %v2248, %v2247
        %v2340 = vpack.c.bf16 %v2250, %v2249
        %v2341 = vpack.c.bf16 %v2252, %v2251
        %v2342 = vpack.c.bf16 %v2254, %v2253
        %v2343 = vpack.c.bf16 %v2256, %v2255
        %v2344 = vpack.c.bf16 %v2258, %v2257
        %v2345 = vpack.c.bf16 %v2260, %v2259
        %v2346 = vpack.c.bf16 %v2262, %v2261
        %v2347 = vpack.c.bf16 %v2264, %v2263
        %v2348 = vpack.c.bf16 %v2266, %v2265
        %v2349 = vpack.c.bf16 %v2268, %v2267
        %v2350 = vpack.c.bf16 %v2270, %v2269
        %v2351 = vpack.c.bf16 %v2272, %v2271
        %v2352 = vpack.c.bf16 %v2274, %v2273
        %v2353 = vpack.c.bf16 %v2276, %v2275
        %v2354 = vpack.c.bf16 %v2278, %v2277
        %v2355 = vpack.c.bf16 %v2280, %v2279
        %v2356 = vpack.c.bf16 %v2282, %v2281
        %v2357 = vpack.c.bf16 %v2284, %v2283
        %v2358 = vpack.c.bf16 %v2286, %v2285
        %v2359 = vpack.c.bf16 %v2288, %v2287
        %v2360 = vpack.c.bf16 %v2290, %v2289
        %v2361 = vpack.c.bf16 %v2292, %v2291
        %v2362 = vpack.c.bf16 %v2294, %v2293
        %v2363 = vpack.c.bf16 %v2296, %v2295
        %v2364 = vpack.c.bf16 %v2298, %v2297
        %v2365 = vpack.c.bf16 %v2300, %v2299
        %v2366 = vpack.c.bf16 %v2302, %v2301
        %v2367 = vunpack.c.l.bf16 %v2303
        %v2368 = vunpack.c.h.bf16 %v2303
        %v2369 = vunpack.c.l.bf16 %v2304
        %v2370 = vunpack.c.h.bf16 %v2304
        %v2371 = vunpack.c.l.bf16 %v2305
        %v2372 = vunpack.c.h.bf16 %v2305
        %v2373 = vunpack.c.l.bf16 %v2306
        %v2374 = vunpack.c.h.bf16 %v2306
        %v2375 = vunpack.c.l.bf16 %v2307
        %v2376 = vunpack.c.h.bf16 %v2307
        %v2377 = vunpack.c.l.bf16 %v2308
        %v2378 = vunpack.c.h.bf16 %v2308
        %v2379 = vunpack.c.l.bf16 %v2309
        %v2380 = vunpack.c.h.bf16 %v2309
        %v2381 = vunpack.c.l.bf16 %v2310
        %v2382 = vunpack.c.h.bf16 %v2310
        %v2383 = vunpack.c.l.bf16 %v2311
        %v2384 = vunpack.c.h.bf16 %v2311
        %v2385 = vunpack.c.l.bf16 %v2312
        %v2386 = vunpack.c.h.bf16 %v2312
        %v2387 = vunpack.c.l.bf16 %v2313
        %v2388 = vunpack.c.h.bf16 %v2313
        %v2389 = vunpack.c.l.bf16 %v2314
        %v2390 = vunpack.c.h.bf16 %v2314
        %v2391 = vunpack.c.l.bf16 %v2315
        %v2392 = vunpack.c.h.bf16 %v2315
        %v2393 = vunpack.c.l.bf16 %v2316
        %v2394 = vunpack.c.h.bf16 %v2316
        %v2395 = vunpack.c.l.bf16 %v2317
        %v2396 = vunpack.c.h.bf16 %v2317
        %v2397 = vunpack.c.l.bf16 %v2318
        %v2398 = vunpack.c.h.bf16 %v2318
        %v2399 = vunpack.c.l.bf16 %v2319
        %v2400 = vunpack.c.h.bf16 %v2319
        %v2401 = vunpack.c.l.bf16 %v2320
        %v2402 = vunpack.c.h.bf16 %v2320
        %v2403 = vunpack.c.l.bf16 %v2321
        %v2404 = vunpack.c.h.bf16 %v2321
        %v2405 = vunpack.c.l.bf16 %v2322
        %v2406 = vunpack.c.h.bf16 %v2322
        %v2407 = vunpack.c.l.bf16 %v2323
        %v2408 = vunpack.c.h.bf16 %v2323
        %v2409 = vunpack.c.l.bf16 %v2324
        %v2410 = vunpack.c.h.bf16 %v2324
        %v2411 = vunpack.c.l.bf16 %v2325
        %v2412 = vunpack.c.h.bf16 %v2325
        %v2413 = vunpack.c.l.bf16 %v2326
        %v2414 = vunpack.c.h.bf16 %v2326
        %v2415 = vunpack.c.l.bf16 %v2327
        %v2416 = vunpack.c.h.bf16 %v2327
        %v2417 = vunpack.c.l.bf16 %v2328
        %v2418 = vunpack.c.h.bf16 %v2328
        %v2419 = vunpack.c.l.bf16 %v2329
        %v2420 = vunpack.c.h.bf16 %v2329
        %v2421 = vunpack.c.l.bf16 %v2330
        %v2422 = vunpack.c.h.bf16 %v2330
        %v2423 = vunpack.c.l.bf16 %v2331
        %v2424 = vunpack.c.h.bf16 %v2331
        %v2425 = vunpack.c.l.bf16 %v2332
        %v2426 = vunpack.c.h.bf16 %v2332
        %v2427 = vunpack.c.l.bf16 %v2333
        %v2428 = vunpack.c.h.bf16 %v2333
        %v2429 = vunpack.c.l.bf16 %v2334
        %v2430 = vunpack.c.h.bf16 %v2334
        %v2431 = vunpack.c.l.bf16 %v2335
        %v2432 = vunpack.c.h.bf16 %v2335
        %v2433 = vunpack.c.l.bf16 %v2336
        %v2434 = vunpack.c.h.bf16 %v2336
        %v2435 = vunpack.c.l.bf16 %v2337
        %v2436 = vunpack.c.h.bf16 %v2337
        %v2437 = vunpack.c.l.bf16 %v2338
        %v2438 = vunpack.c.h.bf16 %v2338
        %v2439 = vunpack.c.l.bf16 %v2339
        %v2440 = vunpack.c.h.bf16 %v2339
        %v2441 = vunpack.c.l.bf16 %v2340
        %v2442 = vunpack.c.h.bf16 %v2340
        %v2443 = vunpack.c.l.bf16 %v2341
        %v2444 = vunpack.c.h.bf16 %v2341
        %v2445 = vunpack.c.l.bf16 %v2342
        %v2446 = vunpack.c.h.bf16 %v2342
        %v2447 = vunpack.c.l.bf16 %v2343
        %v2448 = vunpack.c.h.bf16 %v2343
        %v2449 = vunpack.c.l.bf16 %v2344
        %v2450 = vunpack.c.h.bf16 %v2344
        %v2451 = vunpack.c.l.bf16 %v2345
        %v2452 = vunpack.c.h.bf16 %v2345
        %v2453 = vunpack.c.l.bf16 %v2346
        %v2454 = vunpack.c.h.bf16 %v2346
        %v2455 = vunpack.c.l.bf16 %v2347
        %v2456 = vunpack.c.h.bf16 %v2347
        %v2457 = vunpack.c.l.bf16 %v2348
        %v2458 = vunpack.c.h.bf16 %v2348
        %v2459 = vunpack.c.l.bf16 %v2349
        %v2460 = vunpack.c.h.bf16 %v2349
        %v2461 = vunpack.c.l.bf16 %v2350
        %v2462 = vunpack.c.h.bf16 %v2350
        %v2463 = vunpack.c.l.bf16 %v2351
        %v2464 = vunpack.c.h.bf16 %v2351
        %v2465 = vunpack.c.l.bf16 %v2352
        %v2466 = vunpack.c.h.bf16 %v2352
        %v2467 = vunpack.c.l.bf16 %v2353
        %v2468 = vunpack.c.h.bf16 %v2353
        %v2469 = vunpack.c.l.bf16 %v2354
        %v2470 = vunpack.c.h.bf16 %v2354
        %v2471 = vunpack.c.l.bf16 %v2355
        %v2472 = vunpack.c.h.bf16 %v2355
        %v2473 = vunpack.c.l.bf16 %v2356
        %v2474 = vunpack.c.h.bf16 %v2356
        %v2475 = vunpack.c.l.bf16 %v2357
        %v2476 = vunpack.c.h.bf16 %v2357
        %v2477 = vunpack.c.l.bf16 %v2358
        %v2478 = vunpack.c.h.bf16 %v2358
        %v2479 = vunpack.c.l.bf16 %v2359
        %v2480 = vunpack.c.h.bf16 %v2359
        %v2481 = vunpack.c.l.bf16 %v2360
        %v2482 = vunpack.c.h.bf16 %v2360
        %v2483 = vunpack.c.l.bf16 %v2361
        %v2484 = vunpack.c.h.bf16 %v2361
        %v2485 = vunpack.c.l.bf16 %v2362
        %v2486 = vunpack.c.h.bf16 %v2362
        %v2487 = vunpack.c.l.bf16 %v2363
        %v2488 = vunpack.c.h.bf16 %v2363
        %v2489 = vunpack.c.l.bf16 %v2364
        %v2490 = vunpack.c.h.bf16 %v2364
        %v2491 = vunpack.c.l.bf16 %v2365
        %v2492 = vunpack.c.h.bf16 %v2365
        %v2493 = vunpack.c.l.bf16 %v2366
        %v2494 = vunpack.c.h.bf16 %v2366
        %v2495 = vmul.f32 %v2367, 0.796875
        %v2496 = vmul.f32 %v2368, 0.796875
        %v2497 = vmul.f32 %v2369, 0.796875
        %v2498 = vmul.f32 %v2370, 0.796875
        %v2499 = vmul.f32 %v2371, 0.796875
        %v2500 = vmul.f32 %v2372, 0.796875
        %v2501 = vmul.f32 %v2373, 0.796875
        %v2502 = vmul.f32 %v2374, 0.796875
        %v2503 = vmul.f32 %v2375, 0.796875
        %v2504 = vmul.f32 %v2376, 0.796875
        %v2505 = vmul.f32 %v2377, 0.796875
        %v2506 = vmul.f32 %v2378, 0.796875
        %v2507 = vmul.f32 %v2379, 0.796875
        %v2508 = vmul.f32 %v2380, 0.796875
        %v2509 = vmul.f32 %v2381, 0.796875
        %v2510 = vmul.f32 %v2382, 0.796875
        %v2511 = vmul.f32 %v2383, 0.796875
        %v2512 = vmul.f32 %v2384, 0.796875
        %v2513 = vmul.f32 %v2385, 0.796875
        %v2514 = vmul.f32 %v2386, 0.796875
        %v2515 = vmul.f32 %v2387, 0.796875
        %v2516 = vmul.f32 %v2388, 0.796875
        %v2517 = vmul.f32 %v2389, 0.796875
        %v2518 = vmul.f32 %v2390, 0.796875
        %v2519 = vmul.f32 %v2391, 0.796875
        %v2520 = vmul.f32 %v2392, 0.796875
        %v2521 = vmul.f32 %v2393, 0.796875
        %v2522 = vmul.f32 %v2394, 0.796875
        %v2523 = vmul.f32 %v2395, 0.796875
        %v2524 = vmul.f32 %v2396, 0.796875
        %v2525 = vmul.f32 %v2397, 0.796875
        %v2526 = vmul.f32 %v2398, 0.796875
        %v2527 = vmul.f32 %v2399, 0.796875
        %v2528 = vmul.f32 %v2400, 0.796875
        %v2529 = vmul.f32 %v2401, 0.796875
        %v2530 = vmul.f32 %v2402, 0.796875
        %v2531 = vmul.f32 %v2403, 0.796875
        %v2532 = vmul.f32 %v2404, 0.796875
        %v2533 = vmul.f32 %v2405, 0.796875
        %v2534 = vmul.f32 %v2406, 0.796875
        %v2535 = vmul.f32 %v2407, 0.796875
        %v2536 = vmul.f32 %v2408, 0.796875
        %v2537 = vmul.f32 %v2409, 0.796875
        %v2538 = vmul.f32 %v2410, 0.796875
        %v2539 = vmul.f32 %v2411, 0.796875
        %v2540 = vmul.f32 %v2412, 0.796875
        %v2541 = vmul.f32 %v2413, 0.796875
        %v2542 = vmul.f32 %v2414, 0.796875
        %v2543 = vmul.f32 %v2415, 0.796875
        %v2544 = vmul.f32 %v2416, 0.796875
        %v2545 = vmul.f32 %v2417, 0.796875
        %v2546 = vmul.f32 %v2418, 0.796875
        %v2547 = vmul.f32 %v2419, 0.796875
        %v2548 = vmul.f32 %v2420, 0.796875
        %v2549 = vmul.f32 %v2421, 0.796875
        %v2550 = vmul.f32 %v2422, 0.796875
        %v2551 = vmul.f32 %v2423, 0.796875
        %v2552 = vmul.f32 %v2424, 0.796875
        %v2553 = vmul.f32 %v2425, 0.796875
        %v2554 = vmul.f32 %v2426, 0.796875
        %v2555 = vmul.f32 %v2427, 0.796875
        %v2556 = vmul.f32 %v2428, 0.796875
        %v2557 = vmul.f32 %v2429, 0.796875
        %v2558 = vmul.f32 %v2430, 0.796875
        %v2559 = vmul.f32 %v2431, 0.796875
        %v2560 = vmul.f32 %v2432, 0.796875
        %v2561 = vmul.f32 %v2433, 0.796875
        %v2562 = vmul.f32 %v2434, 0.796875
        %v2563 = vmul.f32 %v2435, 0.796875
        %v2564 = vmul.f32 %v2436, 0.796875
        %v2565 = vmul.f32 %v2437, 0.796875
        %v2566 = vmul.f32 %v2438, 0.796875
        %v2567 = vmul.f32 %v2439, 0.796875
        %v2568 = vmul.f32 %v2440, 0.796875
        %v2569 = vmul.f32 %v2441, 0.796875
        %v2570 = vmul.f32 %v2442, 0.796875
        %v2571 = vmul.f32 %v2443, 0.796875
        %v2572 = vmul.f32 %v2444, 0.796875
        %v2573 = vmul.f32 %v2445, 0.796875
        %v2574 = vmul.f32 %v2446, 0.796875
        %v2575 = vmul.f32 %v2447, 0.796875
        %v2576 = vmul.f32 %v2448, 0.796875
        %v2577 = vmul.f32 %v2449, 0.796875
        %v2578 = vmul.f32 %v2450, 0.796875
        %v2579 = vmul.f32 %v2451, 0.796875
        %v2580 = vmul.f32 %v2452, 0.796875
        %v2581 = vmul.f32 %v2453, 0.796875
        %v2582 = vmul.f32 %v2454, 0.796875
        %v2583 = vmul.f32 %v2455, 0.796875
        %v2584 = vmul.f32 %v2456, 0.796875
        %v2585 = vmul.f32 %v2457, 0.796875
        %v2586 = vmul.f32 %v2458, 0.796875
        %v2587 = vmul.f32 %v2459, 0.796875
        %v2588 = vmul.f32 %v2460, 0.796875
        %v2589 = vmul.f32 %v2461, 0.796875
        %v2590 = vmul.f32 %v2462, 0.796875
        %v2591 = vmul.f32 %v2463, 0.796875
        %v2592 = vmul.f32 %v2464, 0.796875
        %v2593 = vmul.f32 %v2465, 0.796875
        %v2594 = vmul.f32 %v2466, 0.796875
        %v2595 = vmul.f32 %v2467, 0.796875
        %v2596 = vmul.f32 %v2468, 0.796875
        %v2597 = vmul.f32 %v2469, 0.796875
        %v2598 = vmul.f32 %v2470, 0.796875
        %v2599 = vmul.f32 %v2471, 0.796875
        %v2600 = vmul.f32 %v2472, 0.796875
        %v2601 = vmul.f32 %v2473, 0.796875
        %v2602 = vmul.f32 %v2474, 0.796875
        %v2603 = vmul.f32 %v2475, 0.796875
        %v2604 = vmul.f32 %v2476, 0.796875
        %v2605 = vmul.f32 %v2477, 0.796875
        %v2606 = vmul.f32 %v2478, 0.796875
        %v2607 = vmul.f32 %v2479, 0.796875
        %v2608 = vmul.f32 %v2480, 0.796875
        %v2609 = vmul.f32 %v2481, 0.796875
        %v2610 = vmul.f32 %v2482, 0.796875
        %v2611 = vmul.f32 %v2483, 0.796875
        %v2612 = vmul.f32 %v2484, 0.796875
        %v2613 = vmul.f32 %v2485, 0.796875
        %v2614 = vmul.f32 %v2486, 0.796875
        %v2615 = vmul.f32 %v2487, 0.796875
        %v2616 = vmul.f32 %v2488, 0.796875
        %v2617 = vmul.f32 %v2489, 0.796875
        %v2618 = vmul.f32 %v2490, 0.796875
        %v2619 = vmul.f32 %v2491, 0.796875
        %v2620 = vmul.f32 %v2492, 0.796875
        %v2621 = vmul.f32 %v2493, 0.796875
        %v2622 = vmul.f32 %v2494, 0.796875
        %v2623 = vpack.c.bf16 %v2496, %v2495
        %v2624 = vpack.c.bf16 %v2498, %v2497
        %v2625 = vpack.c.bf16 %v2500, %v2499
        %v2626 = vpack.c.bf16 %v2502, %v2501
        %v2627 = vpack.c.bf16 %v2504, %v2503
        %v2628 = vpack.c.bf16 %v2506, %v2505
        %v2629 = vpack.c.bf16 %v2508, %v2507
        %v2630 = vpack.c.bf16 %v2510, %v2509
        %v2631 = vpack.c.bf16 %v2512, %v2511
        %v2632 = vpack.c.bf16 %v2514, %v2513
        %v2633 = vpack.c.bf16 %v2516, %v2515
        %v2634 = vpack.c.bf16 %v2518, %v2517
        %v2635 = vpack.c.bf16 %v2520, %v2519
        %v2636 = vpack.c.bf16 %v2522, %v2521
        %v2637 = vpack.c.bf16 %v2524, %v2523
        %v2638 = vpack.c.bf16 %v2526, %v2525
        %v2639 = vpack.c.bf16 %v2528, %v2527
        %v2640 = vpack.c.bf16 %v2530, %v2529
        %v2641 = vpack.c.bf16 %v2532, %v2531
        %v2642 = vpack.c.bf16 %v2534, %v2533
        %v2643 = vpack.c.bf16 %v2536, %v2535
        %v2644 = vpack.c.bf16 %v2538, %v2537
        %v2645 = vpack.c.bf16 %v2540, %v2539
        %v2646 = vpack.c.bf16 %v2542, %v2541
        %v2647 = vpack.c.bf16 %v2544, %v2543
        %v2648 = vpack.c.bf16 %v2546, %v2545
        %v2649 = vpack.c.bf16 %v2548, %v2547
        %v2650 = vpack.c.bf16 %v2550, %v2549
        %v2651 = vpack.c.bf16 %v2552, %v2551
        %v2652 = vpack.c.bf16 %v2554, %v2553
        %v2653 = vpack.c.bf16 %v2556, %v2555
        %v2654 = vpack.c.bf16 %v2558, %v2557
        %v2655 = vpack.c.bf16 %v2560, %v2559
        %v2656 = vpack.c.bf16 %v2562, %v2561
        %v2657 = vpack.c.bf16 %v2564, %v2563
        %v2658 = vpack.c.bf16 %v2566, %v2565
        %v2659 = vpack.c.bf16 %v2568, %v2567
        %v2660 = vpack.c.bf16 %v2570, %v2569
        %v2661 = vpack.c.bf16 %v2572, %v2571
        %v2662 = vpack.c.bf16 %v2574, %v2573
        %v2663 = vpack.c.bf16 %v2576, %v2575
        %v2664 = vpack.c.bf16 %v2578, %v2577
        %v2665 = vpack.c.bf16 %v2580, %v2579
        %v2666 = vpack.c.bf16 %v2582, %v2581
        %v2667 = vpack.c.bf16 %v2584, %v2583
        %v2668 = vpack.c.bf16 %v2586, %v2585
        %v2669 = vpack.c.bf16 %v2588, %v2587
        %v2670 = vpack.c.bf16 %v2590, %v2589
        %v2671 = vpack.c.bf16 %v2592, %v2591
        %v2672 = vpack.c.bf16 %v2594, %v2593
        %v2673 = vpack.c.bf16 %v2596, %v2595
        %v2674 = vpack.c.bf16 %v2598, %v2597
        %v2675 = vpack.c.bf16 %v2600, %v2599
        %v2676 = vpack.c.bf16 %v2602, %v2601
        %v2677 = vpack.c.bf16 %v2604, %v2603
        %v2678 = vpack.c.bf16 %v2606, %v2605
        %v2679 = vpack.c.bf16 %v2608, %v2607
        %v2680 = vpack.c.bf16 %v2610, %v2609
        %v2681 = vpack.c.bf16 %v2612, %v2611
        %v2682 = vpack.c.bf16 %v2614, %v2613
        %v2683 = vpack.c.bf16 %v2616, %v2615
        %v2684 = vpack.c.bf16 %v2618, %v2617
        %v2685 = vpack.c.bf16 %v2620, %v2619
        %v2686 = vpack.c.bf16 %v2622, %v2621
        %v2687 = vunpack.c.l.bf16 %v2623
        %v2688 = vunpack.c.h.bf16 %v2623
        %v2689 = vunpack.c.l.bf16 %v2624
        %v2690 = vunpack.c.h.bf16 %v2624
        %v2691 = vunpack.c.l.bf16 %v2625
        %v2692 = vunpack.c.h.bf16 %v2625
        %v2693 = vunpack.c.l.bf16 %v2626
        %v2694 = vunpack.c.h.bf16 %v2626
        %v2695 = vunpack.c.l.bf16 %v2627
        %v2696 = vunpack.c.h.bf16 %v2627
        %v2697 = vunpack.c.l.bf16 %v2628
        %v2698 = vunpack.c.h.bf16 %v2628
        %v2699 = vunpack.c.l.bf16 %v2629
        %v2700 = vunpack.c.h.bf16 %v2629
        %v2701 = vunpack.c.l.bf16 %v2630
        %v2702 = vunpack.c.h.bf16 %v2630
        %v2703 = vunpack.c.l.bf16 %v2631
        %v2704 = vunpack.c.h.bf16 %v2631
        %v2705 = vunpack.c.l.bf16 %v2632
        %v2706 = vunpack.c.h.bf16 %v2632
        %v2707 = vunpack.c.l.bf16 %v2633
        %v2708 = vunpack.c.h.bf16 %v2633
        %v2709 = vunpack.c.l.bf16 %v2634
        %v2710 = vunpack.c.h.bf16 %v2634
        %v2711 = vunpack.c.l.bf16 %v2635
        %v2712 = vunpack.c.h.bf16 %v2635
        %v2713 = vunpack.c.l.bf16 %v2636
        %v2714 = vunpack.c.h.bf16 %v2636
        %v2715 = vunpack.c.l.bf16 %v2637
        %v2716 = vunpack.c.h.bf16 %v2637
        %v2717 = vunpack.c.l.bf16 %v2638
        %v2718 = vunpack.c.h.bf16 %v2638
        %v2719 = vunpack.c.l.bf16 %v2639
        %v2720 = vunpack.c.h.bf16 %v2639
        %v2721 = vunpack.c.l.bf16 %v2640
        %v2722 = vunpack.c.h.bf16 %v2640
        %v2723 = vunpack.c.l.bf16 %v2641
        %v2724 = vunpack.c.h.bf16 %v2641
        %v2725 = vunpack.c.l.bf16 %v2642
        %v2726 = vunpack.c.h.bf16 %v2642
        %v2727 = vunpack.c.l.bf16 %v2643
        %v2728 = vunpack.c.h.bf16 %v2643
        %v2729 = vunpack.c.l.bf16 %v2644
        %v2730 = vunpack.c.h.bf16 %v2644
        %v2731 = vunpack.c.l.bf16 %v2645
        %v2732 = vunpack.c.h.bf16 %v2645
        %v2733 = vunpack.c.l.bf16 %v2646
        %v2734 = vunpack.c.h.bf16 %v2646
        %v2735 = vunpack.c.l.bf16 %v2647
        %v2736 = vunpack.c.h.bf16 %v2647
        %v2737 = vunpack.c.l.bf16 %v2648
        %v2738 = vunpack.c.h.bf16 %v2648
        %v2739 = vunpack.c.l.bf16 %v2649
        %v2740 = vunpack.c.h.bf16 %v2649
        %v2741 = vunpack.c.l.bf16 %v2650
        %v2742 = vunpack.c.h.bf16 %v2650
        %v2743 = vunpack.c.l.bf16 %v2651
        %v2744 = vunpack.c.h.bf16 %v2651
        %v2745 = vunpack.c.l.bf16 %v2652
        %v2746 = vunpack.c.h.bf16 %v2652
        %v2747 = vunpack.c.l.bf16 %v2653
        %v2748 = vunpack.c.h.bf16 %v2653
        %v2749 = vunpack.c.l.bf16 %v2654
        %v2750 = vunpack.c.h.bf16 %v2654
        %v2751 = vunpack.c.l.bf16 %v2655
        %v2752 = vunpack.c.h.bf16 %v2655
        %v2753 = vunpack.c.l.bf16 %v2656
        %v2754 = vunpack.c.h.bf16 %v2656
        %v2755 = vunpack.c.l.bf16 %v2657
        %v2756 = vunpack.c.h.bf16 %v2657
        %v2757 = vunpack.c.l.bf16 %v2658
        %v2758 = vunpack.c.h.bf16 %v2658
        %v2759 = vunpack.c.l.bf16 %v2659
        %v2760 = vunpack.c.h.bf16 %v2659
        %v2761 = vunpack.c.l.bf16 %v2660
        %v2762 = vunpack.c.h.bf16 %v2660
        %v2763 = vunpack.c.l.bf16 %v2661
        %v2764 = vunpack.c.h.bf16 %v2661
        %v2765 = vunpack.c.l.bf16 %v2662
        %v2766 = vunpack.c.h.bf16 %v2662
        %v2767 = vunpack.c.l.bf16 %v2663
        %v2768 = vunpack.c.h.bf16 %v2663
        %v2769 = vunpack.c.l.bf16 %v2664
        %v2770 = vunpack.c.h.bf16 %v2664
        %v2771 = vunpack.c.l.bf16 %v2665
        %v2772 = vunpack.c.h.bf16 %v2665
        %v2773 = vunpack.c.l.bf16 %v2666
        %v2774 = vunpack.c.h.bf16 %v2666
        %v2775 = vunpack.c.l.bf16 %v2667
        %v2776 = vunpack.c.h.bf16 %v2667
        %v2777 = vunpack.c.l.bf16 %v2668
        %v2778 = vunpack.c.h.bf16 %v2668
        %v2779 = vunpack.c.l.bf16 %v2669
        %v2780 = vunpack.c.h.bf16 %v2669
        %v2781 = vunpack.c.l.bf16 %v2670
        %v2782 = vunpack.c.h.bf16 %v2670
        %v2783 = vunpack.c.l.bf16 %v2671
        %v2784 = vunpack.c.h.bf16 %v2671
        %v2785 = vunpack.c.l.bf16 %v2672
        %v2786 = vunpack.c.h.bf16 %v2672
        %v2787 = vunpack.c.l.bf16 %v2673
        %v2788 = vunpack.c.h.bf16 %v2673
        %v2789 = vunpack.c.l.bf16 %v2674
        %v2790 = vunpack.c.h.bf16 %v2674
        %v2791 = vunpack.c.l.bf16 %v2675
        %v2792 = vunpack.c.h.bf16 %v2675
        %v2793 = vunpack.c.l.bf16 %v2676
        %v2794 = vunpack.c.h.bf16 %v2676
        %v2795 = vunpack.c.l.bf16 %v2677
        %v2796 = vunpack.c.h.bf16 %v2677
        %v2797 = vunpack.c.l.bf16 %v2678
        %v2798 = vunpack.c.h.bf16 %v2678
        %v2799 = vunpack.c.l.bf16 %v2679
        %v2800 = vunpack.c.h.bf16 %v2679
        %v2801 = vunpack.c.l.bf16 %v2680
        %v2802 = vunpack.c.h.bf16 %v2680
        %v2803 = vunpack.c.l.bf16 %v2681
        %v2804 = vunpack.c.h.bf16 %v2681
        %v2805 = vunpack.c.l.bf16 %v2682
        %v2806 = vunpack.c.h.bf16 %v2682
        %v2807 = vunpack.c.l.bf16 %v2683
        %v2808 = vunpack.c.h.bf16 %v2683
        %v2809 = vunpack.c.l.bf16 %v2684
        %v2810 = vunpack.c.h.bf16 %v2684
        %v2811 = vunpack.c.l.bf16 %v2685
        %v2812 = vunpack.c.h.bf16 %v2685
        %v2813 = vunpack.c.l.bf16 %v2686
        %v2814 = vunpack.c.h.bf16 %v2686
        %v2815 = vtanh.pop %v2687
        %v2816 = vtanh.pop %v2688
        %v2817 = vtanh.pop %v2689
        %v2818 = vtanh.pop %v2690
        %v2819 = vtanh.pop %v2691
        %v2820 = vtanh.pop %v2692
        %v2821 = vtanh.pop %v2693
        %v2822 = vtanh.pop %v2694
        %v2823 = vtanh.pop %v2695
        %v2824 = vtanh.pop %v2696
        %v2825 = vtanh.pop %v2697
        %v2826 = vtanh.pop %v2698
        %v2827 = vtanh.pop %v2699
        %v2828 = vtanh.pop %v2700
        %v2829 = vtanh.pop %v2701
        %v2830 = vtanh.pop %v2702
        %v2831 = vtanh.pop %v2703
        %v2832 = vtanh.pop %v2704
        %v2833 = vtanh.pop %v2705
        %v2834 = vtanh.pop %v2706
        %v2835 = vtanh.pop %v2707
        %v2836 = vtanh.pop %v2708
        %v2837 = vtanh.pop %v2709
        %v2838 = vtanh.pop %v2710
        %v2839 = vtanh.pop %v2711
        %v2840 = vtanh.pop %v2712
        %v2841 = vtanh.pop %v2713
        %v2842 = vtanh.pop %v2714
        %v2843 = vtanh.pop %v2715
        %v2844 = vtanh.pop %v2716
        %v2845 = vtanh.pop %v2717
        %v2846 = vtanh.pop %v2718
        %v2847 = vtanh.pop %v2719
        %v2848 = vtanh.pop %v2720
        %v2849 = vtanh.pop %v2721
        %v2850 = vtanh.pop %v2722
        %v2851 = vtanh.pop %v2723
        %v2852 = vtanh.pop %v2724
        %v2853 = vtanh.pop %v2725
        %v2854 = vtanh.pop %v2726
        %v2855 = vtanh.pop %v2727
        %v2856 = vtanh.pop %v2728
        %v2857 = vtanh.pop %v2729
        %v2858 = vtanh.pop %v2730
        %v2859 = vtanh.pop %v2731
        %v2860 = vtanh.pop %v2732
        %v2861 = vtanh.pop %v2733
        %v2862 = vtanh.pop %v2734
        %v2863 = vtanh.pop %v2735
        %v2864 = vtanh.pop %v2736
        %v2865 = vtanh.pop %v2737
        %v2866 = vtanh.pop %v2738
        %v2867 = vtanh.pop %v2739
        %v2868 = vtanh.pop %v2740
        %v2869 = vtanh.pop %v2741
        %v2870 = vtanh.pop %v2742
        %v2871 = vtanh.pop %v2743
        %v2872 = vtanh.pop %v2744
        %v2873 = vtanh.pop %v2745
        %v2874 = vtanh.pop %v2746
        %v2875 = vtanh.pop %v2747
        %v2876 = vtanh.pop %v2748
        %v2877 = vtanh.pop %v2749
        %v2878 = vtanh.pop %v2750
        %v2879 = vtanh.pop %v2751
        %v2880 = vtanh.pop %v2752
        %v2881 = vtanh.pop %v2753
        %v2882 = vtanh.pop %v2754
        %v2883 = vtanh.pop %v2755
        %v2884 = vtanh.pop %v2756
        %v2885 = vtanh.pop %v2757
        %v2886 = vtanh.pop %v2758
        %v2887 = vtanh.pop %v2759
        %v2888 = vtanh.pop %v2760
        %v2889 = vtanh.pop %v2761
        %v2890 = vtanh.pop %v2762
        %v2891 = vtanh.pop %v2763
        %v2892 = vtanh.pop %v2764
        %v2893 = vtanh.pop %v2765
        %v2894 = vtanh.pop %v2766
        %v2895 = vtanh.pop %v2767
        %v2896 = vtanh.pop %v2768
        %v2897 = vtanh.pop %v2769
        %v2898 = vtanh.pop %v2770
        %v2899 = vtanh.pop %v2771
        %v2900 = vtanh.pop %v2772
        %v2901 = vtanh.pop %v2773
        %v2902 = vtanh.pop %v2774
        %v2903 = vtanh.pop %v2775
        %v2904 = vtanh.pop %v2776
        %v2905 = vtanh.pop %v2777
        %v2906 = vtanh.pop %v2778
        %v2907 = vtanh.pop %v2779
        %v2908 = vtanh.pop %v2780
        %v2909 = vtanh.pop %v2781
        %v2910 = vtanh.pop %v2782
        %v2911 = vtanh.pop %v2783
        %v2912 = vtanh.pop %v2784
        %v2913 = vtanh.pop %v2785
        %v2914 = vtanh.pop %v2786
        %v2915 = vtanh.pop %v2787
        %v2916 = vtanh.pop %v2788
        %v2917 = vtanh.pop %v2789
        %v2918 = vtanh.pop %v2790
        %v2919 = vtanh.pop %v2791
        %v2920 = vtanh.pop %v2792
        %v2921 = vtanh.pop %v2793
        %v2922 = vtanh.pop %v2794
        %v2923 = vtanh.pop %v2795
        %v2924 = vtanh.pop %v2796
        %v2925 = vtanh.pop %v2797
        %v2926 = vtanh.pop %v2798
        %v2927 = vtanh.pop %v2799
        %v2928 = vtanh.pop %v2800
        %v2929 = vtanh.pop %v2801
        %v2930 = vtanh.pop %v2802
        %v2931 = vtanh.pop %v2803
        %v2932 = vtanh.pop %v2804
        %v2933 = vtanh.pop %v2805
        %v2934 = vtanh.pop %v2806
        %v2935 = vtanh.pop %v2807
        %v2936 = vtanh.pop %v2808
        %v2937 = vtanh.pop %v2809
        %v2938 = vtanh.pop %v2810
        %v2939 = vtanh.pop %v2811
        %v2940 = vtanh.pop %v2812
        %v2941 = vtanh.pop %v2813
        %v2942 = vtanh.pop %v2814
        %v2943 = vpack.c.bf16 %v2816, %v2815
        %v2944 = vpack.c.bf16 %v2818, %v2817
        %v2945 = vpack.c.bf16 %v2820, %v2819
        %v2946 = vpack.c.bf16 %v2822, %v2821
        %v2947 = vpack.c.bf16 %v2824, %v2823
        %v2948 = vpack.c.bf16 %v2826, %v2825
        %v2949 = vpack.c.bf16 %v2828, %v2827
        %v2950 = vpack.c.bf16 %v2830, %v2829
        %v2951 = vpack.c.bf16 %v2832, %v2831
        %v2952 = vpack.c.bf16 %v2834, %v2833
        %v2953 = vpack.c.bf16 %v2836, %v2835
        %v2954 = vpack.c.bf16 %v2838, %v2837
        %v2955 = vpack.c.bf16 %v2840, %v2839
        %v2956 = vpack.c.bf16 %v2842, %v2841
        %v2957 = vpack.c.bf16 %v2844, %v2843
        %v2958 = vpack.c.bf16 %v2846, %v2845
        %v2959 = vpack.c.bf16 %v2848, %v2847
        %v2960 = vpack.c.bf16 %v2850, %v2849
        %v2961 = vpack.c.bf16 %v2852, %v2851
        %v2962 = vpack.c.bf16 %v2854, %v2853
        %v2963 = vpack.c.bf16 %v2856, %v2855
        %v2964 = vpack.c.bf16 %v2858, %v2857
        %v2965 = vpack.c.bf16 %v2860, %v2859
        %v2966 = vpack.c.bf16 %v2862, %v2861
        %v2967 = vpack.c.bf16 %v2864, %v2863
        %v2968 = vpack.c.bf16 %v2866, %v2865
        %v2969 = vpack.c.bf16 %v2868, %v2867
        %v2970 = vpack.c.bf16 %v2870, %v2869
        %v2971 = vpack.c.bf16 %v2872, %v2871
        %v2972 = vpack.c.bf16 %v2874, %v2873
        %v2973 = vpack.c.bf16 %v2876, %v2875
        %v2974 = vpack.c.bf16 %v2878, %v2877
        %v2975 = vpack.c.bf16 %v2880, %v2879
        %v2976 = vpack.c.bf16 %v2882, %v2881
        %v2977 = vpack.c.bf16 %v2884, %v2883
        %v2978 = vpack.c.bf16 %v2886, %v2885
        %v2979 = vpack.c.bf16 %v2888, %v2887
        %v2980 = vpack.c.bf16 %v2890, %v2889
        %v2981 = vpack.c.bf16 %v2892, %v2891
        %v2982 = vpack.c.bf16 %v2894, %v2893
        %v2983 = vpack.c.bf16 %v2896, %v2895
        %v2984 = vpack.c.bf16 %v2898, %v2897
        %v2985 = vpack.c.bf16 %v2900, %v2899
        %v2986 = vpack.c.bf16 %v2902, %v2901
        %v2987 = vpack.c.bf16 %v2904, %v2903
        %v2988 = vpack.c.bf16 %v2906, %v2905
        %v2989 = vpack.c.bf16 %v2908, %v2907
        %v2990 = vpack.c.bf16 %v2910, %v2909
        %v2991 = vpack.c.bf16 %v2912, %v2911
        %v2992 = vpack.c.bf16 %v2914, %v2913
        %v2993 = vpack.c.bf16 %v2916, %v2915
        %v2994 = vpack.c.bf16 %v2918, %v2917
        %v2995 = vpack.c.bf16 %v2920, %v2919
        %v2996 = vpack.c.bf16 %v2922, %v2921
        %v2997 = vpack.c.bf16 %v2924, %v2923
        %v2998 = vpack.c.bf16 %v2926, %v2925
        %v2999 = vpack.c.bf16 %v2928, %v2927
        %v3000 = vpack.c.bf16 %v2930, %v2929
        %v3001 = vpack.c.bf16 %v2932, %v2931
        %v3002 = vpack.c.bf16 %v2934, %v2933
        %v3003 = vpack.c.bf16 %v2936, %v2935
        %v3004 = vpack.c.bf16 %v2938, %v2937
        %v3005 = vpack.c.bf16 %v2940, %v2939
        %v3006 = vpack.c.bf16 %v2942, %v2941
        %v3007 = vunpack.c.l.bf16 %v2943
        %v3008 = vunpack.c.h.bf16 %v2943
        %v3009 = vunpack.c.l.bf16 %v2944
        %v3010 = vunpack.c.h.bf16 %v2944
        %v3011 = vunpack.c.l.bf16 %v2945
        %v3012 = vunpack.c.h.bf16 %v2945
        %v3013 = vunpack.c.l.bf16 %v2946
        %v3014 = vunpack.c.h.bf16 %v2946
        %v3015 = vunpack.c.l.bf16 %v2947
        %v3016 = vunpack.c.h.bf16 %v2947
        %v3017 = vunpack.c.l.bf16 %v2948
        %v3018 = vunpack.c.h.bf16 %v2948
        %v3019 = vunpack.c.l.bf16 %v2949
        %v3020 = vunpack.c.h.bf16 %v2949
        %v3021 = vunpack.c.l.bf16 %v2950
        %v3022 = vunpack.c.h.bf16 %v2950
        %v3023 = vunpack.c.l.bf16 %v2951
        %v3024 = vunpack.c.h.bf16 %v2951
        %v3025 = vunpack.c.l.bf16 %v2952
        %v3026 = vunpack.c.h.bf16 %v2952
        %v3027 = vunpack.c.l.bf16 %v2953
        %v3028 = vunpack.c.h.bf16 %v2953
        %v3029 = vunpack.c.l.bf16 %v2954
        %v3030 = vunpack.c.h.bf16 %v2954
        %v3031 = vunpack.c.l.bf16 %v2955
        %v3032 = vunpack.c.h.bf16 %v2955
        %v3033 = vunpack.c.l.bf16 %v2956
        %v3034 = vunpack.c.h.bf16 %v2956
        %v3035 = vunpack.c.l.bf16 %v2957
        %v3036 = vunpack.c.h.bf16 %v2957
        %v3037 = vunpack.c.l.bf16 %v2958
        %v3038 = vunpack.c.h.bf16 %v2958
        %v3039 = vunpack.c.l.bf16 %v2959
        %v3040 = vunpack.c.h.bf16 %v2959
        %v3041 = vunpack.c.l.bf16 %v2960
        %v3042 = vunpack.c.h.bf16 %v2960
        %v3043 = vunpack.c.l.bf16 %v2961
        %v3044 = vunpack.c.h.bf16 %v2961
        %v3045 = vunpack.c.l.bf16 %v2962
        %v3046 = vunpack.c.h.bf16 %v2962
        %v3047 = vunpack.c.l.bf16 %v2963
        %v3048 = vunpack.c.h.bf16 %v2963
        %v3049 = vunpack.c.l.bf16 %v2964
        %v3050 = vunpack.c.h.bf16 %v2964
        %v3051 = vunpack.c.l.bf16 %v2965
        %v3052 = vunpack.c.h.bf16 %v2965
        %v3053 = vunpack.c.l.bf16 %v2966
        %v3054 = vunpack.c.h.bf16 %v2966
        %v3055 = vunpack.c.l.bf16 %v2967
        %v3056 = vunpack.c.h.bf16 %v2967
        %v3057 = vunpack.c.l.bf16 %v2968
        %v3058 = vunpack.c.h.bf16 %v2968
        %v3059 = vunpack.c.l.bf16 %v2969
        %v3060 = vunpack.c.h.bf16 %v2969
        %v3061 = vunpack.c.l.bf16 %v2970
        %v3062 = vunpack.c.h.bf16 %v2970
        %v3063 = vunpack.c.l.bf16 %v2971
        %v3064 = vunpack.c.h.bf16 %v2971
        %v3065 = vunpack.c.l.bf16 %v2972
        %v3066 = vunpack.c.h.bf16 %v2972
        %v3067 = vunpack.c.l.bf16 %v2973
        %v3068 = vunpack.c.h.bf16 %v2973
        %v3069 = vunpack.c.l.bf16 %v2974
        %v3070 = vunpack.c.h.bf16 %v2974
        %v3071 = vunpack.c.l.bf16 %v2975
        %v3072 = vunpack.c.h.bf16 %v2975
        %v3073 = vunpack.c.l.bf16 %v2976
        %v3074 = vunpack.c.h.bf16 %v2976
        %v3075 = vunpack.c.l.bf16 %v2977
        %v3076 = vunpack.c.h.bf16 %v2977
        %v3077 = vunpack.c.l.bf16 %v2978
        %v3078 = vunpack.c.h.bf16 %v2978
        %v3079 = vunpack.c.l.bf16 %v2979
        %v3080 = vunpack.c.h.bf16 %v2979
        %v3081 = vunpack.c.l.bf16 %v2980
        %v3082 = vunpack.c.h.bf16 %v2980
        %v3083 = vunpack.c.l.bf16 %v2981
        %v3084 = vunpack.c.h.bf16 %v2981
        %v3085 = vunpack.c.l.bf16 %v2982
        %v3086 = vunpack.c.h.bf16 %v2982
        %v3087 = vunpack.c.l.bf16 %v2983
        %v3088 = vunpack.c.h.bf16 %v2983
        %v3089 = vunpack.c.l.bf16 %v2984
        %v3090 = vunpack.c.h.bf16 %v2984
        %v3091 = vunpack.c.l.bf16 %v2985
        %v3092 = vunpack.c.h.bf16 %v2985
        %v3093 = vunpack.c.l.bf16 %v2986
        %v3094 = vunpack.c.h.bf16 %v2986
        %v3095 = vunpack.c.l.bf16 %v2987
        %v3096 = vunpack.c.h.bf16 %v2987
        %v3097 = vunpack.c.l.bf16 %v2988
        %v3098 = vunpack.c.h.bf16 %v2988
        %v3099 = vunpack.c.l.bf16 %v2989
        %v3100 = vunpack.c.h.bf16 %v2989
        %v3101 = vunpack.c.l.bf16 %v2990
        %v3102 = vunpack.c.h.bf16 %v2990
        %v3103 = vunpack.c.l.bf16 %v2991
        %v3104 = vunpack.c.h.bf16 %v2991
        %v3105 = vunpack.c.l.bf16 %v2992
        %v3106 = vunpack.c.h.bf16 %v2992
        %v3107 = vunpack.c.l.bf16 %v2993
        %v3108 = vunpack.c.h.bf16 %v2993
        %v3109 = vunpack.c.l.bf16 %v2994
        %v3110 = vunpack.c.h.bf16 %v2994
        %v3111 = vunpack.c.l.bf16 %v2995
        %v3112 = vunpack.c.h.bf16 %v2995
        %v3113 = vunpack.c.l.bf16 %v2996
        %v3114 = vunpack.c.h.bf16 %v2996
        %v3115 = vunpack.c.l.bf16 %v2997
        %v3116 = vunpack.c.h.bf16 %v2997
        %v3117 = vunpack.c.l.bf16 %v2998
        %v3118 = vunpack.c.h.bf16 %v2998
        %v3119 = vunpack.c.l.bf16 %v2999
        %v3120 = vunpack.c.h.bf16 %v2999
        %v3121 = vunpack.c.l.bf16 %v3000
        %v3122 = vunpack.c.h.bf16 %v3000
        %v3123 = vunpack.c.l.bf16 %v3001
        %v3124 = vunpack.c.h.bf16 %v3001
        %v3125 = vunpack.c.l.bf16 %v3002
        %v3126 = vunpack.c.h.bf16 %v3002
        %v3127 = vunpack.c.l.bf16 %v3003
        %v3128 = vunpack.c.h.bf16 %v3003
        %v3129 = vunpack.c.l.bf16 %v3004
        %v3130 = vunpack.c.h.bf16 %v3004
        %v3131 = vunpack.c.l.bf16 %v3005
        %v3132 = vunpack.c.h.bf16 %v3005
        %v3133 = vunpack.c.l.bf16 %v3006
        %v3134 = vunpack.c.h.bf16 %v3006
        %v3135 = vadd.f32 %v3007, 1.0
        %v3136 = vadd.f32 %v3008, 1.0
        %v3137 = vadd.f32 %v3009, 1.0
        %v3138 = vadd.f32 %v3010, 1.0
        %v3139 = vadd.f32 %v3011, 1.0
        %v3140 = vadd.f32 %v3012, 1.0
        %v3141 = vadd.f32 %v3013, 1.0
        %v3142 = vadd.f32 %v3014, 1.0
        %v3143 = vadd.f32 %v3015, 1.0
        %v3144 = vadd.f32 %v3016, 1.0
        %v3145 = vadd.f32 %v3017, 1.0
        %v3146 = vadd.f32 %v3018, 1.0
        %v3147 = vadd.f32 %v3019, 1.0
        %v3148 = vadd.f32 %v3020, 1.0
        %v3149 = vadd.f32 %v3021, 1.0
        %v3150 = vadd.f32 %v3022, 1.0
        %v3151 = vadd.f32 %v3023, 1.0
        %v3152 = vadd.f32 %v3024, 1.0
        %v3153 = vadd.f32 %v3025, 1.0
        %v3154 = vadd.f32 %v3026, 1.0
        %v3155 = vadd.f32 %v3027, 1.0
        %v3156 = vadd.f32 %v3028, 1.0
        %v3157 = vadd.f32 %v3029, 1.0
        %v3158 = vadd.f32 %v3030, 1.0
        %v3159 = vadd.f32 %v3031, 1.0
        %v3160 = vadd.f32 %v3032, 1.0
        %v3161 = vadd.f32 %v3033, 1.0
        %v3162 = vadd.f32 %v3034, 1.0
        %v3163 = vadd.f32 %v3035, 1.0
        %v3164 = vadd.f32 %v3036, 1.0
        %v3165 = vadd.f32 %v3037, 1.0
        %v3166 = vadd.f32 %v3038, 1.0
        %v3167 = vadd.f32 %v3039, 1.0
        %v3168 = vadd.f32 %v3040, 1.0
        %v3169 = vadd.f32 %v3041, 1.0
        %v3170 = vadd.f32 %v3042, 1.0
        %v3171 = vadd.f32 %v3043, 1.0
        %v3172 = vadd.f32 %v3044, 1.0
        %v3173 = vadd.f32 %v3045, 1.0
        %v3174 = vadd.f32 %v3046, 1.0
        %v3175 = vadd.f32 %v3047, 1.0
        %v3176 = vadd.f32 %v3048, 1.0
        %v3177 = vadd.f32 %v3049, 1.0
        %v3178 = vadd.f32 %v3050, 1.0
        %v3179 = vadd.f32 %v3051, 1.0
        %v3180 = vadd.f32 %v3052, 1.0
        %v3181 = vadd.f32 %v3053, 1.0
        %v3182 = vadd.f32 %v3054, 1.0
        %v3183 = vadd.f32 %v3055, 1.0
        %v3184 = vadd.f32 %v3056, 1.0
        %v3185 = vadd.f32 %v3057, 1.0
        %v3186 = vadd.f32 %v3058, 1.0
        %v3187 = vadd.f32 %v3059, 1.0
        %v3188 = vadd.f32 %v3060, 1.0
        %v3189 = vadd.f32 %v3061, 1.0
        %v3190 = vadd.f32 %v3062, 1.0
        %v3191 = vadd.f32 %v3063, 1.0
        %v3192 = vadd.f32 %v3064, 1.0
        %v3193 = vadd.f32 %v3065, 1.0
        %v3194 = vadd.f32 %v3066, 1.0
        %v3195 = vadd.f32 %v3067, 1.0
        %v3196 = vadd.f32 %v3068, 1.0
        %v3197 = vadd.f32 %v3069, 1.0
        %v3198 = vadd.f32 %v3070, 1.0
        %v3199 = vadd.f32 %v3071, 1.0
        %v3200 = vadd.f32 %v3072, 1.0
        %v3201 = vadd.f32 %v3073, 1.0
        %v3202 = vadd.f32 %v3074, 1.0
        %v3203 = vadd.f32 %v3075, 1.0
        %v3204 = vadd.f32 %v3076, 1.0
        %v3205 = vadd.f32 %v3077, 1.0
        %v3206 = vadd.f32 %v3078, 1.0
        %v3207 = vadd.f32 %v3079, 1.0
        %v3208 = vadd.f32 %v3080, 1.0
        %v3209 = vadd.f32 %v3081, 1.0
        %v3210 = vadd.f32 %v3082, 1.0
        %v3211 = vadd.f32 %v3083, 1.0
        %v3212 = vadd.f32 %v3084, 1.0
        %v3213 = vadd.f32 %v3085, 1.0
        %v3214 = vadd.f32 %v3086, 1.0
        %v3215 = vadd.f32 %v3087, 1.0
        %v3216 = vadd.f32 %v3088, 1.0
        %v3217 = vadd.f32 %v3089, 1.0
        %v3218 = vadd.f32 %v3090, 1.0
        %v3219 = vadd.f32 %v3091, 1.0
        %v3220 = vadd.f32 %v3092, 1.0
        %v3221 = vadd.f32 %v3093, 1.0
        %v3222 = vadd.f32 %v3094, 1.0
        %v3223 = vadd.f32 %v3095, 1.0
        %v3224 = vadd.f32 %v3096, 1.0
        %v3225 = vadd.f32 %v3097, 1.0
        %v3226 = vadd.f32 %v3098, 1.0
        %v3227 = vadd.f32 %v3099, 1.0
        %v3228 = vadd.f32 %v3100, 1.0
        %v3229 = vadd.f32 %v3101, 1.0
        %v3230 = vadd.f32 %v3102, 1.0
        %v3231 = vadd.f32 %v3103, 1.0
        %v3232 = vadd.f32 %v3104, 1.0
        %v3233 = vadd.f32 %v3105, 1.0
        %v3234 = vadd.f32 %v3106, 1.0
        %v3235 = vadd.f32 %v3107, 1.0
        %v3236 = vadd.f32 %v3108, 1.0
        %v3237 = vadd.f32 %v3109, 1.0
        %v3238 = vadd.f32 %v3110, 1.0
        %v3239 = vadd.f32 %v3111, 1.0
        %v3240 = vadd.f32 %v3112, 1.0
        %v3241 = vadd.f32 %v3113, 1.0
        %v3242 = vadd.f32 %v3114, 1.0
        %v3243 = vadd.f32 %v3115, 1.0
        %v3244 = vadd.f32 %v3116, 1.0
        %v3245 = vadd.f32 %v3117, 1.0
        %v3246 = vadd.f32 %v3118, 1.0
        %v3247 = vadd.f32 %v3119, 1.0
        %v3248 = vadd.f32 %v3120, 1.0
        %v3249 = vadd.f32 %v3121, 1.0
        %v3250 = vadd.f32 %v3122, 1.0
        %v3251 = vadd.f32 %v3123, 1.0
        %v3252 = vadd.f32 %v3124, 1.0
        %v3253 = vadd.f32 %v3125, 1.0
        %v3254 = vadd.f32 %v3126, 1.0
        %v3255 = vadd.f32 %v3127, 1.0
        %v3256 = vadd.f32 %v3128, 1.0
        %v3257 = vadd.f32 %v3129, 1.0
        %v3258 = vadd.f32 %v3130, 1.0
        %v3259 = vadd.f32 %v3131, 1.0
        %v3260 = vadd.f32 %v3132, 1.0
        %v3261 = vadd.f32 %v3133, 1.0
        %v3262 = vadd.f32 %v3134, 1.0
        %v3263 = vpack.c.bf16 %v3136, %v3135
        %v3264 = vpack.c.bf16 %v3138, %v3137
        %v3265 = vpack.c.bf16 %v3140, %v3139
        %v3266 = vpack.c.bf16 %v3142, %v3141
        %v3267 = vpack.c.bf16 %v3144, %v3143
        %v3268 = vpack.c.bf16 %v3146, %v3145
        %v3269 = vpack.c.bf16 %v3148, %v3147
        %v3270 = vpack.c.bf16 %v3150, %v3149
        %v3271 = vpack.c.bf16 %v3152, %v3151
        %v3272 = vpack.c.bf16 %v3154, %v3153
        %v3273 = vpack.c.bf16 %v3156, %v3155
        %v3274 = vpack.c.bf16 %v3158, %v3157
        %v3275 = vpack.c.bf16 %v3160, %v3159
        %v3276 = vpack.c.bf16 %v3162, %v3161
        %v3277 = vpack.c.bf16 %v3164, %v3163
        %v3278 = vpack.c.bf16 %v3166, %v3165
        %v3279 = vpack.c.bf16 %v3168, %v3167
        %v3280 = vpack.c.bf16 %v3170, %v3169
        %v3281 = vpack.c.bf16 %v3172, %v3171
        %v3282 = vpack.c.bf16 %v3174, %v3173
        %v3283 = vpack.c.bf16 %v3176, %v3175
        %v3284 = vpack.c.bf16 %v3178, %v3177
        %v3285 = vpack.c.bf16 %v3180, %v3179
        %v3286 = vpack.c.bf16 %v3182, %v3181
        %v3287 = vpack.c.bf16 %v3184, %v3183
        %v3288 = vpack.c.bf16 %v3186, %v3185
        %v3289 = vpack.c.bf16 %v3188, %v3187
        %v3290 = vpack.c.bf16 %v3190, %v3189
        %v3291 = vpack.c.bf16 %v3192, %v3191
        %v3292 = vpack.c.bf16 %v3194, %v3193
        %v3293 = vpack.c.bf16 %v3196, %v3195
        %v3294 = vpack.c.bf16 %v3198, %v3197
        %v3295 = vpack.c.bf16 %v3200, %v3199
        %v3296 = vpack.c.bf16 %v3202, %v3201
        %v3297 = vpack.c.bf16 %v3204, %v3203
        %v3298 = vpack.c.bf16 %v3206, %v3205
        %v3299 = vpack.c.bf16 %v3208, %v3207
        %v3300 = vpack.c.bf16 %v3210, %v3209
        %v3301 = vpack.c.bf16 %v3212, %v3211
        %v3302 = vpack.c.bf16 %v3214, %v3213
        %v3303 = vpack.c.bf16 %v3216, %v3215
        %v3304 = vpack.c.bf16 %v3218, %v3217
        %v3305 = vpack.c.bf16 %v3220, %v3219
        %v3306 = vpack.c.bf16 %v3222, %v3221
        %v3307 = vpack.c.bf16 %v3224, %v3223
        %v3308 = vpack.c.bf16 %v3226, %v3225
        %v3309 = vpack.c.bf16 %v3228, %v3227
        %v3310 = vpack.c.bf16 %v3230, %v3229
        %v3311 = vpack.c.bf16 %v3232, %v3231
        %v3312 = vpack.c.bf16 %v3234, %v3233
        %v3313 = vpack.c.bf16 %v3236, %v3235
        %v3314 = vpack.c.bf16 %v3238, %v3237
        %v3315 = vpack.c.bf16 %v3240, %v3239
        %v3316 = vpack.c.bf16 %v3242, %v3241
        %v3317 = vpack.c.bf16 %v3244, %v3243
        %v3318 = vpack.c.bf16 %v3246, %v3245
        %v3319 = vpack.c.bf16 %v3248, %v3247
        %v3320 = vpack.c.bf16 %v3250, %v3249
        %v3321 = vpack.c.bf16 %v3252, %v3251
        %v3322 = vpack.c.bf16 %v3254, %v3253
        %v3323 = vpack.c.bf16 %v3256, %v3255
        %v3324 = vpack.c.bf16 %v3258, %v3257
        %v3325 = vpack.c.bf16 %v3260, %v3259
        %v3326 = vpack.c.bf16 %v3262, %v3261
        %v3327 = vunpack.c.l.bf16 %v3263
        %v3328 = vunpack.c.h.bf16 %v3263
        %v3329 = vunpack.c.l.bf16 %v3264
        %v3330 = vunpack.c.h.bf16 %v3264
        %v3331 = vunpack.c.l.bf16 %v3265
        %v3332 = vunpack.c.h.bf16 %v3265
        %v3333 = vunpack.c.l.bf16 %v3266
        %v3334 = vunpack.c.h.bf16 %v3266
        %v3335 = vunpack.c.l.bf16 %v3267
        %v3336 = vunpack.c.h.bf16 %v3267
        %v3337 = vunpack.c.l.bf16 %v3268
        %v3338 = vunpack.c.h.bf16 %v3268
        %v3339 = vunpack.c.l.bf16 %v3269
        %v3340 = vunpack.c.h.bf16 %v3269
        %v3341 = vunpack.c.l.bf16 %v3270
        %v3342 = vunpack.c.h.bf16 %v3270
        %v3343 = vunpack.c.l.bf16 %v3271
        %v3344 = vunpack.c.h.bf16 %v3271
        %v3345 = vunpack.c.l.bf16 %v3272
        %v3346 = vunpack.c.h.bf16 %v3272
        %v3347 = vunpack.c.l.bf16 %v3273
        %v3348 = vunpack.c.h.bf16 %v3273
        %v3349 = vunpack.c.l.bf16 %v3274
        %v3350 = vunpack.c.h.bf16 %v3274
        %v3351 = vunpack.c.l.bf16 %v3275
        %v3352 = vunpack.c.h.bf16 %v3275
        %v3353 = vunpack.c.l.bf16 %v3276
        %v3354 = vunpack.c.h.bf16 %v3276
        %v3355 = vunpack.c.l.bf16 %v3277
        %v3356 = vunpack.c.h.bf16 %v3277
        %v3357 = vunpack.c.l.bf16 %v3278
        %v3358 = vunpack.c.h.bf16 %v3278
        %v3359 = vunpack.c.l.bf16 %v3279
        %v3360 = vunpack.c.h.bf16 %v3279
        %v3361 = vunpack.c.l.bf16 %v3280
        %v3362 = vunpack.c.h.bf16 %v3280
        %v3363 = vunpack.c.l.bf16 %v3281
        %v3364 = vunpack.c.h.bf16 %v3281
        %v3365 = vunpack.c.l.bf16 %v3282
        %v3366 = vunpack.c.h.bf16 %v3282
        %v3367 = vunpack.c.l.bf16 %v3283
        %v3368 = vunpack.c.h.bf16 %v3283
        %v3369 = vunpack.c.l.bf16 %v3284
        %v3370 = vunpack.c.h.bf16 %v3284
        %v3371 = vunpack.c.l.bf16 %v3285
        %v3372 = vunpack.c.h.bf16 %v3285
        %v3373 = vunpack.c.l.bf16 %v3286
        %v3374 = vunpack.c.h.bf16 %v3286
        %v3375 = vunpack.c.l.bf16 %v3287
        %v3376 = vunpack.c.h.bf16 %v3287
        %v3377 = vunpack.c.l.bf16 %v3288
        %v3378 = vunpack.c.h.bf16 %v3288
        %v3379 = vunpack.c.l.bf16 %v3289
        %v3380 = vunpack.c.h.bf16 %v3289
        %v3381 = vunpack.c.l.bf16 %v3290
        %v3382 = vunpack.c.h.bf16 %v3290
        %v3383 = vunpack.c.l.bf16 %v3291
        %v3384 = vunpack.c.h.bf16 %v3291
        %v3385 = vunpack.c.l.bf16 %v3292
        %v3386 = vunpack.c.h.bf16 %v3292
        %v3387 = vunpack.c.l.bf16 %v3293
        %v3388 = vunpack.c.h.bf16 %v3293
        %v3389 = vunpack.c.l.bf16 %v3294
        %v3390 = vunpack.c.h.bf16 %v3294
        %v3391 = vunpack.c.l.bf16 %v3295
        %v3392 = vunpack.c.h.bf16 %v3295
        %v3393 = vunpack.c.l.bf16 %v3296
        %v3394 = vunpack.c.h.bf16 %v3296
        %v3395 = vunpack.c.l.bf16 %v3297
        %v3396 = vunpack.c.h.bf16 %v3297
        %v3397 = vunpack.c.l.bf16 %v3298
        %v3398 = vunpack.c.h.bf16 %v3298
        %v3399 = vunpack.c.l.bf16 %v3299
        %v3400 = vunpack.c.h.bf16 %v3299
        %v3401 = vunpack.c.l.bf16 %v3300
        %v3402 = vunpack.c.h.bf16 %v3300
        %v3403 = vunpack.c.l.bf16 %v3301
        %v3404 = vunpack.c.h.bf16 %v3301
        %v3405 = vunpack.c.l.bf16 %v3302
        %v3406 = vunpack.c.h.bf16 %v3302
        %v3407 = vunpack.c.l.bf16 %v3303
        %v3408 = vunpack.c.h.bf16 %v3303
        %v3409 = vunpack.c.l.bf16 %v3304
        %v3410 = vunpack.c.h.bf16 %v3304
        %v3411 = vunpack.c.l.bf16 %v3305
        %v3412 = vunpack.c.h.bf16 %v3305
        %v3413 = vunpack.c.l.bf16 %v3306
        %v3414 = vunpack.c.h.bf16 %v3306
        %v3415 = vunpack.c.l.bf16 %v3307
        %v3416 = vunpack.c.h.bf16 %v3307
        %v3417 = vunpack.c.l.bf16 %v3308
        %v3418 = vunpack.c.h.bf16 %v3308
        %v3419 = vunpack.c.l.bf16 %v3309
        %v3420 = vunpack.c.h.bf16 %v3309
        %v3421 = vunpack.c.l.bf16 %v3310
        %v3422 = vunpack.c.h.bf16 %v3310
        %v3423 = vunpack.c.l.bf16 %v3311
        %v3424 = vunpack.c.h.bf16 %v3311
        %v3425 = vunpack.c.l.bf16 %v3312
        %v3426 = vunpack.c.h.bf16 %v3312
        %v3427 = vunpack.c.l.bf16 %v3313
        %v3428 = vunpack.c.h.bf16 %v3313
        %v3429 = vunpack.c.l.bf16 %v3314
        %v3430 = vunpack.c.h.bf16 %v3314
        %v3431 = vunpack.c.l.bf16 %v3315
        %v3432 = vunpack.c.h.bf16 %v3315
        %v3433 = vunpack.c.l.bf16 %v3316
        %v3434 = vunpack.c.h.bf16 %v3316
        %v3435 = vunpack.c.l.bf16 %v3317
        %v3436 = vunpack.c.h.bf16 %v3317
        %v3437 = vunpack.c.l.bf16 %v3318
        %v3438 = vunpack.c.h.bf16 %v3318
        %v3439 = vunpack.c.l.bf16 %v3319
        %v3440 = vunpack.c.h.bf16 %v3319
        %v3441 = vunpack.c.l.bf16 %v3320
        %v3442 = vunpack.c.h.bf16 %v3320
        %v3443 = vunpack.c.l.bf16 %v3321
        %v3444 = vunpack.c.h.bf16 %v3321
        %v3445 = vunpack.c.l.bf16 %v3322
        %v3446 = vunpack.c.h.bf16 %v3322
        %v3447 = vunpack.c.l.bf16 %v3323
        %v3448 = vunpack.c.h.bf16 %v3323
        %v3449 = vunpack.c.l.bf16 %v3324
        %v3450 = vunpack.c.h.bf16 %v3324
        %v3451 = vunpack.c.l.bf16 %v3325
        %v3452 = vunpack.c.h.bf16 %v3325
        %v3453 = vunpack.c.l.bf16 %v3326
        %v3454 = vunpack.c.h.bf16 %v3326
        %v3455 = vmul.f32 %v3327, 0.5
        %v3456 = vmul.f32 %v3328, 0.5
        %v3457 = vmul.f32 %v3329, 0.5
        %v3458 = vmul.f32 %v3330, 0.5
        %v3459 = vmul.f32 %v3331, 0.5
        %v3460 = vmul.f32 %v3332, 0.5
        %v3461 = vmul.f32 %v3333, 0.5
        %v3462 = vmul.f32 %v3334, 0.5
        %v3463 = vmul.f32 %v3335, 0.5
        %v3464 = vmul.f32 %v3336, 0.5
        %v3465 = vmul.f32 %v3337, 0.5
        %v3466 = vmul.f32 %v3338, 0.5
        %v3467 = vmul.f32 %v3339, 0.5
        %v3468 = vmul.f32 %v3340, 0.5
        %v3469 = vmul.f32 %v3341, 0.5
        %v3470 = vmul.f32 %v3342, 0.5
        %v3471 = vmul.f32 %v3343, 0.5
        %v3472 = vmul.f32 %v3344, 0.5
        %v3473 = vmul.f32 %v3345, 0.5
        %v3474 = vmul.f32 %v3346, 0.5
        %v3475 = vmul.f32 %v3347, 0.5
        %v3476 = vmul.f32 %v3348, 0.5
        %v3477 = vmul.f32 %v3349, 0.5
        %v3478 = vmul.f32 %v3350, 0.5
        %v3479 = vmul.f32 %v3351, 0.5
        %v3480 = vmul.f32 %v3352, 0.5
        %v3481 = vmul.f32 %v3353, 0.5
        %v3482 = vmul.f32 %v3354, 0.5
        %v3483 = vmul.f32 %v3355, 0.5
        %v3484 = vmul.f32 %v3356, 0.5
        %v3485 = vmul.f32 %v3357, 0.5
        %v3486 = vmul.f32 %v3358, 0.5
        %v3487 = vmul.f32 %v3359, 0.5
        %v3488 = vmul.f32 %v3360, 0.5
        %v3489 = vmul.f32 %v3361, 0.5
        %v3490 = vmul.f32 %v3362, 0.5
        %v3491 = vmul.f32 %v3363, 0.5
        %v3492 = vmul.f32 %v3364, 0.5
        %v3493 = vmul.f32 %v3365, 0.5
        %v3494 = vmul.f32 %v3366, 0.5
        %v3495 = vmul.f32 %v3367, 0.5
        %v3496 = vmul.f32 %v3368, 0.5
        %v3497 = vmul.f32 %v3369, 0.5
        %v3498 = vmul.f32 %v3370, 0.5
        %v3499 = vmul.f32 %v3371, 0.5
        %v3500 = vmul.f32 %v3372, 0.5
        %v3501 = vmul.f32 %v3373, 0.5
        %v3502 = vmul.f32 %v3374, 0.5
        %v3503 = vmul.f32 %v3375, 0.5
        %v3504 = vmul.f32 %v3376, 0.5
        %v3505 = vmul.f32 %v3377, 0.5
        %v3506 = vmul.f32 %v3378, 0.5
        %v3507 = vmul.f32 %v3379, 0.5
        %v3508 = vmul.f32 %v3380, 0.5
        %v3509 = vmul.f32 %v3381, 0.5
        %v3510 = vmul.f32 %v3382, 0.5
        %v3511 = vmul.f32 %v3383, 0.5
        %v3512 = vmul.f32 %v3384, 0.5
        %v3513 = vmul.f32 %v3385, 0.5
        %v3514 = vmul.f32 %v3386, 0.5
        %v3515 = vmul.f32 %v3387, 0.5
        %v3516 = vmul.f32 %v3388, 0.5
        %v3517 = vmul.f32 %v3389, 0.5
        %v3518 = vmul.f32 %v3390, 0.5
        %v3519 = vmul.f32 %v3391, 0.5
        %v3520 = vmul.f32 %v3392, 0.5
        %v3521 = vmul.f32 %v3393, 0.5
        %v3522 = vmul.f32 %v3394, 0.5
        %v3523 = vmul.f32 %v3395, 0.5
        %v3524 = vmul.f32 %v3396, 0.5
        %v3525 = vmul.f32 %v3397, 0.5
        %v3526 = vmul.f32 %v3398, 0.5
        %v3527 = vmul.f32 %v3399, 0.5
        %v3528 = vmul.f32 %v3400, 0.5
        %v3529 = vmul.f32 %v3401, 0.5
        %v3530 = vmul.f32 %v3402, 0.5
        %v3531 = vmul.f32 %v3403, 0.5
        %v3532 = vmul.f32 %v3404, 0.5
        %v3533 = vmul.f32 %v3405, 0.5
        %v3534 = vmul.f32 %v3406, 0.5
        %v3535 = vmul.f32 %v3407, 0.5
        %v3536 = vmul.f32 %v3408, 0.5
        %v3537 = vmul.f32 %v3409, 0.5
        %v3538 = vmul.f32 %v3410, 0.5
        %v3539 = vmul.f32 %v3411, 0.5
        %v3540 = vmul.f32 %v3412, 0.5
        %v3541 = vmul.f32 %v3413, 0.5
        %v3542 = vmul.f32 %v3414, 0.5
        %v3543 = vmul.f32 %v3415, 0.5
        %v3544 = vmul.f32 %v3416, 0.5
        %v3545 = vmul.f32 %v3417, 0.5
        %v3546 = vmul.f32 %v3418, 0.5
        %v3547 = vmul.f32 %v3419, 0.5
        %v3548 = vmul.f32 %v3420, 0.5
        %v3549 = vmul.f32 %v3421, 0.5
        %v3550 = vmul.f32 %v3422, 0.5
        %v3551 = vmul.f32 %v3423, 0.5
        %v3552 = vmul.f32 %v3424, 0.5
        %v3553 = vmul.f32 %v3425, 0.5
        %v3554 = vmul.f32 %v3426, 0.5
        %v3555 = vmul.f32 %v3427, 0.5
        %v3556 = vmul.f32 %v3428, 0.5
        %v3557 = vmul.f32 %v3429, 0.5
        %v3558 = vmul.f32 %v3430, 0.5
        %v3559 = vmul.f32 %v3431, 0.5
        %v3560 = vmul.f32 %v3432, 0.5
        %v3561 = vmul.f32 %v3433, 0.5
        %v3562 = vmul.f32 %v3434, 0.5
        %v3563 = vmul.f32 %v3435, 0.5
        %v3564 = vmul.f32 %v3436, 0.5
        %v3565 = vmul.f32 %v3437, 0.5
        %v3566 = vmul.f32 %v3438, 0.5
        %v3567 = vmul.f32 %v3439, 0.5
        %v3568 = vmul.f32 %v3440, 0.5
        %v3569 = vmul.f32 %v3441, 0.5
        %v3570 = vmul.f32 %v3442, 0.5
        %v3571 = vmul.f32 %v3443, 0.5
        %v3572 = vmul.f32 %v3444, 0.5
        %v3573 = vmul.f32 %v3445, 0.5
        %v3574 = vmul.f32 %v3446, 0.5
        %v3575 = vmul.f32 %v3447, 0.5
        %v3576 = vmul.f32 %v3448, 0.5
        %v3577 = vmul.f32 %v3449, 0.5
        %v3578 = vmul.f32 %v3450, 0.5
        %v3579 = vmul.f32 %v3451, 0.5
        %v3580 = vmul.f32 %v3452, 0.5
        %v3581 = vmul.f32 %v3453, 0.5
        %v3582 = vmul.f32 %v3454, 0.5
        %v3583 = vpack.c.bf16 %v3456, %v3455
        %v3584 = vpack.c.bf16 %v3458, %v3457
        %v3585 = vpack.c.bf16 %v3460, %v3459
        %v3586 = vpack.c.bf16 %v3462, %v3461
        %v3587 = vpack.c.bf16 %v3464, %v3463
        %v3588 = vpack.c.bf16 %v3466, %v3465
        %v3589 = vpack.c.bf16 %v3468, %v3467
        %v3590 = vpack.c.bf16 %v3470, %v3469
        %v3591 = vpack.c.bf16 %v3472, %v3471
        %v3592 = vpack.c.bf16 %v3474, %v3473
        %v3593 = vpack.c.bf16 %v3476, %v3475
        %v3594 = vpack.c.bf16 %v3478, %v3477
        %v3595 = vpack.c.bf16 %v3480, %v3479
        %v3596 = vpack.c.bf16 %v3482, %v3481
        %v3597 = vpack.c.bf16 %v3484, %v3483
        %v3598 = vpack.c.bf16 %v3486, %v3485
        %v3599 = vpack.c.bf16 %v3488, %v3487
        %v3600 = vpack.c.bf16 %v3490, %v3489
        %v3601 = vpack.c.bf16 %v3492, %v3491
        %v3602 = vpack.c.bf16 %v3494, %v3493
        %v3603 = vpack.c.bf16 %v3496, %v3495
        %v3604 = vpack.c.bf16 %v3498, %v3497
        %v3605 = vpack.c.bf16 %v3500, %v3499
        %v3606 = vpack.c.bf16 %v3502, %v3501
        %v3607 = vpack.c.bf16 %v3504, %v3503
        %v3608 = vpack.c.bf16 %v3506, %v3505
        %v3609 = vpack.c.bf16 %v3508, %v3507
        %v3610 = vpack.c.bf16 %v3510, %v3509
        %v3611 = vpack.c.bf16 %v3512, %v3511
        %v3612 = vpack.c.bf16 %v3514, %v3513
        %v3613 = vpack.c.bf16 %v3516, %v3515
        %v3614 = vpack.c.bf16 %v3518, %v3517
        %v3615 = vpack.c.bf16 %v3520, %v3519
        %v3616 = vpack.c.bf16 %v3522, %v3521
        %v3617 = vpack.c.bf16 %v3524, %v3523
        %v3618 = vpack.c.bf16 %v3526, %v3525
        %v3619 = vpack.c.bf16 %v3528, %v3527
        %v3620 = vpack.c.bf16 %v3530, %v3529
        %v3621 = vpack.c.bf16 %v3532, %v3531
        %v3622 = vpack.c.bf16 %v3534, %v3533
        %v3623 = vpack.c.bf16 %v3536, %v3535
        %v3624 = vpack.c.bf16 %v3538, %v3537
        %v3625 = vpack.c.bf16 %v3540, %v3539
        %v3626 = vpack.c.bf16 %v3542, %v3541
        %v3627 = vpack.c.bf16 %v3544, %v3543
        %v3628 = vpack.c.bf16 %v3546, %v3545
        %v3629 = vpack.c.bf16 %v3548, %v3547
        %v3630 = vpack.c.bf16 %v3550, %v3549
        %v3631 = vpack.c.bf16 %v3552, %v3551
        %v3632 = vpack.c.bf16 %v3554, %v3553
        %v3633 = vpack.c.bf16 %v3556, %v3555
        %v3634 = vpack.c.bf16 %v3558, %v3557
        %v3635 = vpack.c.bf16 %v3560, %v3559
        %v3636 = vpack.c.bf16 %v3562, %v3561
        %v3637 = vpack.c.bf16 %v3564, %v3563
        %v3638 = vpack.c.bf16 %v3566, %v3565
        %v3639 = vpack.c.bf16 %v3568, %v3567
        %v3640 = vpack.c.bf16 %v3570, %v3569
        %v3641 = vpack.c.bf16 %v3572, %v3571
        %v3642 = vpack.c.bf16 %v3574, %v3573
        %v3643 = vpack.c.bf16 %v3576, %v3575
        %v3644 = vpack.c.bf16 %v3578, %v3577
        %v3645 = vpack.c.bf16 %v3580, %v3579
        %v3646 = vpack.c.bf16 %v3582, %v3581
        %v3647 = vunpack.c.l.bf16 %v3583
        %v3648 = vunpack.c.h.bf16 %v3583
        %v3649 = vunpack.c.l.bf16 %v3584
        %v3650 = vunpack.c.h.bf16 %v3584
        %v3651 = vunpack.c.l.bf16 %v3585
        %v3652 = vunpack.c.h.bf16 %v3585
        %v3653 = vunpack.c.l.bf16 %v3586
        %v3654 = vunpack.c.h.bf16 %v3586
        %v3655 = vunpack.c.l.bf16 %v3587
        %v3656 = vunpack.c.h.bf16 %v3587
        %v3657 = vunpack.c.l.bf16 %v3588
        %v3658 = vunpack.c.h.bf16 %v3588
        %v3659 = vunpack.c.l.bf16 %v3589
        %v3660 = vunpack.c.h.bf16 %v3589
        %v3661 = vunpack.c.l.bf16 %v3590
        %v3662 = vunpack.c.h.bf16 %v3590
        %v3663 = vunpack.c.l.bf16 %v3591
        %v3664 = vunpack.c.h.bf16 %v3591
        %v3665 = vunpack.c.l.bf16 %v3592
        %v3666 = vunpack.c.h.bf16 %v3592
        %v3667 = vunpack.c.l.bf16 %v3593
        %v3668 = vunpack.c.h.bf16 %v3593
        %v3669 = vunpack.c.l.bf16 %v3594
        %v3670 = vunpack.c.h.bf16 %v3594
        %v3671 = vunpack.c.l.bf16 %v3595
        %v3672 = vunpack.c.h.bf16 %v3595
        %v3673 = vunpack.c.l.bf16 %v3596
        %v3674 = vunpack.c.h.bf16 %v3596
        %v3675 = vunpack.c.l.bf16 %v3597
        %v3676 = vunpack.c.h.bf16 %v3597
        %v3677 = vunpack.c.l.bf16 %v3598
        %v3678 = vunpack.c.h.bf16 %v3598
        %v3679 = vunpack.c.l.bf16 %v3599
        %v3680 = vunpack.c.h.bf16 %v3599
        %v3681 = vunpack.c.l.bf16 %v3600
        %v3682 = vunpack.c.h.bf16 %v3600
        %v3683 = vunpack.c.l.bf16 %v3601
        %v3684 = vunpack.c.h.bf16 %v3601
        %v3685 = vunpack.c.l.bf16 %v3602
        %v3686 = vunpack.c.h.bf16 %v3602
        %v3687 = vunpack.c.l.bf16 %v3603
        %v3688 = vunpack.c.h.bf16 %v3603
        %v3689 = vunpack.c.l.bf16 %v3604
        %v3690 = vunpack.c.h.bf16 %v3604
        %v3691 = vunpack.c.l.bf16 %v3605
        %v3692 = vunpack.c.h.bf16 %v3605
        %v3693 = vunpack.c.l.bf16 %v3606
        %v3694 = vunpack.c.h.bf16 %v3606
        %v3695 = vunpack.c.l.bf16 %v3607
        %v3696 = vunpack.c.h.bf16 %v3607
        %v3697 = vunpack.c.l.bf16 %v3608
        %v3698 = vunpack.c.h.bf16 %v3608
        %v3699 = vunpack.c.l.bf16 %v3609
        %v3700 = vunpack.c.h.bf16 %v3609
        %v3701 = vunpack.c.l.bf16 %v3610
        %v3702 = vunpack.c.h.bf16 %v3610
        %v3703 = vunpack.c.l.bf16 %v3611
        %v3704 = vunpack.c.h.bf16 %v3611
        %v3705 = vunpack.c.l.bf16 %v3612
        %v3706 = vunpack.c.h.bf16 %v3612
        %v3707 = vunpack.c.l.bf16 %v3613
        %v3708 = vunpack.c.h.bf16 %v3613
        %v3709 = vunpack.c.l.bf16 %v3614
        %v3710 = vunpack.c.h.bf16 %v3614
        %v3711 = vunpack.c.l.bf16 %v3615
        %v3712 = vunpack.c.h.bf16 %v3615
        %v3713 = vunpack.c.l.bf16 %v3616
        %v3714 = vunpack.c.h.bf16 %v3616
        %v3715 = vunpack.c.l.bf16 %v3617
        %v3716 = vunpack.c.h.bf16 %v3617
        %v3717 = vunpack.c.l.bf16 %v3618
        %v3718 = vunpack.c.h.bf16 %v3618
        %v3719 = vunpack.c.l.bf16 %v3619
        %v3720 = vunpack.c.h.bf16 %v3619
        %v3721 = vunpack.c.l.bf16 %v3620
        %v3722 = vunpack.c.h.bf16 %v3620
        %v3723 = vunpack.c.l.bf16 %v3621
        %v3724 = vunpack.c.h.bf16 %v3621
        %v3725 = vunpack.c.l.bf16 %v3622
        %v3726 = vunpack.c.h.bf16 %v3622
        %v3727 = vunpack.c.l.bf16 %v3623
        %v3728 = vunpack.c.h.bf16 %v3623
        %v3729 = vunpack.c.l.bf16 %v3624
        %v3730 = vunpack.c.h.bf16 %v3624
        %v3731 = vunpack.c.l.bf16 %v3625
        %v3732 = vunpack.c.h.bf16 %v3625
        %v3733 = vunpack.c.l.bf16 %v3626
        %v3734 = vunpack.c.h.bf16 %v3626
        %v3735 = vunpack.c.l.bf16 %v3627
        %v3736 = vunpack.c.h.bf16 %v3627
        %v3737 = vunpack.c.l.bf16 %v3628
        %v3738 = vunpack.c.h.bf16 %v3628
        %v3739 = vunpack.c.l.bf16 %v3629
        %v3740 = vunpack.c.h.bf16 %v3629
        %v3741 = vunpack.c.l.bf16 %v3630
        %v3742 = vunpack.c.h.bf16 %v3630
        %v3743 = vunpack.c.l.bf16 %v3631
        %v3744 = vunpack.c.h.bf16 %v3631
        %v3745 = vunpack.c.l.bf16 %v3632
        %v3746 = vunpack.c.h.bf16 %v3632
        %v3747 = vunpack.c.l.bf16 %v3633
        %v3748 = vunpack.c.h.bf16 %v3633
        %v3749 = vunpack.c.l.bf16 %v3634
        %v3750 = vunpack.c.h.bf16 %v3634
        %v3751 = vunpack.c.l.bf16 %v3635
        %v3752 = vunpack.c.h.bf16 %v3635
        %v3753 = vunpack.c.l.bf16 %v3636
        %v3754 = vunpack.c.h.bf16 %v3636
        %v3755 = vunpack.c.l.bf16 %v3637
        %v3756 = vunpack.c.h.bf16 %v3637
        %v3757 = vunpack.c.l.bf16 %v3638
        %v3758 = vunpack.c.h.bf16 %v3638
        %v3759 = vunpack.c.l.bf16 %v3639
        %v3760 = vunpack.c.h.bf16 %v3639
        %v3761 = vunpack.c.l.bf16 %v3640
        %v3762 = vunpack.c.h.bf16 %v3640
        %v3763 = vunpack.c.l.bf16 %v3641
        %v3764 = vunpack.c.h.bf16 %v3641
        %v3765 = vunpack.c.l.bf16 %v3642
        %v3766 = vunpack.c.h.bf16 %v3642
        %v3767 = vunpack.c.l.bf16 %v3643
        %v3768 = vunpack.c.h.bf16 %v3643
        %v3769 = vunpack.c.l.bf16 %v3644
        %v3770 = vunpack.c.h.bf16 %v3644
        %v3771 = vunpack.c.l.bf16 %v3645
        %v3772 = vunpack.c.h.bf16 %v3645
        %v3773 = vunpack.c.l.bf16 %v3646
        %v3774 = vunpack.c.h.bf16 %v3646
        %v3775 = vmul.f32 %v1087, %v3647
        %v3776 = vmul.f32 %v1088, %v3648
        %v3777 = vmul.f32 %v1089, %v3649
        %v3778 = vmul.f32 %v1090, %v3650
        %v3779 = vmul.f32 %v1091, %v3651
        %v3780 = vmul.f32 %v1092, %v3652
        %v3781 = vmul.f32 %v1093, %v3653
        %v3782 = vmul.f32 %v1094, %v3654
        %v3783 = vmul.f32 %v1095, %v3655
        %v3784 = vmul.f32 %v1096, %v3656
        %v3785 = vmul.f32 %v1097, %v3657
        %v3786 = vmul.f32 %v1098, %v3658
        %v3787 = vmul.f32 %v1099, %v3659
        %v3788 = vmul.f32 %v1100, %v3660
        %v3789 = vmul.f32 %v1101, %v3661
        %v3790 = vmul.f32 %v1102, %v3662
        %v3791 = vmul.f32 %v1103, %v3663
        %v3792 = vmul.f32 %v1104, %v3664
        %v3793 = vmul.f32 %v1105, %v3665
        %v3794 = vmul.f32 %v1106, %v3666
        %v3795 = vmul.f32 %v1107, %v3667
        %v3796 = vmul.f32 %v1108, %v3668
        %v3797 = vmul.f32 %v1109, %v3669
        %v3798 = vmul.f32 %v1110, %v3670
        %v3799 = vmul.f32 %v1111, %v3671
        %v3800 = vmul.f32 %v1112, %v3672
        %v3801 = vmul.f32 %v1113, %v3673
        %v3802 = vmul.f32 %v1114, %v3674
        %v3803 = vmul.f32 %v1115, %v3675
        %v3804 = vmul.f32 %v1116, %v3676
        %v3805 = vmul.f32 %v1117, %v3677
        %v3806 = vmul.f32 %v1118, %v3678
        %v3807 = vmul.f32 %v1119, %v3679
        %v3808 = vmul.f32 %v1120, %v3680
        %v3809 = vmul.f32 %v1121, %v3681
        %v3810 = vmul.f32 %v1122, %v3682
        %v3811 = vmul.f32 %v1123, %v3683
        %v3812 = vmul.f32 %v1124, %v3684
        %v3813 = vmul.f32 %v1125, %v3685
        %v3814 = vmul.f32 %v1126, %v3686
        %v3815 = vmul.f32 %v1127, %v3687
        %v3816 = vmul.f32 %v1128, %v3688
        %v3817 = vmul.f32 %v1129, %v3689
        %v3818 = vmul.f32 %v1130, %v3690
        %v3819 = vmul.f32 %v1131, %v3691
        %v3820 = vmul.f32 %v1132, %v3692
        %v3821 = vmul.f32 %v1133, %v3693
        %v3822 = vmul.f32 %v1134, %v3694
        %v3823 = vmul.f32 %v1135, %v3695
        %v3824 = vmul.f32 %v1136, %v3696
        %v3825 = vmul.f32 %v1137, %v3697
        %v3826 = vmul.f32 %v1138, %v3698
        %v3827 = vmul.f32 %v1139, %v3699
        %v3828 = vmul.f32 %v1140, %v3700
        %v3829 = vmul.f32 %v1141, %v3701
        %v3830 = vmul.f32 %v1142, %v3702
        %v3831 = vmul.f32 %v1143, %v3703
        %v3832 = vmul.f32 %v1144, %v3704
        %v3833 = vmul.f32 %v1145, %v3705
        %v3834 = vmul.f32 %v1146, %v3706
        %v3835 = vmul.f32 %v1147, %v3707
        %v3836 = vmul.f32 %v1148, %v3708
        %v3837 = vmul.f32 %v1149, %v3709
        %v3838 = vmul.f32 %v1150, %v3710
        %v3839 = vmul.f32 %v1151, %v3711
        %v3840 = vmul.f32 %v1152, %v3712
        %v3841 = vmul.f32 %v1153, %v3713
        %v3842 = vmul.f32 %v1154, %v3714
        %v3843 = vmul.f32 %v1155, %v3715
        %v3844 = vmul.f32 %v1156, %v3716
        %v3845 = vmul.f32 %v1157, %v3717
        %v3846 = vmul.f32 %v1158, %v3718
        %v3847 = vmul.f32 %v1159, %v3719
        %v3848 = vmul.f32 %v1160, %v3720
        %v3849 = vmul.f32 %v1161, %v3721
        %v3850 = vmul.f32 %v1162, %v3722
        %v3851 = vmul.f32 %v1163, %v3723
        %v3852 = vmul.f32 %v1164, %v3724
        %v3853 = vmul.f32 %v1165, %v3725
        %v3854 = vmul.f32 %v1166, %v3726
        %v3855 = vmul.f32 %v1167, %v3727
        %v3856 = vmul.f32 %v1168, %v3728
        %v3857 = vmul.f32 %v1169, %v3729
        %v3858 = vmul.f32 %v1170, %v3730
        %v3859 = vmul.f32 %v1171, %v3731
        %v3860 = vmul.f32 %v1172, %v3732
        %v3861 = vmul.f32 %v1173, %v3733
        %v3862 = vmul.f32 %v1174, %v3734
        %v3863 = vmul.f32 %v1175, %v3735
        %v3864 = vmul.f32 %v1176, %v3736
        %v3865 = vmul.f32 %v1177, %v3737
        %v3866 = vmul.f32 %v1178, %v3738
        %v3867 = vmul.f32 %v1179, %v3739
        %v3868 = vmul.f32 %v1180, %v3740
        %v3869 = vmul.f32 %v1181, %v3741
        %v3870 = vmul.f32 %v1182, %v3742
        %v3871 = vmul.f32 %v1183, %v3743
        %v3872 = vmul.f32 %v1184, %v3744
        %v3873 = vmul.f32 %v1185, %v3745
        %v3874 = vmul.f32 %v1186, %v3746
        %v3875 = vmul.f32 %v1187, %v3747
        %v3876 = vmul.f32 %v1188, %v3748
        %v3877 = vmul.f32 %v1189, %v3749
        %v3878 = vmul.f32 %v1190, %v3750
        %v3879 = vmul.f32 %v1191, %v3751
        %v3880 = vmul.f32 %v1192, %v3752
        %v3881 = vmul.f32 %v1193, %v3753
        %v3882 = vmul.f32 %v1194, %v3754
        %v3883 = vmul.f32 %v1195, %v3755
        %v3884 = vmul.f32 %v1196, %v3756
        %v3885 = vmul.f32 %v1197, %v3757
        %v3886 = vmul.f32 %v1198, %v3758
        %v3887 = vmul.f32 %v1199, %v3759
        %v3888 = vmul.f32 %v1200, %v3760
        %v3889 = vmul.f32 %v1201, %v3761
        %v3890 = vmul.f32 %v1202, %v3762
        %v3891 = vmul.f32 %v1203, %v3763
        %v3892 = vmul.f32 %v1204, %v3764
        %v3893 = vmul.f32 %v1205, %v3765
        %v3894 = vmul.f32 %v1206, %v3766
        %v3895 = vmul.f32 %v1207, %v3767
        %v3896 = vmul.f32 %v1208, %v3768
        %v3897 = vmul.f32 %v1209, %v3769
        %v3898 = vmul.f32 %v1210, %v3770
        %v3899 = vmul.f32 %v1211, %v3771
        %v3900 = vmul.f32 %v1212, %v3772
        %v3901 = vmul.f32 %v1213, %v3773
        %v3902 = vmul.f32 %v1214, %v3774
        %v3903 = vpack.c.bf16 %v3779, %v3775
        %v3904 = vpack.c.bf16 %v3780, %v3776
        %v3905 = vpack.c.bf16 %v3781, %v3777
        %v3906 = vpack.c.bf16 %v3782, %v3778
        %v3907 = vpack.c.bf16 %v3787, %v3783
        %v3908 = vpack.c.bf16 %v3788, %v3784
        %v3909 = vpack.c.bf16 %v3789, %v3785
        %v3910 = vpack.c.bf16 %v3790, %v3786
        %v3911 = vpack.c.bf16 %v3795, %v3791
        %v3912 = vpack.c.bf16 %v3796, %v3792
        %v3913 = vpack.c.bf16 %v3797, %v3793
        %v3914 = vpack.c.bf16 %v3798, %v3794
        %v3915 = vpack.c.bf16 %v3803, %v3799
        %v3916 = vpack.c.bf16 %v3804, %v3800
        %v3917 = vpack.c.bf16 %v3805, %v3801
        %v3918 = vpack.c.bf16 %v3806, %v3802
        %v3919 = vpack.c.bf16 %v3811, %v3807
        %v3920 = vpack.c.bf16 %v3812, %v3808
        %v3921 = vpack.c.bf16 %v3813, %v3809
        %v3922 = vpack.c.bf16 %v3814, %v3810
        %v3923 = vpack.c.bf16 %v3819, %v3815
        %v3924 = vpack.c.bf16 %v3820, %v3816
        %v3925 = vpack.c.bf16 %v3821, %v3817
        %v3926 = vpack.c.bf16 %v3822, %v3818
        %v3927 = vpack.c.bf16 %v3827, %v3823
        %v3928 = vpack.c.bf16 %v3828, %v3824
        %v3929 = vpack.c.bf16 %v3829, %v3825
        %v3930 = vpack.c.bf16 %v3830, %v3826
        %v3931 = vpack.c.bf16 %v3835, %v3831
        %v3932 = vpack.c.bf16 %v3836, %v3832
        %v3933 = vpack.c.bf16 %v3837, %v3833
        %v3934 = vpack.c.bf16 %v3838, %v3834
        %v3935 = vpack.c.bf16 %v3843, %v3839
        %v3936 = vpack.c.bf16 %v3844, %v3840
        %v3937 = vpack.c.bf16 %v3845, %v3841
        %v3938 = vpack.c.bf16 %v3846, %v3842
        %v3939 = vpack.c.bf16 %v3851, %v3847
        %v3940 = vpack.c.bf16 %v3852, %v3848
        %v3941 = vpack.c.bf16 %v3853, %v3849
        %v3942 = vpack.c.bf16 %v3854, %v3850
        %v3943 = vpack.c.bf16 %v3859, %v3855
        %v3944 = vpack.c.bf16 %v3860, %v3856
        %v3945 = vpack.c.bf16 %v3861, %v3857
        %v3946 = vpack.c.bf16 %v3862, %v3858
        %v3947 = vpack.c.bf16 %v3867, %v3863
        %v3948 = vpack.c.bf16 %v3868, %v3864
        %v3949 = vpack.c.bf16 %v3869, %v3865
        %v3950 = vpack.c.bf16 %v3870, %v3866
        %v3951 = vpack.c.bf16 %v3875, %v3871
        %v3952 = vpack.c.bf16 %v3876, %v3872
        %v3953 = vpack.c.bf16 %v3877, %v3873
        %v3954 = vpack.c.bf16 %v3878, %v3874
        %v3955 = vpack.c.bf16 %v3883, %v3879
        %v3956 = vpack.c.bf16 %v3884, %v3880
        %v3957 = vpack.c.bf16 %v3885, %v3881
        %v3958 = vpack.c.bf16 %v3886, %v3882
        %v3959 = vpack.c.bf16 %v3891, %v3887
        %v3960 = vpack.c.bf16 %v3892, %v3888
        %v3961 = vpack.c.bf16 %v3893, %v3889
        %v3962 = vpack.c.bf16 %v3894, %v3890
        %v3963 = vpack.c.bf16 %v3899, %v3895
        %v3964 = vpack.c.bf16 %v3900, %v3896
        %v3965 = vpack.c.bf16 %v3901, %v3897
        %v3966 = vpack.c.bf16 %v3902, %v3898
        %v3967 = vld [vmem:[%s3] sm:$0xff]
        %v3968 = vld [vmem:[%s3 + $0x8] sm:$0xff]
        %v3969 = vld [vmem:[%s3 + $0x10] sm:$0xff]
        %v3970 = vld [vmem:[%s3 + $0x18] sm:$0xff]
        %v3971 = vld [vmem:[%s3 + $0x20] sm:$0xff]
        %v3972 = vld [vmem:[%s3 + $0x28] sm:$0xff]
        %v3973 = vld [vmem:[%s3 + $0x30] sm:$0xff]
        %v3974 = vld [vmem:[%s3 + $0x38] sm:$0xff]
        %v3975 = vld [vmem:[%s4] sm:$0xff]
        %v3976 = vld [vmem:[%s4 + $0x8] sm:$0xff]
        %v3977 = vld [vmem:[%s4 + $0x10] sm:$0xff]
        %v3978 = vld [vmem:[%s4 + $0x18] sm:$0xff]
        %v3979 = vld [vmem:[%s4 + $0x20] sm:$0xff]
        %v3980 = vld [vmem:[%s4 + $0x28] sm:$0xff]
        %v3981 = vld [vmem:[%s4 + $0x30] sm:$0xff]
        %v3982 = vld [vmem:[%s4 + $0x38] sm:$0xff]
        %3984 = vset.pattern.permute.xlu0 0
        %3985 = vperm.xlu0 %3984, %v3975
        %v3986 = vpop.permute.xlu0 %3985
        %3989 = vset.pattern.permute.xlu0 0
        %3990 = vperm.xlu0 %3989, %v3976
        %v3991 = vpop.permute.xlu0 %3990
        %3994 = vset.pattern.permute.xlu0 0
        %3995 = vperm.xlu0 %3994, %v3977
        %v3996 = vpop.permute.xlu0 %3995
        %3999 = vset.pattern.permute.xlu0 0
        %4000 = vperm.xlu0 %3999, %v3978
        %v4001 = vpop.permute.xlu0 %4000
        %4004 = vset.pattern.permute.xlu0 0
        %4005 = vperm.xlu0 %4004, %v3979
        %v4006 = vpop.permute.xlu0 %4005
        %4009 = vset.pattern.permute.xlu0 0
        %4010 = vperm.xlu0 %4009, %v3980
        %v4011 = vpop.permute.xlu0 %4010
        %4014 = vset.pattern.permute.xlu0 0
        %4015 = vperm.xlu0 %4014, %v3981
        %v4016 = vpop.permute.xlu0 %4015
        %4019 = vset.pattern.permute.xlu0 0
        %4020 = vperm.xlu0 %4019, %v3982
        %v4021 = vpop.permute.xlu0 %4020
        %v4031 = vunpack.c.l.b16 %v3967
        %v4032 = vunpack.c.h.b16 %v3967
        %v4033 = vunpack.c.l.b16 %v3968
        %v4034 = vunpack.c.h.b16 %v3968
        %v4035 = vunpack.c.l.b16 %v3969
        %v4036 = vunpack.c.h.b16 %v3969
        %v4037 = vunpack.c.l.b16 %v3970
        %v4038 = vunpack.c.h.b16 %v3970
        %v4039 = vunpack.c.l.b16 %v3971
        %v4040 = vunpack.c.h.b16 %v3971
        %v4041 = vunpack.c.l.b16 %v3972
        %v4042 = vunpack.c.h.b16 %v3972
        %v4043 = vunpack.c.l.b16 %v3973
        %v4044 = vunpack.c.h.b16 %v3973
        %v4045 = vunpack.c.l.b16 %v3974
        %v4046 = vunpack.c.h.b16 %v3974
        %v4047 = vpack.c.b16 %v4033, %v4031
        %v4048 = vpack.c.b16 %v4034, %v4032
        %v4049 = vpack.c.b16 %v4037, %v4035
        %v4050 = vpack.c.b16 %v4038, %v4036
        %v4051 = vpack.c.b16 %v4041, %v4039
        %v4052 = vpack.c.b16 %v4042, %v4040
        %v4053 = vpack.c.b16 %v4045, %v4043
        %v4054 = vpack.c.b16 %v4046, %v4044
        %4063 = vmatpush.bf16.msra.mxu0 %v3931
        %4064 = vmatpush.bf16.msra.mxu0 %v3927
        %4065 = vmatpush.bf16.msra.mxu0 %v3923
        %4066 = vmatpush.bf16.msra.mxu0 %v3919
        %4067 = vmatpush.bf16.msra.mxu0 %v3915
        %4068 = vmatpush.bf16.msra.mxu0 %v3911
        %4069 = vmatpush.bf16.msra.mxu0 %v3907
        %4070 = vmatpush.bf16.msra.mxu0 %v3903
        %4071 = vmatmul.bf16.gmra.mxu0 %v4047
        %v4072 = vpop.f32.mrf.mxu0
        %v4073 = vadd.f32 %v3986, %v4072
        %v4074 = vpop.f32.mrf.mxu0
        %v4075 = vadd.f32 %v3991, %v4074
        %4076 = vmatmul.bf16.gmra.mxu0 %v4049
        %v4077 = vpop.f32.mrf.mxu0
        %v4078 = vadd.f32 %v3996, %v4077
        %v4079 = vpop.f32.mrf.mxu0
        %v4080 = vadd.f32 %v4001, %v4079
        %4081 = vmatmul.bf16.gmra.mxu0 %v4051
        %v4082 = vpop.f32.mrf.mxu0
        %v4083 = vadd.f32 %v4006, %v4082
        %v4084 = vpop.f32.mrf.mxu0
        %v4085 = vadd.f32 %v4011, %v4084
        %4086 = vmatmul.bf16.gmra.mxu0 %v4053
        %v4087 = vpop.f32.mrf.mxu0
        %v4088 = vadd.f32 %v4016, %v4087
        %v4089 = vpop.f32.mrf.mxu0
        %v4090 = vadd.f32 %v4021, %v4089
        %4091 = vdwg.mxu0
        %4092 = vmatpush.bf16.msra.mxu0 %v3963
        %4093 = vmatpush.bf16.msra.mxu0 %v3959
        %4094 = vmatpush.bf16.msra.mxu0 %v3955
        %4095 = vmatpush.bf16.msra.mxu0 %v3951
        %4096 = vmatpush.bf16.msra.mxu0 %v3947
        %4097 = vmatpush.bf16.msra.mxu0 %v3943
        %4098 = vmatpush.bf16.msra.mxu0 %v3939
        %4099 = vmatpush.bf16.msra.mxu0 %v3935
        %4100 = vmatmul.bf16.gmra.mxu0 %v4048
        %v4101 = vpop.f32.mrf.mxu0
        %v4102 = vadd.f32 %v4073, %v4101
        %v4103 = vpop.f32.mrf.mxu0
        %v4104 = vadd.f32 %v4075, %v4103
        %4105 = vmatmul.bf16.gmra.mxu0 %v4050
        %v4106 = vpop.f32.mrf.mxu0
        %v4107 = vadd.f32 %v4078, %v4106
        %v4108 = vpop.f32.mrf.mxu0
        %v4109 = vadd.f32 %v4080, %v4108
        %4110 = vmatmul.bf16.gmra.mxu0 %v4052
        %v4111 = vpop.f32.mrf.mxu0
        %v4112 = vadd.f32 %v4083, %v4111
        %v4113 = vpop.f32.mrf.mxu0
        %v4114 = vadd.f32 %v4085, %v4113
        %4115 = vmatmul.bf16.gmra.mxu0 %v4054
        %v4116 = vpop.f32.mrf.mxu0
        %v4117 = vadd.f32 %v4088, %v4116
        %v4118 = vpop.f32.mrf.mxu0
        %v4119 = vadd.f32 %v4090, %v4118
        %4120 = vdwg.mxu0
        %4121 = vmatpush.bf16.msra.mxu0 %v3932
        %4122 = vmatpush.bf16.msra.mxu0 %v3928
        %4123 = vmatpush.bf16.msra.mxu0 %v3924
        %4124 = vmatpush.bf16.msra.mxu0 %v3920
        %4125 = vmatpush.bf16.msra.mxu0 %v3916
        %4126 = vmatpush.bf16.msra.mxu0 %v3912
        %4127 = vmatpush.bf16.msra.mxu0 %v3908
        %4128 = vmatpush.bf16.msra.mxu0 %v3904
        %4129 = vmatmul.bf16.gmra.mxu0 %v4047
        %v4130 = vpop.f32.mrf.mxu0
        %v4131 = vadd.f32 %v3986, %v4130
        %v4132 = vpop.f32.mrf.mxu0
        %v4133 = vadd.f32 %v3991, %v4132
        %4134 = vmatmul.bf16.gmra.mxu0 %v4049
        %v4135 = vpop.f32.mrf.mxu0
        %v4136 = vadd.f32 %v3996, %v4135
        %v4137 = vpop.f32.mrf.mxu0
        %v4138 = vadd.f32 %v4001, %v4137
        %4139 = vmatmul.bf16.gmra.mxu0 %v4051
        %v4140 = vpop.f32.mrf.mxu0
        %v4141 = vadd.f32 %v4006, %v4140
        %v4142 = vpop.f32.mrf.mxu0
        %v4143 = vadd.f32 %v4011, %v4142
        %4144 = vmatmul.bf16.gmra.mxu0 %v4053
        %v4145 = vpop.f32.mrf.mxu0
        %v4146 = vadd.f32 %v4016, %v4145
        %v4147 = vpop.f32.mrf.mxu0
        %v4148 = vadd.f32 %v4021, %v4147
        %4149 = vdwg.mxu0
        %4150 = vmatpush.bf16.msra.mxu0 %v3964
        %4151 = vmatpush.bf16.msra.mxu0 %v3960
        %4152 = vmatpush.bf16.msra.mxu0 %v3956
        %4153 = vmatpush.bf16.msra.mxu0 %v3952
        %4154 = vmatpush.bf16.msra.mxu0 %v3948
        %4155 = vmatpush.bf16.msra.mxu0 %v3944
        %4156 = vmatpush.bf16.msra.mxu0 %v3940
        %4157 = vmatpush.bf16.msra.mxu0 %v3936
        %4158 = vmatmul.bf16.gmra.mxu0 %v4048
        %v4159 = vpop.f32.mrf.mxu0
        %v4160 = vadd.f32 %v4131, %v4159
        %v4161 = vpop.f32.mrf.mxu0
        %v4162 = vadd.f32 %v4133, %v4161
        %4163 = vmatmul.bf16.gmra.mxu0 %v4050
        %v4164 = vpop.f32.mrf.mxu0
        %v4165 = vadd.f32 %v4136, %v4164
        %v4166 = vpop.f32.mrf.mxu0
        %v4167 = vadd.f32 %v4138, %v4166
        %4168 = vmatmul.bf16.gmra.mxu0 %v4052
        %v4169 = vpop.f32.mrf.mxu0
        %v4170 = vadd.f32 %v4141, %v4169
        %v4171 = vpop.f32.mrf.mxu0
        %v4172 = vadd.f32 %v4143, %v4171
        %4173 = vmatmul.bf16.gmra.mxu0 %v4054
        %v4174 = vpop.f32.mrf.mxu0
        %v4175 = vadd.f32 %v4146, %v4174
        %v4176 = vpop.f32.mrf.mxu0
        %v4177 = vadd.f32 %v4148, %v4176
        %4178 = vdwg.mxu0
        %4179 = vmatpush.bf16.msra.mxu0 %v3933
        %4180 = vmatpush.bf16.msra.mxu0 %v3929
        %4181 = vmatpush.bf16.msra.mxu0 %v3925
        %4182 = vmatpush.bf16.msra.mxu0 %v3921
        %4183 = vmatpush.bf16.msra.mxu0 %v3917
        %4184 = vmatpush.bf16.msra.mxu0 %v3913
        %4185 = vmatpush.bf16.msra.mxu0 %v3909
        %4186 = vmatpush.bf16.msra.mxu0 %v3905
        %4187 = vmatmul.bf16.gmra.mxu0 %v4047
        %v4188 = vpop.f32.mrf.mxu0
        %v4189 = vadd.f32 %v3986, %v4188
        %v4190 = vpop.f32.mrf.mxu0
        %v4191 = vadd.f32 %v3991, %v4190
        %4192 = vmatmul.bf16.gmra.mxu0 %v4049
        %v4193 = vpop.f32.mrf.mxu0
        %v4194 = vadd.f32 %v3996, %v4193
        %v4195 = vpop.f32.mrf.mxu0
        %v4196 = vadd.f32 %v4001, %v4195
        %4197 = vmatmul.bf16.gmra.mxu0 %v4051
        %v4198 = vpop.f32.mrf.mxu0
        %v4199 = vadd.f32 %v4006, %v4198
        %v4200 = vpop.f32.mrf.mxu0
        %v4201 = vadd.f32 %v4011, %v4200
        %4202 = vmatmul.bf16.gmra.mxu0 %v4053
        %v4203 = vpop.f32.mrf.mxu0
        %v4204 = vadd.f32 %v4016, %v4203
        %v4205 = vpop.f32.mrf.mxu0
        %v4206 = vadd.f32 %v4021, %v4205
        %4207 = vdwg.mxu0
        %4208 = vmatpush.bf16.msra.mxu0 %v3965
        %4209 = vmatpush.bf16.msra.mxu0 %v3961
        %4210 = vmatpush.bf16.msra.mxu0 %v3957
        %4211 = vmatpush.bf16.msra.mxu0 %v3953
        %4212 = vmatpush.bf16.msra.mxu0 %v3949
        %4213 = vmatpush.bf16.msra.mxu0 %v3945
        %4214 = vmatpush.bf16.msra.mxu0 %v3941
        %4215 = vmatpush.bf16.msra.mxu0 %v3937
        %4216 = vmatmul.bf16.gmra.mxu0 %v4048
        %v4217 = vpop.f32.mrf.mxu0
        %v4218 = vadd.f32 %v4189, %v4217
        %v4219 = vpop.f32.mrf.mxu0
        %v4220 = vadd.f32 %v4191, %v4219
        %4221 = vmatmul.bf16.gmra.mxu0 %v4050
        %v4222 = vpop.f32.mrf.mxu0
        %v4223 = vadd.f32 %v4194, %v4222
        %v4224 = vpop.f32.mrf.mxu0
        %v4225 = vadd.f32 %v4196, %v4224
        %4226 = vmatmul.bf16.gmra.mxu0 %v4052
        %v4227 = vpop.f32.mrf.mxu0
        %v4228 = vadd.f32 %v4199, %v4227
        %v4229 = vpop.f32.mrf.mxu0
        %v4230 = vadd.f32 %v4201, %v4229
        %4231 = vmatmul.bf16.gmra.mxu0 %v4054
        %v4232 = vpop.f32.mrf.mxu0
        %v4233 = vadd.f32 %v4204, %v4232
        %v4234 = vpop.f32.mrf.mxu0
        %v4235 = vadd.f32 %v4206, %v4234
        %4236 = vdwg.mxu0
        %4237 = vmatpush.bf16.msra.mxu0 %v3934
        %4238 = vmatpush.bf16.msra.mxu0 %v3930
        %4239 = vmatpush.bf16.msra.mxu0 %v3926
        %4240 = vmatpush.bf16.msra.mxu0 %v3922
        %4241 = vmatpush.bf16.msra.mxu0 %v3918
        %4242 = vmatpush.bf16.msra.mxu0 %v3914
        %4243 = vmatpush.bf16.msra.mxu0 %v3910
        %4244 = vmatpush.bf16.msra.mxu0 %v3906
        %4245 = vmatmul.bf16.gmra.mxu0 %v4047
        %v4246 = vpop.f32.mrf.mxu0
        %v4247 = vadd.f32 %v3986, %v4246
        %v4248 = vpop.f32.mrf.mxu0
        %v4249 = vadd.f32 %v3991, %v4248
        %4250 = vmatmul.bf16.gmra.mxu0 %v4049
        %v4251 = vpop.f32.mrf.mxu0
        %v4252 = vadd.f32 %v3996, %v4251
        %v4253 = vpop.f32.mrf.mxu0
        %v4254 = vadd.f32 %v4001, %v4253
        %4255 = vmatmul.bf16.gmra.mxu0 %v4051
        %v4256 = vpop.f32.mrf.mxu0
        %v4257 = vadd.f32 %v4006, %v4256
        %v4258 = vpop.f32.mrf.mxu0
        %v4259 = vadd.f32 %v4011, %v4258
        %4260 = vmatmul.bf16.gmra.mxu0 %v4053
        %v4261 = vpop.f32.mrf.mxu0
        %v4262 = vadd.f32 %v4016, %v4261
        %v4263 = vpop.f32.mrf.mxu0
        %v4264 = vadd.f32 %v4021, %v4263
        %4265 = vdwg.mxu0
        %4266 = vmatpush.bf16.msra.mxu0 %v3966
        %4267 = vmatpush.bf16.msra.mxu0 %v3962
        %4268 = vmatpush.bf16.msra.mxu0 %v3958
        %4269 = vmatpush.bf16.msra.mxu0 %v3954
        %4270 = vmatpush.bf16.msra.mxu0 %v3950
        %4271 = vmatpush.bf16.msra.mxu0 %v3946
        %4272 = vmatpush.bf16.msra.mxu0 %v3942
        %4273 = vmatpush.bf16.msra.mxu0 %v3938
        %4274 = vmatmul.bf16.gmra.mxu0 %v4048
        %v4275 = vpop.f32.mrf.mxu0
        %v4276 = vadd.f32 %v4247, %v4275
        %v4277 = vpop.f32.mrf.mxu0
        %v4278 = vadd.f32 %v4249, %v4277
        %4279 = vmatmul.bf16.gmra.mxu0 %v4050
        %v4280 = vpop.f32.mrf.mxu0
        %v4281 = vadd.f32 %v4252, %v4280
        %v4282 = vpop.f32.mrf.mxu0
        %v4283 = vadd.f32 %v4254, %v4282
        %4284 = vmatmul.bf16.gmra.mxu0 %v4052
        %v4285 = vpop.f32.mrf.mxu0
        %v4286 = vadd.f32 %v4257, %v4285
        %v4287 = vpop.f32.mrf.mxu0
        %v4288 = vadd.f32 %v4259, %v4287
        %4289 = vmatmul.bf16.gmra.mxu0 %v4054
        %v4290 = vpop.f32.mrf.mxu0
        %v4291 = vadd.f32 %v4262, %v4290
        %v4292 = vpop.f32.mrf.mxu0
        %v4293 = vadd.f32 %v4264, %v4292
        %4294 = vdwg.mxu0
        %4295 = vst [vmem:[%s262] sm:$0xff] %v4102
        %4296 = vst [vmem:[%s262 + $0x8] sm:$0xff] %v4160
        %4297 = vst [vmem:[%s262 + $0x10] sm:$0xff] %v4218
        %4298 = vst [vmem:[%s262 + $0x18] sm:$0xff] %v4276
        %4299 = vst [vmem:[%s262 + $0x20] sm:$0xff] %v4104
        %4300 = vst [vmem:[%s262 + $0x28] sm:$0xff] %v4162
        %4301 = vst [vmem:[%s262 + $0x30] sm:$0xff] %v4220
        %4302 = vst [vmem:[%s262 + $0x38] sm:$0xff] %v4278
        %4303 = vst [vmem:[%s262 + $0x40] sm:$0xff] %v4107
        %4304 = vst [vmem:[%s262 + $0x48] sm:$0xff] %v4165
        %4305 = vst [vmem:[%s262 + $0x50] sm:$0xff] %v4223
        %4306 = vst [vmem:[%s262 + $0x58] sm:$0xff] %v4281
        %4307 = vst [vmem:[%s262 + $0x60] sm:$0xff] %v4109
        %4308 = vst [vmem:[%s262 + $0x68] sm:$0xff] %v4167
        %4309 = vst [vmem:[%s262 + $0x70] sm:$0xff] %v4225
        %4310 = vst [vmem:[%s262 + $0x78] sm:$0xff] %v4283
        %4311 = vst [vmem:[%s262 + $0x80] sm:$0xff] %v4112
        %4312 = vst [vmem:[%s262 + $0x88] sm:$0xff] %v4170
        %4313 = vst [vmem:[%s262 + $0x90] sm:$0xff] %v4228
        %4314 = vst [vmem:[%s262 + $0x98] sm:$0xff] %v4286
        %4315 = vst [vmem:[%s262 + $0xa0] sm:$0xff] %v4114
        %4316 = vst [vmem:[%s262 + $0xa8] sm:$0xff] %v4172
        %4317 = vst [vmem:[%s262 + $0xb0] sm:$0xff] %v4230
        %4318 = vst [vmem:[%s262 + $0xb8] sm:$0xff] %v4288
        %4319 = vst [vmem:[%s262 + $0xc0] sm:$0xff] %v4117
        %4320 = vst [vmem:[%s262 + $0xc8] sm:$0xff] %v4175
        %4321 = vst [vmem:[%s262 + $0xd0] sm:$0xff] %v4233
        %4322 = vst [vmem:[%s262 + $0xd8] sm:$0xff] %v4291
        %4323 = vst [vmem:[%s262 + $0xe0] sm:$0xff] %v4119
        %4324 = vst [vmem:[%s262 + $0xe8] sm:$0xff] %v4177
        %4325 = vst [vmem:[%s262 + $0xf0] sm:$0xff] %v4235
        %4326 = vst [vmem:[%s262 + $0xf8] sm:$0xff] %v4293
        %s4327 = sand.u32 %s156, 1
        %s4328 = scalar_lea.sflag [#allocation4], %s4327
        %s4329 = sand.u32 %s156, 1
        %s4330 = smul.addr %s4329, 256
        %s4331 = scalar_lea.vmem [#allocation5], %s4330
        // Predicated region
        $region45: #{tpu_custom_call.1} parent=39 // pred_check
          %p4332 = pneg %p166
        $region46: #{tpu_custom_call.1} parent=39 // pred_check_branch
          %4334 = sbr.rel (%p4332) target = $region48
        $region47: #{tpu_custom_call.1} parent=39 // pred_region
          %s4335 = smul.u32 4, %s27
          %4337 = vsyncadd %s4328, 0
          %s4338 = smul.addr %s26, 32
          %s4339 = sadd.s32 %s4335, %s4338
          %s4340 = smul.addr %s4339, 8
          %s4341 = scalar_lea.hbm %s5, %s4340
          %s4342 = sshll.u32 %s4331, 4
          %s4343 = int_to_ptr.vmem [resolvable:$true] %s4342
          %s4344 = sshll.u32 %s4341, 4
          %s4345 = int_to_ptr.hbm [resolvable:$true] %s4344
          %4350 = dma.vmem_to_hbm [thread:$0]  %s4343, 4096, %s4345, %s4328, 512, 512, 32
        $region48: #{tpu_custom_call.1} parent=39 // pred_fallthru
          _
      $region40: #{tpu_custom_call.1} parent=5 // pred_fallthru
        _
      %p4351 = scmp.le.s32.totalorder 2, %s17
      // Predicated region
      $region49: #{tpu_custom_call.1} parent=5 // pred_check
        %p4352 = pneg %p4351
      $region50: #{tpu_custom_call.1} parent=5 // pred_check_branch
        %4354 = sbr.rel (%p4352) target = $region52
      $region51: #{tpu_custom_call.1} parent=5 // pred_region
        %s4355 = ssub.s32 %s17, 2
        // Predicated region
        $region53: #{tpu_custom_call.1} parent=51 // pred_check
          %p4356 = pneg %p172
        $region54: #{tpu_custom_call.1} parent=51 // pred_check_branch
          %4358 = sbr.rel (%p4356) target = $region56
        $region55: #{tpu_custom_call.1} parent=51 // pred_region
          %s4359 = sand.u32 %s157, 1
          %s4360 = scalar_lea.sflag [#allocation4], %s4359
          %s4361 = sand.u32 %s157, 1
          %s4362 = smul.addr %s4361, 256
          %s4363 = scalar_lea.vmem [#allocation5], %s4362
          %4365 = dma.done %s4360, 4096
        $region56: #{tpu_custom_call.1} parent=51 // pred_fallthru
          _
      $region52: #{tpu_custom_call.1} parent=5 // pred_fallthru
        _
    $region6: #{tpu_custom_call.1} parent=1 // loop_footer
      %s21 = sadd.s32 1, %s17
    $region7: #{tpu_custom_call.1} parent=1 // loop_footer_branch
      %16 = sbr.rel target = $region3
    $region8: #{tpu_custom_call.1} parent=1 // loop_exit
      _
    %4366 = vsyncpa [#allocation3], 1
    %s4367 = scalar_lea.sflag [#allocation3], 1
    %4368 = vsyncpa %s4367, 1
    %4369 = vsyncpa [#allocation4], 1
    %s4370 = scalar_lea.sflag [#allocation4], 1
    %4371 = vsyncpa %s4370, 1

</llo_original>
